<compile_context>
chip_gen: v7x
topology: tpu7x:2x2x1
jax: 0.10.0
libtpu: 0.0.40
codegen_flags: <defaults>
</compile_context>

<pallas_src>
import functools
import math

import jax
import jax.numpy as jnp
from jax.experimental import pallas as pl
from jax.experimental.pallas import tpu as pltpu

# -------------------- small synthetic config --------------------
CFG = dict(
    vocab=100,        # vocab size for word embeddings
    max_pos=32,       # max positions
    hidden=32,        # hidden_size (stands in for 1024 of roberta-large)
    heads=4,
    ffn=64,           # intermediate size
    layers=2,         # encoder layers (stands in for 24)
    adapter_size=16,  # adapter bottleneck
    num_labels=3,
    batch=2,
    seq=8,
)

_MM_DTYPE = jnp.bfloat16  # MXU operand dtype; accumulation stays f32


def _mm(a, w_bf16):
    """activation (f32) x weight (stored bf16) with f32 accumulation."""
    return jnp.dot(a.astype(_MM_DTYPE), w_bf16, preferred_element_type=jnp.float32)


def _layernorm(x, g, b, eps):
    mu = jnp.mean(x, axis=-1, keepdims=True)
    var = jnp.mean((x - mu) ** 2, axis=-1, keepdims=True)
    return (x - mu) * jax.lax.rsqrt(var + eps) * g + b


# -------------------- fused encoder stack: one call, grid over layers --------
def _encoder_stack_kernel(h0_ref, bias_ref, embg_ref, embb_ref,
                          wqkv_ref, bqkv_ref, wo_ref, bo_ref,
                          ln1g_ref, ln1b_ref, wi_ref, bi_ref,
                          wf_ref, bf_ref, ln2g_ref, ln2b_ref,
                          o_ref, carry, attn_buf,
                          *, B, S, nH, hd, eps):
    H = nH * hd
    l = pl.program_id(0)

    # Layer 0 only: embedding LayerNorm fused here (no separate launch).
    @pl.when(l == 0)
    def _():
        x0 = h0_ref[...].astype(jnp.float32)
        carry[...] = _layernorm(x0, embg_ref[...], embb_ref[...], eps)

    h = carry[...]                                      # (B*S, H) f32, VMEM-resident

    # Fused Q|K|V projection: one (B*S,H)@(H,3H) MXU matmul (bf16 weights).
    qkv = _mm(h, wqkv_ref[...]) + bqkv_ref[...]         # (B*S, 3H) f32

    scale = 1.0 / math.sqrt(hd)
    q_all = (qkv[:, 0:H] * scale).reshape(B * S, nH, hd)
    k_all = qkv[:, H:2 * H].reshape(B * S, nH, hd)
    v_all = qkv[:, 2 * H:3 * H].reshape(B * S, nH, hd)
    wo_heads = wo_ref[...].reshape(nH, hd, H)           # bf16, leading-dim split
    bias = bias_ref[...]                                # (B, S) additive mask, f32

    # Per-batch attention with all heads batched in single dot_generals.
    # Padded query rows produce unused values; only the first token is pooled
    # downstream, so this is benign (do not change to mean/max pooling).
    for b in range(B):
        q3 = q_all[b * S:(b + 1) * S].astype(_MM_DTYPE)  # (S, nH, hd)
        k3 = k_all[b * S:(b + 1) * S].astype(_MM_DTYPE)
        v3 = v_all[b * S:(b + 1) * S].astype(_MM_DTYPE)
        s = jax.lax.dot_general(q3, k3, (((2,), (2,)), ((1,), (1,))),
                                preferred_element_type=jnp.float32)   # (nH, S, S)
        s = s + bias[b:b + 1, :]                         # (1,S) -> key-position mask
        s = s - jnp.max(s, axis=-1, keepdims=True)
        p = jnp.exp(s)
        p = p * pl.reciprocal(jnp.sum(p, axis=-1, keepdims=True), approx=True)
        ctx = jax.lax.dot_general(p.astype(_MM_DTYPE), v3,
                                  (((2,), (0,)), ((0,), (1,))),
                                  preferred_element_type=jnp.float32)  # (nH, S, hd)
        per_head = jax.lax.dot_general(ctx.astype(_MM_DTYPE), wo_heads,
                                       (((2,), (1,)), ((0,), (0,))),
                                       preferred_element_type=jnp.float32)  # (nH,S,H)
        attn_buf[pl.ds(b * S, S), :] = jnp.sum(per_head, axis=0)

    attn = attn_buf[...] + bo_ref[...]
    h1 = _layernorm(attn + h, ln1g_ref[...], ln1b_ref[...], eps)

    # FFN (bf16 weights, f32 accumulation / GELU)
    f = _mm(h1, wi_ref[...]) + bi_ref[...]
    f = jax.nn.gelu(f, approximate=True)
    f = _mm(f, wf_ref[...]) + bf_ref[...]
    h2 = _layernorm(f + h1, ln2g_ref[...], ln2b_ref[...], eps)

    carry[...] = h2                                     # carry to next layer in VMEM

    @pl.when(l == pl.num_programs(0) - 1)
    def _():
        o_ref[...] = h2.astype(o_ref.dtype)             # only final layer hits HBM


# -------------------- fused head: adapters + concat fusion + classifier ------
def _head_kernel(x_ref,
                 ada_wd_ref, ada_bd_ref, ada_wu_ref, ada_bu_ref,
                 fus_w1_ref, fus_w2_ref, fus_b_ref,
                 cls_w_ref, cls_b_ref, o_ref):
    x = x_ref[...].astype(jnp.float32)                  # (B, H) first-token rows
    xb = x.astype(_MM_DTYPE)

    def adapter(i):
        # TODO(synk): AdapterModel approximated as residual bottleneck adapter.
        a = jnp.dot(xb, ada_wd_ref[i], preferred_element_type=jnp.float32) + ada_bd_ref[i]
        a = jax.nn.gelu(a, approximate=True)
        up = jnp.dot(a.astype(_MM_DTYPE), ada_wu_ref[i],
                     preferred_element_type=jnp.float32) + ada_bu_ref[i]
        return x + up

    fac_out = adapter(0)
    lin_out = adapter(1)

    def fuse(i, left, right):
        # 'concat' fusion: Linear(2H,H)(cat([left,right])) with pre-split weights,
        # so the concat never materializes.
        return (jnp.dot(left.astype(_MM_DTYPE), fus_w1_ref[i],
                        preferred_element_type=jnp.float32)
                + jnp.dot(right.astype(_MM_DTYPE), fus_w2_ref[i],
                          preferred_element_type=jnp.float32)
                + fus_b_ref[i])

    fac_feat = fuse(0, x, fac_out)      # task_dense_fac
    lin_feat = fuse(1, x, lin_out)      # task_dense_lin
    task = fuse(2, fac_feat, lin_feat)  # task_dense

    # dropout: identity at inference; classifier:
    logits = jnp.dot(task.astype(_MM_DTYPE), cls_w_ref[...],
                     preferred_element_type=jnp.float32) + cls_b_ref[...]
    o_ref[...] = logits.astype(o_ref.dtype)


# -------------------- BlockSpec helpers --------------------
def _const_spec(a):
    nd = a.ndim
    return pl.BlockSpec(a.shape, lambda l, _nd=nd: (0,) * _nd)


def _layer_spec(a):
    nd = a.ndim
    return pl.BlockSpec((None,) + tuple(a.shape[1:]),
                        lambda l, _nd=nd: (l,) + (0,) * (_nd - 1))


def _full_specs(arrays):
    return [pl.BlockSpec(a.shape, lambda i, nd=a.ndim: (0,) * nd) for a in arrays]


def _single_step_call(kernel, inputs, out_shape):
    return pl.pallas_call(
        kernel,
        out_shape=out_shape,
        grid=(1,),
        in_specs=_full_specs(inputs),
        out_specs=pl.BlockSpec(out_shape.shape,
                               lambda i, nd=len(out_shape.shape): (0,) * nd),
        compiler_params=pltpu.CompilerParams(dimension_semantics=("arbitrary",)),
    )(*inputs)


# -------------------- deterministic parameter init --------------------
def init_params(key):
    H, F, A, L = CFG["hidden"], CFG["ffn"], CFG["adapter_size"], CFG["layers"]
    NL = CFG["num_labels"]
    keys = iter(jax.random.split(key, 64))

    def w(shape, dtype=_MM_DTYPE):   # weight matrices stored bf16 in HBM
        return (jax.random.normal(next(keys), shape, jnp.float32) * 0.02).astype(dtype)

    def bvec(shape):                 # biases stay f32 (added to f32 accumulators)
        return jax.random.normal(next(keys), shape, jnp.float32) * 0.02

    p = {}
    p["word_emb"] = jax.random.normal(next(keys), (CFG["vocab"], H), jnp.float32) * 0.02
    p["pos_emb"] = jax.random.normal(next(keys), (CFG["max_pos"], H), jnp.float32) * 0.02
    p["emb_ln_g"] = jnp.ones((1, H), jnp.float32)
    p["emb_ln_b"] = jnp.zeros((1, H), jnp.float32)

    # encoder: per-layer weights stacked along a leading layer axis
    p["enc"] = dict(
        wqkv=w((L, H, 3 * H)), bqkv=bvec((L, 1, 3 * H)),
        wo=w((L, H, H)), bo=bvec((L, 1, H)),
        ln1g=jnp.ones((L, 1, H), jnp.float32), ln1b=jnp.zeros((L, 1, H), jnp.float32),
        wi=w((L, H, F)), bi=bvec((L, 1, F)),
        wf=w((L, F, H)), bf=bvec((L, 1, H)),
        ln2g=jnp.ones((L, 1, H), jnp.float32), ln2b=jnp.zeros((L, 1, H), jnp.float32),
    )

    # head: 2 adapters stacked; 3 concat-fusion Linear(2H,H) stacked & pre-split
    p["ada_wd"] = w((2, H, A)); p["ada_bd"] = bvec((2, 1, A))
    p["ada_wu"] = w((2, A, H)); p["ada_bu"] = bvec((2, 1, H))
    fus = w((3, 2 * H, H))                       # [task_dense_fac, task_dense_lin, task_dense]
    p["fus_w1"] = fus[:, :H, :]
    p["fus_w2"] = fus[:, H:, :]
    p["fus_b"] = bvec((3, 1, H))
    p["cls_w"] = w((H, NL)); p["cls_b"] = bvec((1, NL))
    return p


# -------------------- full forward pass --------------------
def kadapter_forward(params, input_ids, attention_mask):
    B, S = input_ids.shape
    H, nH, L = CFG["hidden"], CFG["heads"], CFG["layers"]
    hd = H // nH

    # embeddings: gather + position add are glue (XLA fuses them); the embedding
    # LayerNorm is fused into layer 0 of the encoder-stack kernel.
    h0 = (jnp.take(params["word_emb"], input_ids, axis=0)
          + params["pos_emb"][:S][None, :, :]).reshape(B * S, H)

    # additive attention-mask bias computed ONCE for all layers (hoisted)
    add_bias = (1.0 - attention_mask.astype(jnp.float32)) * (-1e9)   # (B, S)

    e = params["enc"]
    stack_inputs = (h0, add_bias, params["emb_ln_g"], params["emb_ln_b"],
                    e["wqkv"], e["bqkv"], e["wo"], e["bo"],
                    e["ln1g"], e["ln1b"], e["wi"], e["bi"],
                    e["wf"], e["bf"], e["ln2g"], e["ln2b"])
    in_specs = ([_const_spec(a) for a in stack_inputs[:4]]
                + [_layer_spec(a) for a in stack_inputs[4:]])

    # ONE pallas_call over grid=(layers,): BlockSpec double-buffering prefetches
    # layer l+1 weights under layer l compute; the activation stays in VMEM.
    last_hidden = pl.pallas_call(
        functools.partial(_encoder_stack_kernel, B=B, S=S, nH=nH, hd=hd, eps=1e-5),
        out_shape=jax.ShapeDtypeStruct((B * S, H), jnp.bfloat16),
        grid=(L,),
        in_specs=in_specs,
        out_specs=pl.BlockSpec((B * S, H), lambda l: (0, 0)),
        scratch_shapes=[pltpu.VMEM((B * S, H), jnp.float32),   # activation carry
                        pltpu.VMEM((B * S, H), jnp.float32)],  # attention buffer
        compiler_params=pltpu.CompilerParams(
            dimension_semantics=("arbitrary",),
            vmem_limit_bytes=32 * 1024 * 1024),
    )(*stack_inputs)

    # Only first-token rows feed the head (only logits are returned, so running
    # adapters/fusion/classifier on those rows is algebraically exact).
    pooled = last_hidden.reshape(B, S, H)[:, 0, :]        # (B, H) glue slice

    head_inputs = (pooled, params["ada_wd"], params["ada_bd"], params["ada_wu"],
                   params["ada_bu"], params["fus_w1"], params["fus_w2"],
                   params["fus_b"], params["cls_w"], params["cls_b"])
    logits = _single_step_call(
        _head_kernel, head_inputs,
        jax.ShapeDtypeStruct((B, CFG["num_labels"]), jnp.float32))
    return logits


if __name__ == "__main__":
    key = jax.random.PRNGKey(0)
    pkey, ikey = jax.random.split(key)
    params = init_params(pkey)

    B, S = CFG["batch"], CFG["seq"]
    input_ids = jax.random.randint(ikey, (B, S), 0, CFG["vocab"], dtype=jnp.int32)
    attention_mask = jnp.ones((B, S), jnp.int32).at[1, 6:].set(0)

    logits = jax.jit(kadapter_forward)(params, input_ids, attention_mask)
    jax.block_until_ready(logits)
    assert logits.shape == (B, CFG["num_labels"]), logits.shape
    assert bool(jnp.all(jnp.isfinite(logits)))
    print("KERNEL_OK")
</pallas_src>

<mosaic_0001>
module attributes {stable_mosaic.version = 11 : i64} {
  func.func @_encoder_stack_kernel(%arg0: i32, %arg1: memref<16x32xf32, #tpu.memory_space<vmem>>, %arg2: memref<2x8xf32, #tpu.memory_space<vmem>>, %arg3: memref<1x32xf32, #tpu.memory_space<vmem>>, %arg4: memref<1x32xf32, #tpu.memory_space<vmem>>, %arg5: memref<1x32x96xbf16, #tpu.memory_space<vmem>>, %arg6: memref<1x1x96xf32, #tpu.memory_space<vmem>>, %arg7: memref<1x32x32xbf16, #tpu.memory_space<vmem>>, %arg8: memref<1x1x32xf32, #tpu.memory_space<vmem>>, %arg9: memref<1x1x32xf32, #tpu.memory_space<vmem>>, %arg10: memref<1x1x32xf32, #tpu.memory_space<vmem>>, %arg11: memref<1x32x64xbf16, #tpu.memory_space<vmem>>, %arg12: memref<1x1x64xf32, #tpu.memory_space<vmem>>, %arg13: memref<1x64x32xbf16, #tpu.memory_space<vmem>>, %arg14: memref<1x1x32xf32, #tpu.memory_space<vmem>>, %arg15: memref<1x1x32xf32, #tpu.memory_space<vmem>>, %arg16: memref<1x1x32xf32, #tpu.memory_space<vmem>>, %arg17: memref<16x32xbf16, #tpu.memory_space<vmem>>, %arg18: memref<16x32xf32, #tpu.memory_space<vmem>>, %arg19: memref<16x32xf32, #tpu.memory_space<vmem>>) attributes {dimension_semantics = [#tpu.dimension_semantics<arbitrary>], iteration_bounds = array<i64: 2>, scalar_prefetch = 0 : i64, scratch_operands = 2 : i64, tpu.core_type = #tpu.core_type<tc>, window_params = [{pipeline_mode = #tpu.pipeline_mode<synchronous>, transform_indices = @transform_0, window_bounds = array<i64: 16, 32>}, {pipeline_mode = #tpu.pipeline_mode<synchronous>, transform_indices = @transform_1, window_bounds = array<i64: 2, 8>}, {pipeline_mode = #tpu.pipeline_mode<synchronous>, transform_indices = @transform_2, window_bounds = array<i64: 1, 32>}, {pipeline_mode = #tpu.pipeline_mode<synchronous>, transform_indices = @transform_3, window_bounds = array<i64: 1, 32>}, {transform_indices = @transform_4, window_bounds = array<i64: 1, 32, 96>}, {transform_indices = @transform_5, window_bounds = array<i64: 1, 1, 96>}, {transform_indices = @transform_6, window_bounds = array<i64: 1, 32, 32>}, {transform_indices = @transform_7, window_bounds = array<i64: 1, 1, 32>}, {transform_indices = @transform_8, window_bounds = array<i64: 1, 1, 32>}, {transform_indices = @transform_9, window_bounds = array<i64: 1, 1, 32>}, {transform_indices = @transform_10, window_bounds = array<i64: 1, 32, 64>}, {transform_indices = @transform_11, window_bounds = array<i64: 1, 1, 64>}, {transform_indices = @transform_12, window_bounds = array<i64: 1, 64, 32>}, {transform_indices = @transform_13, window_bounds = array<i64: 1, 1, 32>}, {transform_indices = @transform_14, window_bounds = array<i64: 1, 1, 32>}, {transform_indices = @transform_15, window_bounds = array<i64: 1, 1, 32>}, {pipeline_mode = #tpu.pipeline_mode<synchronous>, transform_indices = @transform_16, window_bounds = array<i64: 16, 32>}]} {
    %c0_i32 = arith.constant 0 : i32
    %0 = arith.cmpi eq, %arg0, %c0_i32 : i32
    %1 = arith.extui %0 : i1 to i32
    %c0_i32_0 = arith.constant 0 : i32
    %2 = arith.cmpi ne, %1, %c0_i32_0 : i32
    scf.if %2 {
      %c0_77 = arith.constant 0 : index
      %c0_78 = arith.constant 0 : index
      %170 = vector.load %arg1[%c0_77, %c0_78] : memref<16x32xf32, #tpu.memory_space<vmem>>, vector<16x32xf32>
      %c0_79 = arith.constant 0 : index
      %c0_80 = arith.constant 0 : index
      %171 = vector.load %arg3[%c0_79, %c0_80] : memref<1x32xf32, #tpu.memory_space<vmem>>, vector<1x32xf32>
      %c0_81 = arith.constant 0 : index
      %c0_82 = arith.constant 0 : index
      %172 = vector.load %arg4[%c0_81, %c0_82] : memref<1x32xf32, #tpu.memory_space<vmem>>, vector<1x32xf32>
      %cst_83 = arith.constant dense<0.000000e+00> : vector<16xf32>
      %173 = vector.multi_reduction <add>, %170, %cst_83 [1] : vector<16x32xf32> to vector<16xf32>
      %174 = vector.shape_cast %173 : vector<16xf32> to vector<16x1xf32>
      %cst_84 = arith.constant 3.200000e+01 : f32
      %175 = vector.broadcast %cst_84 : f32 to vector<16x1xf32>
      %176 = arith.divf %174, %175 : vector<16x1xf32>
      %177 = vector.broadcast %176 : vector<16x1xf32> to vector<16x32xf32>
      %178 = arith.subf %170, %177 : vector<16x32xf32>
      %179 = arith.mulf %178, %178 : vector<16x32xf32>
      %cst_85 = arith.constant dense<0.000000e+00> : vector<16xf32>
      %180 = vector.multi_reduction <add>, %179, %cst_85 [1] : vector<16x32xf32> to vector<16xf32>
      %181 = vector.shape_cast %180 : vector<16xf32> to vector<16x1xf32>
      %cst_86 = arith.constant 3.200000e+01 : f32
      %182 = vector.broadcast %cst_86 : f32 to vector<16x1xf32>
      %183 = arith.divf %181, %182 : vector<16x1xf32>
      %184 = vector.broadcast %176 : vector<16x1xf32> to vector<16x32xf32>
      %185 = arith.subf %170, %184 : vector<16x32xf32>
      %cst_87 = arith.constant 9.99999974E-6 : f32
      %186 = vector.broadcast %cst_87 : f32 to vector<16x1xf32>
      %187 = arith.addf %183, %186 : vector<16x1xf32>
      %188 = math.rsqrt %187 : vector<16x1xf32>
      %189 = vector.broadcast %188 : vector<16x1xf32> to vector<16x32xf32>
      %190 = arith.mulf %185, %189 : vector<16x32xf32>
      %191 = vector.broadcast %171 : vector<1x32xf32> to vector<16x32xf32>
      %192 = arith.mulf %190, %191 : vector<16x32xf32>
      %193 = vector.broadcast %172 : vector<1x32xf32> to vector<16x32xf32>
      %194 = arith.addf %192, %193 : vector<16x32xf32>
      %c0_88 = arith.constant 0 : index
      %c0_89 = arith.constant 0 : index
      %195 = vector.load %arg18[%c0_88, %c0_89] : memref<16x32xf32, #tpu.memory_space<vmem>>, vector<16x32xf32>
      tpu.vector_store %arg18[%c0_88, %c0_89], %194 {strides = array<i32>} : memref<16x32xf32, #tpu.memory_space<vmem>>, vector<16x32xf32>,
    } else {
    }
    %c0 = arith.constant 0 : index
    %c0_1 = arith.constant 0 : index
    %3 = vector.load %arg18[%c0, %c0_1] : memref<16x32xf32, #tpu.memory_space<vmem>>, vector<16x32xf32>
    %c0_2 = arith.constant 0 : index
    %c0_3 = arith.constant 0 : index
    %c0_4 = arith.constant 0 : index
    %4 = vector.load %arg5[%c0_2, %c0_3, %c0_4] : memref<1x32x96xbf16, #tpu.memory_space<vmem>>, vector<1x32x96xbf16>
    %5 = vector.shape_cast %4 : vector<1x32x96xbf16> to vector<32x96xbf16>
    %6 = arith.truncf %3 : vector<16x32xf32> to vector<16x32xbf16>
    %cst = arith.constant dense<0.000000e+00> : vector<16x96xf32>
    %7 = tpu.matmul %6, %5, %cst {dimension_numbers = #tpu.dot_dimension_numbers<[1], [0], [0], [1], [0, 0, 1, 1], [], []>} : vector<16x32xbf16>, vector<32x96xbf16>, vector<16x96xf32> -> vector<16x96xf32>
    %c0_5 = arith.constant 0 : index
    %c0_6 = arith.constant 0 : index
    %c0_7 = arith.constant 0 : index
    %8 = vector.load %arg6[%c0_5, %c0_6, %c0_7] : memref<1x1x96xf32, #tpu.memory_space<vmem>>, vector<1x1x96xf32>
    %9 = vector.shape_cast %8 : vector<1x1x96xf32> to vector<1x96xf32>
    %10 = vector.broadcast %9 : vector<1x96xf32> to vector<16x96xf32>
    %11 = arith.addf %7, %10 : vector<16x96xf32>
    %12 = vector.extract_strided_slice %11 {offsets = [0, 0], sizes = [16, 32], strides = [1, 1]} : vector<16x96xf32> to vector<16x32xf32>
    %cst_8 = arith.constant 0.353553385 : f32
    %13 = vector.broadcast %cst_8 : f32 to vector<16x32xf32>
    %14 = arith.mulf %12, %13 : vector<16x32xf32>
    %15 = vector.shape_cast %14 : vector<16x32xf32> to vector<16x4x8xf32>
    %16 = vector.extract_strided_slice %11 {offsets = [0, 32], sizes = [16, 32], strides = [1, 1]} : vector<16x96xf32> to vector<16x32xf32>
    %17 = vector.shape_cast %16 : vector<16x32xf32> to vector<16x4x8xf32>
    %18 = vector.extract_strided_slice %11 {offsets = [0, 64], sizes = [16, 32], strides = [1, 1]} : vector<16x96xf32> to vector<16x32xf32>
    %19 = vector.shape_cast %18 : vector<16x32xf32> to vector<16x4x8xf32>
    %c0_9 = arith.constant 0 : index
    %c0_10 = arith.constant 0 : index
    %c0_11 = arith.constant 0 : index
    %20 = vector.load %arg7[%c0_9, %c0_10, %c0_11] : memref<1x32x32xbf16, #tpu.memory_space<vmem>>, vector<1x32x32xbf16>
    %21 = vector.shape_cast %20 : vector<1x32x32xbf16> to vector<32x32xbf16>
    %22 = vector.shape_cast %21 : vector<32x32xbf16> to vector<4x8x32xbf16>
    %c0_12 = arith.constant 0 : index
    %c0_13 = arith.constant 0 : index
    %23 = vector.load %arg2[%c0_12, %c0_13] : memref<2x8xf32, #tpu.memory_space<vmem>>, vector<2x8xf32>
    %24 = vector.extract_strided_slice %15 {offsets = [0, 0, 0], sizes = [8, 4, 8], strides = [1, 1, 1]} : vector<16x4x8xf32> to vector<8x4x8xf32>
    %25 = arith.truncf %24 : vector<8x4x8xf32> to vector<8x4x8xbf16>
    %26 = vector.extract_strided_slice %17 {offsets = [0, 0, 0], sizes = [8, 4, 8], strides = [1, 1, 1]} : vector<16x4x8xf32> to vector<8x4x8xf32>
    %27 = arith.truncf %26 : vector<8x4x8xf32> to vector<8x4x8xbf16>
    %28 = vector.extract_strided_slice %19 {offsets = [0, 0, 0], sizes = [8, 4, 8], strides = [1, 1, 1]} : vector<16x4x8xf32> to vector<8x4x8xf32>
    %29 = arith.truncf %28 : vector<8x4x8xf32> to vector<8x4x8xbf16>
    %cst_14 = arith.constant dense<0.000000e+00> : vector<4x8x8xf32>
    %30 = tpu.matmul %25, %27, %cst_14 {dimension_numbers = #tpu.dot_dimension_numbers<[2], [2], [0], [0], [0, 1, 0, 0, 1, 0], [1], [1]>} : vector<8x4x8xbf16>, vector<8x4x8xbf16>, vector<4x8x8xf32> -> vector<4x8x8xf32>
    %31 = vector.extract_strided_slice %23 {offsets = [0, 0], sizes = [1, 8], strides = [1, 1]} : vector<2x8xf32> to vector<1x8xf32>
    %32 = vector.shape_cast %31 : vector<1x8xf32> to vector<1x1x8xf32>
    %33 = vector.broadcast %32 : vector<1x1x8xf32> to vector<4x8x8xf32>
    %34 = arith.addf %30, %33 : vector<4x8x8xf32>
    %cst_15 = arith.constant dense<0xFF800000> : vector<4x8xf32>
    %35 = vector.multi_reduction <maximumf>, %34, %cst_15 [2] : vector<4x8x8xf32> to vector<4x8xf32>
    %36 = vector.shape_cast %35 : vector<4x8xf32> to vector<4x8x1xf32>
    %37 = vector.broadcast %36 : vector<4x8x1xf32> to vector<4x8x8xf32>
    %38 = arith.subf %34, %37 : vector<4x8x8xf32>
    %39 = math.exp %38 : vector<4x8x8xf32>
    %cst_16 = arith.constant dense<0.000000e+00> : vector<4x8xf32>
    %40 = vector.multi_reduction <add>, %39, %cst_16 [2] : vector<4x8x8xf32> to vector<4x8xf32>
    %41 = vector.shape_cast %40 : vector<4x8xf32> to vector<4x8x1xf32>
    %42 = tpu.reciprocal %41 {approx = true} : vector<4x8x1xf32> -> vector<4x8x1xf32>
    %43 = vector.broadcast %42 : vector<4x8x1xf32> to vector<4x8x8xf32>
    %44 = arith.mulf %39, %43 : vector<4x8x8xf32>
    %45 = arith.truncf %44 : vector<4x8x8xf32> to vector<4x8x8xbf16>
    %cst_17 = arith.constant dense<0.000000e+00> : vector<4x8x8xf32>
    %46 = tpu.matmul %45, %29, %cst_17 {dimension_numbers = #tpu.dot_dimension_numbers<[2], [0], [1], [2], [0, 0, 0, 1, 1, 2], [0], [1]>} : vector<4x8x8xbf16>, vector<8x4x8xbf16>, vector<4x8x8xf32> -> vector<4x8x8xf32>
    %47 = arith.truncf %46 : vector<4x8x8xf32> to vector<4x8x8xbf16>
    %cst_18 = arith.constant dense<0.000000e+00> : vector<4x8x32xf32>
    %48 = tpu.matmul %47, %22, %cst_18 {dimension_numbers = #tpu.dot_dimension_numbers<[2], [1], [1], [2], [0, 0, 0, 1, 1, 2], [0], [0]>} : vector<4x8x8xbf16>, vector<4x8x32xbf16>, vector<4x8x32xf32> -> vector<4x8x32xf32>
    %cst_19 = arith.constant dense<0.000000e+00> : vector<8x32xf32>
    %49 = vector.multi_reduction <add>, %48, %cst_19 [0] : vector<4x8x32xf32> to vector<8x32xf32>
    %c0_20 = arith.constant 0 : index
    %c0_21 = arith.constant 0 : index
    %50 = vector.load %arg19[%c0_20, %c0_21] : memref<16x32xf32, #tpu.memory_space<vmem>>, vector<8x32xf32>
    tpu.vector_store %arg19[%c0_20, %c0_21], %49 {strides = array<i32>} : memref<16x32xf32, #tpu.memory_space<vmem>>, vector<8x32xf32>,
    %51 = vector.extract_strided_slice %15 {offsets = [8, 0, 0], sizes = [8, 4, 8], strides = [1, 1, 1]} : vector<16x4x8xf32> to vector<8x4x8xf32>
    %52 = arith.truncf %51 : vector<8x4x8xf32> to vector<8x4x8xbf16>
    %53 = vector.extract_strided_slice %17 {offsets = [8, 0, 0], sizes = [8, 4, 8], strides = [1, 1, 1]} : vector<16x4x8xf32> to vector<8x4x8xf32>
    %54 = arith.truncf %53 : vector<8x4x8xf32> to vector<8x4x8xbf16>
    %55 = vector.extract_strided_slice %19 {offsets = [8, 0, 0], sizes = [8, 4, 8], strides = [1, 1, 1]} : vector<16x4x8xf32> to vector<8x4x8xf32>
    %56 = arith.truncf %55 : vector<8x4x8xf32> to vector<8x4x8xbf16>
    %cst_22 = arith.constant dense<0.000000e+00> : vector<4x8x8xf32>
    %57 = tpu.matmul %52, %54, %cst_22 {dimension_numbers = #tpu.dot_dimension_numbers<[2], [2], [0], [0], [0, 1, 0, 0, 1, 0], [1], [1]>} : vector<8x4x8xbf16>, vector<8x4x8xbf16>, vector<4x8x8xf32> -> vector<4x8x8xf32>
    %58 = vector.extract_strided_slice %23 {offsets = [1, 0], sizes = [1, 8], strides = [1, 1]} : vector<2x8xf32> to vector<1x8xf32>
    %59 = vector.shape_cast %58 : vector<1x8xf32> to vector<1x1x8xf32>
    %60 = vector.broadcast %59 : vector<1x1x8xf32> to vector<4x8x8xf32>
    %61 = arith.addf %57, %60 : vector<4x8x8xf32>
    %cst_23 = arith.constant dense<0xFF800000> : vector<4x8xf32>
    %62 = vector.multi_reduction <maximumf>, %61, %cst_23 [2] : vector<4x8x8xf32> to vector<4x8xf32>
    %63 = vector.shape_cast %62 : vector<4x8xf32> to vector<4x8x1xf32>
    %64 = vector.broadcast %63 : vector<4x8x1xf32> to vector<4x8x8xf32>
    %65 = arith.subf %61, %64 : vector<4x8x8xf32>
    %66 = math.exp %65 : vector<4x8x8xf32>
    %cst_24 = arith.constant dense<0.000000e+00> : vector<4x8xf32>
    %67 = vector.multi_reduction <add>, %66, %cst_24 [2] : vector<4x8x8xf32> to vector<4x8xf32>
    %68 = vector.shape_cast %67 : vector<4x8xf32> to vector<4x8x1xf32>
    %69 = tpu.reciprocal %68 {approx = true} : vector<4x8x1xf32> -> vector<4x8x1xf32>
    %70 = vector.broadcast %69 : vector<4x8x1xf32> to vector<4x8x8xf32>
    %71 = arith.mulf %66, %70 : vector<4x8x8xf32>
    %72 = arith.truncf %71 : vector<4x8x8xf32> to vector<4x8x8xbf16>
    %cst_25 = arith.constant dense<0.000000e+00> : vector<4x8x8xf32>
    %73 = tpu.matmul %72, %56, %cst_25 {dimension_numbers = #tpu.dot_dimension_numbers<[2], [0], [1], [2], [0, 0, 0, 1, 1, 2], [0], [1]>} : vector<4x8x8xbf16>, vector<8x4x8xbf16>, vector<4x8x8xf32> -> vector<4x8x8xf32>
    %74 = arith.truncf %73 : vector<4x8x8xf32> to vector<4x8x8xbf16>
    %cst_26 = arith.constant dense<0.000000e+00> : vector<4x8x32xf32>
    %75 = tpu.matmul %74, %22, %cst_26 {dimension_numbers = #tpu.dot_dimension_numbers<[2], [1], [1], [2], [0, 0, 0, 1, 1, 2], [0], [0]>} : vector<4x8x8xbf16>, vector<4x8x32xbf16>, vector<4x8x32xf32> -> vector<4x8x32xf32>
    %cst_27 = arith.constant dense<0.000000e+00> : vector<8x32xf32>
    %76 = vector.multi_reduction <add>, %75, %cst_27 [0] : vector<4x8x32xf32> to vector<8x32xf32>
    %c8 = arith.constant 8 : index
    %c0_28 = arith.constant 0 : index
    %77 = vector.load %arg19[%c8, %c0_28] : memref<16x32xf32, #tpu.memory_space<vmem>>, vector<8x32xf32>
    tpu.vector_store %arg19[%c8, %c0_28], %76 {strides = array<i32>} : memref<16x32xf32, #tpu.memory_space<vmem>>, vector<8x32xf32>,
    %c0_29 = arith.constant 0 : index
    %c0_30 = arith.constant 0 : index
    %78 = vector.load %arg19[%c0_29, %c0_30] : memref<16x32xf32, #tpu.memory_space<vmem>>, vector<16x32xf32>
    %c0_31 = arith.constant 0 : index
    %c0_32 = arith.constant 0 : index
    %c0_33 = arith.constant 0 : index
    %79 = vector.load %arg8[%c0_31, %c0_32, %c0_33] : memref<1x1x32xf32, #tpu.memory_space<vmem>>, vector<1x1x32xf32>
    %80 = vector.shape_cast %79 : vector<1x1x32xf32> to vector<1x32xf32>
    %81 = vector.broadcast %80 : vector<1x32xf32> to vector<16x32xf32>
    %82 = arith.addf %78, %81 : vector<16x32xf32>
    %83 = arith.addf %82, %3 : vector<16x32xf32>
    %c0_34 = arith.constant 0 : index
    %c0_35 = arith.constant 0 : index
    %c0_36 = arith.constant 0 : index
    %84 = vector.load %arg9[%c0_34, %c0_35, %c0_36] : memref<1x1x32xf32, #tpu.memory_space<vmem>>, vector<1x1x32xf32>
    %85 = vector.shape_cast %84 : vector<1x1x32xf32> to vector<1x32xf32>
    %c0_37 = arith.constant 0 : index
    %c0_38 = arith.constant 0 : index
    %c0_39 = arith.constant 0 : index
    %86 = vector.load %arg10[%c0_37, %c0_38, %c0_39] : memref<1x1x32xf32, #tpu.memory_space<vmem>>, vector<1x1x32xf32>
    %87 = vector.shape_cast %86 : vector<1x1x32xf32> to vector<1x32xf32>
    %cst_40 = arith.constant dense<0.000000e+00> : vector<16xf32>
    %88 = vector.multi_reduction <add>, %83, %cst_40 [1] : vector<16x32xf32> to vector<16xf32>
    %89 = vector.shape_cast %88 : vector<16xf32> to vector<16x1xf32>
    %cst_41 = arith.constant 3.200000e+01 : f32
    %90 = vector.broadcast %cst_41 : f32 to vector<16x1xf32>
    %91 = arith.divf %89, %90 : vector<16x1xf32>
    %92 = vector.broadcast %91 : vector<16x1xf32> to vector<16x32xf32>
    %93 = arith.subf %83, %92 : vector<16x32xf32>
    %94 = arith.mulf %93, %93 : vector<16x32xf32>
    %cst_42 = arith.constant dense<0.000000e+00> : vector<16xf32>
    %95 = vector.multi_reduction <add>, %94, %cst_42 [1] : vector<16x32xf32> to vector<16xf32>
    %96 = vector.shape_cast %95 : vector<16xf32> to vector<16x1xf32>
    %cst_43 = arith.constant 3.200000e+01 : f32
    %97 = vector.broadcast %cst_43 : f32 to vector<16x1xf32>
    %98 = arith.divf %96, %97 : vector<16x1xf32>
    %99 = vector.broadcast %91 : vector<16x1xf32> to vector<16x32xf32>
    %100 = arith.subf %83, %99 : vector<16x32xf32>
    %cst_44 = arith.constant 9.99999974E-6 : f32
    %101 = vector.broadcast %cst_44 : f32 to vector<16x1xf32>
    %102 = arith.addf %98, %101 : vector<16x1xf32>
    %103 = math.rsqrt %102 : vector<16x1xf32>
    %104 = vector.broadcast %103 : vector<16x1xf32> to vector<16x32xf32>
    %105 = arith.mulf %100, %104 : vector<16x32xf32>
    %106 = vector.broadcast %85 : vector<1x32xf32> to vector<16x32xf32>
    %107 = arith.mulf %105, %106 : vector<16x32xf32>
    %108 = vector.broadcast %87 : vector<1x32xf32> to vector<16x32xf32>
    %109 = arith.addf %107, %108 : vector<16x32xf32>
    %c0_45 = arith.constant 0 : index
    %c0_46 = arith.constant 0 : index
    %c0_47 = arith.constant 0 : index
    %110 = vector.load %arg11[%c0_45, %c0_46, %c0_47] : memref<1x32x64xbf16, #tpu.memory_space<vmem>>, vector<1x32x64xbf16>
    %111 = vector.shape_cast %110 : vector<1x32x64xbf16> to vector<32x64xbf16>
    %112 = arith.truncf %109 : vector<16x32xf32> to vector<16x32xbf16>
    %cst_48 = arith.constant dense<0.000000e+00> : vector<16x64xf32>
    %113 = tpu.matmul %112, %111, %cst_48 {dimension_numbers = #tpu.dot_dimension_numbers<[1], [0], [0], [1], [0, 0, 1, 1], [], []>} : vector<16x32xbf16>, vector<32x64xbf16>, vector<16x64xf32> -> vector<16x64xf32>
    %c0_49 = arith.constant 0 : index
    %c0_50 = arith.constant 0 : index
    %c0_51 = arith.constant 0 : index
    %114 = vector.load %arg12[%c0_49, %c0_50, %c0_51] : memref<1x1x64xf32, #tpu.memory_space<vmem>>, vector<1x1x64xf32>
    %115 = vector.shape_cast %114 : vector<1x1x64xf32> to vector<1x64xf32>
    %116 = vector.broadcast %115 : vector<1x64xf32> to vector<16x64xf32>
    %117 = arith.addf %113, %116 : vector<16x64xf32>
    %118 = arith.mulf %117, %117 : vector<16x64xf32>
    %119 = arith.mulf %117, %118 : vector<16x64xf32>
    %cst_52 = arith.constant 4.471500e-02 : f32
    %120 = vector.broadcast %cst_52 : f32 to vector<16x64xf32>
    %121 = arith.mulf %120, %119 : vector<16x64xf32>
    %122 = arith.addf %117, %121 : vector<16x64xf32>
    %cst_53 = arith.constant 0.797884583 : f32
    %123 = vector.broadcast %cst_53 : f32 to vector<16x64xf32>
    %124 = arith.mulf %123, %122 : vector<16x64xf32>
    %125 = math.tanh %124 : vector<16x64xf32>
    %cst_54 = arith.constant 1.000000e+00 : f32
    %126 = vector.broadcast %cst_54 : f32 to vector<16x64xf32>
    %127 = arith.addf %126, %125 : vector<16x64xf32>
    %cst_55 = arith.constant 5.000000e-01 : f32
    %128 = vector.broadcast %cst_55 : f32 to vector<16x64xf32>
    %129 = arith.mulf %128, %127 : vector<16x64xf32>
    %130 = arith.mulf %117, %129 : vector<16x64xf32>
    %c0_56 = arith.constant 0 : index
    %c0_57 = arith.constant 0 : index
    %c0_58 = arith.constant 0 : index
    %131 = vector.load %arg13[%c0_56, %c0_57, %c0_58] : memref<1x64x32xbf16, #tpu.memory_space<vmem>>, vector<1x64x32xbf16>
    %132 = vector.shape_cast %131 : vector<1x64x32xbf16> to vector<64x32xbf16>
    %133 = arith.truncf %130 : vector<16x64xf32> to vector<16x64xbf16>
    %cst_59 = arith.constant dense<0.000000e+00> : vector<16x32xf32>
    %134 = tpu.matmul %133, %132, %cst_59 {dimension_numbers = #tpu.dot_dimension_numbers<[1], [0], [0], [1], [0, 0, 1, 1], [], []>} : vector<16x64xbf16>, vector<64x32xbf16>, vector<16x32xf32> -> vector<16x32xf32>
    %c0_60 = arith.constant 0 : index
    %c0_61 = arith.constant 0 : index
    %c0_62 = arith.constant 0 : index
    %135 = vector.load %arg14[%c0_60, %c0_61, %c0_62] : memref<1x1x32xf32, #tpu.memory_space<vmem>>, vector<1x1x32xf32>
    %136 = vector.shape_cast %135 : vector<1x1x32xf32> to vector<1x32xf32>
    %137 = vector.broadcast %136 : vector<1x32xf32> to vector<16x32xf32>
    %138 = arith.addf %134, %137 : vector<16x32xf32>
    %139 = arith.addf %138, %109 : vector<16x32xf32>
    %c0_63 = arith.constant 0 : index
    %c0_64 = arith.constant 0 : index
    %c0_65 = arith.constant 0 : index
    %140 = vector.load %arg15[%c0_63, %c0_64, %c0_65] : memref<1x1x32xf32, #tpu.memory_space<vmem>>, vector<1x1x32xf32>
    %141 = vector.shape_cast %140 : vector<1x1x32xf32> to vector<1x32xf32>
    %c0_66 = arith.constant 0 : index
    %c0_67 = arith.constant 0 : index
    %c0_68 = arith.constant 0 : index
    %142 = vector.load %arg16[%c0_66, %c0_67, %c0_68] : memref<1x1x32xf32, #tpu.memory_space<vmem>>, vector<1x1x32xf32>
    %143 = vector.shape_cast %142 : vector<1x1x32xf32> to vector<1x32xf32>
    %cst_69 = arith.constant dense<0.000000e+00> : vector<16xf32>
    %144 = vector.multi_reduction <add>, %139, %cst_69 [1] : vector<16x32xf32> to vector<16xf32>
    %145 = vector.shape_cast %144 : vector<16xf32> to vector<16x1xf32>
    %cst_70 = arith.constant 3.200000e+01 : f32
    %146 = vector.broadcast %cst_70 : f32 to vector<16x1xf32>
    %147 = arith.divf %145, %146 : vector<16x1xf32>
    %148 = vector.broadcast %147 : vector<16x1xf32> to vector<16x32xf32>
    %149 = arith.subf %139, %148 : vector<16x32xf32>
    %150 = arith.mulf %149, %149 : vector<16x32xf32>
    %cst_71 = arith.constant dense<0.000000e+00> : vector<16xf32>
    %151 = vector.multi_reduction <add>, %150, %cst_71 [1] : vector<16x32xf32> to vector<16xf32>
    %152 = vector.shape_cast %151 : vector<16xf32> to vector<16x1xf32>
    %cst_72 = arith.constant 3.200000e+01 : f32
    %153 = vector.broadcast %cst_72 : f32 to vector<16x1xf32>
    %154 = arith.divf %152, %153 : vector<16x1xf32>
    %155 = vector.broadcast %147 : vector<16x1xf32> to vector<16x32xf32>
    %156 = arith.subf %139, %155 : vector<16x32xf32>
    %cst_73 = arith.constant 9.99999974E-6 : f32
    %157 = vector.broadcast %cst_73 : f32 to vector<16x1xf32>
    %158 = arith.addf %154, %157 : vector<16x1xf32>
    %159 = math.rsqrt %158 : vector<16x1xf32>
    %160 = vector.broadcast %159 : vector<16x1xf32> to vector<16x32xf32>
    %161 = arith.mulf %156, %160 : vector<16x32xf32>
    %162 = vector.broadcast %141 : vector<1x32xf32> to vector<16x32xf32>
    %163 = arith.mulf %161, %162 : vector<16x32xf32>
    %164 = vector.broadcast %143 : vector<1x32xf32> to vector<16x32xf32>
    %165 = arith.addf %163, %164 : vector<16x32xf32>
    %c0_74 = arith.constant 0 : index
    %c0_75 = arith.constant 0 : index
    %166 = vector.load %arg18[%c0_74, %c0_75] : memref<16x32xf32, #tpu.memory_space<vmem>>, vector<16x32xf32>
    tpu.vector_store %arg18[%c0_74, %c0_75], %165 {strides = array<i32>} : memref<16x32xf32, #tpu.memory_space<vmem>>, vector<16x32xf32>,
    %c1_i32 = arith.constant 1 : i32
    %167 = arith.cmpi eq, %arg0, %c1_i32 : i32
    %168 = arith.extui %167 : i1 to i32
    %c0_i32_76 = arith.constant 0 : i32
    %169 = arith.cmpi ne, %168, %c0_i32_76 : i32
    scf.if %169 {
      %170 = arith.truncf %165 : vector<16x32xf32> to vector<16x32xbf16>
      %c0_77 = arith.constant 0 : index
      %c0_78 = arith.constant 0 : index
      %171 = vector.load %arg17[%c0_77, %c0_78] : memref<16x32xbf16, #tpu.memory_space<vmem>>, vector<16x32xbf16>
      tpu.vector_store %arg17[%c0_77, %c0_78], %170 {strides = array<i32>} : memref<16x32xbf16, #tpu.memory_space<vmem>>, vector<16x32xbf16>,
    } else {
    }
    return
  }
  func.func @transform_0(%arg0: i32) -> (i32, i32) {
    %c0_i32 = arith.constant 0 : i32
    %c0_i32_0 = arith.constant 0 : i32
    %c0_i32_1 = arith.constant 0 : i32
    return %c0_i32, %c0_i32_0 : i32, i32
  }
  func.func @transform_1(%arg0: i32) -> (i32, i32) {
    %c0_i32 = arith.constant 0 : i32
    %c0_i32_0 = arith.constant 0 : i32
    %c0_i32_1 = arith.constant 0 : i32
    return %c0_i32, %c0_i32_0 : i32, i32
  }
  func.func @transform_2(%arg0: i32) -> (i32, i32) {
    %c0_i32 = arith.constant 0 : i32
    %c0_i32_0 = arith.constant 0 : i32
    %c0_i32_1 = arith.constant 0 : i32
    return %c0_i32, %c0_i32_0 : i32, i32
  }
  func.func @transform_3(%arg0: i32) -> (i32, i32) {
    %c0_i32 = arith.constant 0 : i32
    %c0_i32_0 = arith.constant 0 : i32
    %c0_i32_1 = arith.constant 0 : i32
    return %c0_i32, %c0_i32_0 : i32, i32
  }
  func.func @transform_4(%arg0: i32) -> (i32, i32, i32) {
    %c0_i32 = arith.constant 0 : i32
    %c0_i32_0 = arith.constant 0 : i32
    %c0_i32_1 = arith.constant 0 : i32
    return %arg0, %c0_i32, %c0_i32_0 : i32, i32, i32
  }
  func.func @transform_5(%arg0: i32) -> (i32, i32, i32) {
    %c0_i32 = arith.constant 0 : i32
    %c0_i32_0 = arith.constant 0 : i32
    %c0_i32_1 = arith.constant 0 : i32
    return %arg0, %c0_i32, %c0_i32_0 : i32, i32, i32
  }
  func.func @transform_6(%arg0: i32) -> (i32, i32, i32) {
    %c0_i32 = arith.constant 0 : i32
    %c0_i32_0 = arith.constant 0 : i32
    %c0_i32_1 = arith.constant 0 : i32
    return %arg0, %c0_i32, %c0_i32_0 : i32, i32, i32
  }
  func.func @transform_7(%arg0: i32) -> (i32, i32, i32) {
    %c0_i32 = arith.constant 0 : i32
    %c0_i32_0 = arith.constant 0 : i32
    %c0_i32_1 = arith.constant 0 : i32
    return %arg0, %c0_i32, %c0_i32_0 : i32, i32, i32
  }
  func.func @transform_8(%arg0: i32) -> (i32, i32, i32) {
    %c0_i32 = arith.constant 0 : i32
    %c0_i32_0 = arith.constant 0 : i32
    %c0_i32_1 = arith.constant 0 : i32
    return %arg0, %c0_i32, %c0_i32_0 : i32, i32, i32
  }
  func.func @transform_9(%arg0: i32) -> (i32, i32, i32) {
    %c0_i32 = arith.constant 0 : i32
    %c0_i32_0 = arith.constant 0 : i32
    %c0_i32_1 = arith.constant 0 : i32
    return %arg0, %c0_i32, %c0_i32_0 : i32, i32, i32
  }
  func.func @transform_10(%arg0: i32) -> (i32, i32, i32) {
    %c0_i32 = arith.constant 0 : i32
    %c0_i32_0 = arith.constant 0 : i32
    %c0_i32_1 = arith.constant 0 : i32
    return %arg0, %c0_i32, %c0_i32_0 : i32, i32, i32
  }
  func.func @transform_11(%arg0: i32) -> (i32, i32, i32) {
    %c0_i32 = arith.constant 0 : i32
    %c0_i32_0 = arith.constant 0 : i32
    %c0_i32_1 = arith.constant 0 : i32
    return %arg0, %c0_i32, %c0_i32_0 : i32, i32, i32
  }
  func.func @transform_12(%arg0: i32) -> (i32, i32, i32) {
    %c0_i32 = arith.constant 0 : i32
    %c0_i32_0 = arith.constant 0 : i32
    %c0_i32_1 = arith.constant 0 : i32
    return %arg0, %c0_i32, %c0_i32_0 : i32, i32, i32
  }
  func.func @transform_13(%arg0: i32) -> (i32, i32, i32) {
    %c0_i32 = arith.constant 0 : i32
    %c0_i32_0 = arith.constant 0 : i32
    %c0_i32_1 = arith.constant 0 : i32
    return %arg0, %c0_i32, %c0_i32_0 : i32, i32, i32
  }
  func.func @transform_14(%arg0: i32) -> (i32, i32, i32) {
    %c0_i32 = arith.constant 0 : i32
    %c0_i32_0 = arith.constant 0 : i32
    %c0_i32_1 = arith.constant 0 : i32
    return %arg0, %c0_i32, %c0_i32_0 : i32, i32, i32
  }
  func.func @transform_15(%arg0: i32) -> (i32, i32, i32) {
    %c0_i32 = arith.constant 0 : i32
    %c0_i32_0 = arith.constant 0 : i32
    %c0_i32_1 = arith.constant 0 : i32
    return %arg0, %c0_i32, %c0_i32_0 : i32, i32, i32
  }
  func.func @transform_16(%arg0: i32) -> (i32, i32) {
    %c0_i32 = arith.constant 0 : i32
    %c0_i32_0 = arith.constant 0 : i32
    %c0_i32_1 = arith.constant 0 : i32
    return %c0_i32, %c0_i32_0 : i32, i32
  }
}

module attributes {stable_mosaic.version = 11 : i64} {
  func.func @_head_kernel(%arg0: i32, %arg1: memref<2x32xbf16, #tpu.memory_space<vmem>>, %arg2: memref<2x32x16xbf16, #tpu.memory_space<vmem>>, %arg3: memref<2x1x16xf32, #tpu.memory_space<vmem>>, %arg4: memref<2x16x32xbf16, #tpu.memory_space<vmem>>, %arg5: memref<2x1x32xf32, #tpu.memory_space<vmem>>, %arg6: memref<3x32x32xbf16, #tpu.memory_space<vmem>>, %arg7: memref<3x32x32xbf16, #tpu.memory_space<vmem>>, %arg8: memref<3x1x32xf32, #tpu.memory_space<vmem>>, %arg9: memref<32x3xbf16, #tpu.memory_space<vmem>>, %arg10: memref<1x3xf32, #tpu.memory_space<vmem>>, %arg11: memref<2x3xf32, #tpu.memory_space<vmem>>) attributes {dimension_semantics = [#tpu.dimension_semantics<arbitrary>], iteration_bounds = array<i64: 1>, scalar_prefetch = 0 : i64, scratch_operands = 0 : i64, tpu.core_type = #tpu.core_type<tc>, window_params = [{pipeline_mode = #tpu.pipeline_mode<synchronous>, transform_indices = @transform_0, window_bounds = array<i64: 2, 32>}, {pipeline_mode = #tpu.pipeline_mode<synchronous>, transform_indices = @transform_1, window_bounds = array<i64: 2, 32, 16>}, {pipeline_mode = #tpu.pipeline_mode<synchronous>, transform_indices = @transform_2, window_bounds = array<i64: 2, 1, 16>}, {pipeline_mode = #tpu.pipeline_mode<synchronous>, transform_indices = @transform_3, window_bounds = array<i64: 2, 16, 32>}, {pipeline_mode = #tpu.pipeline_mode<synchronous>, transform_indices = @transform_4, window_bounds = array<i64: 2, 1, 32>}, {pipeline_mode = #tpu.pipeline_mode<synchronous>, transform_indices = @transform_5, window_bounds = array<i64: 3, 32, 32>}, {pipeline_mode = #tpu.pipeline_mode<synchronous>, transform_indices = @transform_6, window_bounds = array<i64: 3, 32, 32>}, {pipeline_mode = #tpu.pipeline_mode<synchronous>, transform_indices = @transform_7, window_bounds = array<i64: 3, 1, 32>}, {pipeline_mode = #tpu.pipeline_mode<synchronous>, transform_indices = @transform_8, window_bounds = array<i64: 32, 3>}, {pipeline_mode = #tpu.pipeline_mode<synchronous>, transform_indices = @transform_9, window_bounds = array<i64: 1, 3>}, {pipeline_mode = #tpu.pipeline_mode<synchronous>, transform_indices = @transform_10, window_bounds = array<i64: 2, 3>}]} {
    %c0 = arith.constant 0 : index
    %c0_0 = arith.constant 0 : index
    %0 = vector.load %arg1[%c0, %c0_0] : memref<2x32xbf16, #tpu.memory_space<vmem>>, vector<2x32xbf16>
    %1 = arith.extf %0 : vector<2x32xbf16> to vector<2x32xf32>
    %2 = arith.truncf %1 : vector<2x32xf32> to vector<2x32xbf16>
    %c0_1 = arith.constant 0 : index
    %c0_2 = arith.constant 0 : index
    %c0_3 = arith.constant 0 : index
    %3 = vector.load %arg2[%c0_1, %c0_2, %c0_3] : memref<2x32x16xbf16, #tpu.memory_space<vmem>>, vector<1x32x16xbf16>
    %4 = vector.shape_cast %3 : vector<1x32x16xbf16> to vector<32x16xbf16>
    %cst = arith.constant dense<0.000000e+00> : vector<2x16xf32>
    %5 = tpu.matmul %2, %4, %cst {dimension_numbers = #tpu.dot_dimension_numbers<[1], [0], [0], [1], [0, 0, 1, 1], [], []>} : vector<2x32xbf16>, vector<32x16xbf16>, vector<2x16xf32> -> vector<2x16xf32>
    %c0_4 = arith.constant 0 : index
    %c0_5 = arith.constant 0 : index
    %c0_6 = arith.constant 0 : index
    %6 = vector.load %arg3[%c0_4, %c0_5, %c0_6] : memref<2x1x16xf32, #tpu.memory_space<vmem>>, vector<1x1x16xf32>
    %7 = vector.shape_cast %6 : vector<1x1x16xf32> to vector<1x16xf32>
    %8 = vector.broadcast %7 : vector<1x16xf32> to vector<2x16xf32>
    %9 = arith.addf %5, %8 : vector<2x16xf32>
    %10 = arith.mulf %9, %9 : vector<2x16xf32>
    %11 = arith.mulf %9, %10 : vector<2x16xf32>
    %cst_7 = arith.constant 4.471500e-02 : f32
    %12 = vector.broadcast %cst_7 : f32 to vector<2x16xf32>
    %13 = arith.mulf %12, %11 : vector<2x16xf32>
    %14 = arith.addf %9, %13 : vector<2x16xf32>
    %cst_8 = arith.constant 0.797884583 : f32
    %15 = vector.broadcast %cst_8 : f32 to vector<2x16xf32>
    %16 = arith.mulf %15, %14 : vector<2x16xf32>
    %17 = math.tanh %16 : vector<2x16xf32>
    %cst_9 = arith.constant 1.000000e+00 : f32
    %18 = vector.broadcast %cst_9 : f32 to vector<2x16xf32>
    %19 = arith.addf %18, %17 : vector<2x16xf32>
    %cst_10 = arith.constant 5.000000e-01 : f32
    %20 = vector.broadcast %cst_10 : f32 to vector<2x16xf32>
    %21 = arith.mulf %20, %19 : vector<2x16xf32>
    %22 = arith.mulf %9, %21 : vector<2x16xf32>
    %23 = arith.truncf %22 : vector<2x16xf32> to vector<2x16xbf16>
    %c0_11 = arith.constant 0 : index
    %c0_12 = arith.constant 0 : index
    %c0_13 = arith.constant 0 : index
    %24 = vector.load %arg4[%c0_11, %c0_12, %c0_13] : memref<2x16x32xbf16, #tpu.memory_space<vmem>>, vector<1x16x32xbf16>
    %25 = vector.shape_cast %24 : vector<1x16x32xbf16> to vector<16x32xbf16>
    %cst_14 = arith.constant dense<0.000000e+00> : vector<2x32xf32>
    %26 = tpu.matmul %23, %25, %cst_14 {dimension_numbers = #tpu.dot_dimension_numbers<[1], [0], [0], [1], [0, 0, 1, 1], [], []>} : vector<2x16xbf16>, vector<16x32xbf16>, vector<2x32xf32> -> vector<2x32xf32>
    %c0_15 = arith.constant 0 : index
    %c0_16 = arith.constant 0 : index
    %c0_17 = arith.constant 0 : index
    %27 = vector.load %arg5[%c0_15, %c0_16, %c0_17] : memref<2x1x32xf32, #tpu.memory_space<vmem>>, vector<1x1x32xf32>
    %28 = vector.shape_cast %27 : vector<1x1x32xf32> to vector<1x32xf32>
    %29 = vector.broadcast %28 : vector<1x32xf32> to vector<2x32xf32>
    %30 = arith.addf %26, %29 : vector<2x32xf32>
    %31 = arith.addf %1, %30 : vector<2x32xf32>
    %c1 = arith.constant 1 : index
    %c0_18 = arith.constant 0 : index
    %c0_19 = arith.constant 0 : index
    %32 = vector.load %arg2[%c1, %c0_18, %c0_19] : memref<2x32x16xbf16, #tpu.memory_space<vmem>>, vector<1x32x16xbf16>
    %33 = vector.shape_cast %32 : vector<1x32x16xbf16> to vector<32x16xbf16>
    %cst_20 = arith.constant dense<0.000000e+00> : vector<2x16xf32>
    %34 = tpu.matmul %2, %33, %cst_20 {dimension_numbers = #tpu.dot_dimension_numbers<[1], [0], [0], [1], [0, 0, 1, 1], [], []>} : vector<2x32xbf16>, vector<32x16xbf16>, vector<2x16xf32> -> vector<2x16xf32>
    %c1_21 = arith.constant 1 : index
    %c0_22 = arith.constant 0 : index
    %c0_23 = arith.constant 0 : index
    %35 = vector.load %arg3[%c1_21, %c0_22, %c0_23] : memref<2x1x16xf32, #tpu.memory_space<vmem>>, vector<1x1x16xf32>
    %36 = vector.shape_cast %35 : vector<1x1x16xf32> to vector<1x16xf32>
    %37 = vector.broadcast %36 : vector<1x16xf32> to vector<2x16xf32>
    %38 = arith.addf %34, %37 : vector<2x16xf32>
    %39 = arith.mulf %38, %38 : vector<2x16xf32>
    %40 = arith.mulf %38, %39 : vector<2x16xf32>
    %cst_24 = arith.constant 4.471500e-02 : f32
    %41 = vector.broadcast %cst_24 : f32 to vector<2x16xf32>
    %42 = arith.mulf %41, %40 : vector<2x16xf32>
    %43 = arith.addf %38, %42 : vector<2x16xf32>
    %cst_25 = arith.constant 0.797884583 : f32
    %44 = vector.broadcast %cst_25 : f32 to vector<2x16xf32>
    %45 = arith.mulf %44, %43 : vector<2x16xf32>
    %46 = math.tanh %45 : vector<2x16xf32>
    %cst_26 = arith.constant 1.000000e+00 : f32
    %47 = vector.broadcast %cst_26 : f32 to vector<2x16xf32>
    %48 = arith.addf %47, %46 : vector<2x16xf32>
    %cst_27 = arith.constant 5.000000e-01 : f32
    %49 = vector.broadcast %cst_27 : f32 to vector<2x16xf32>
    %50 = arith.mulf %49, %48 : vector<2x16xf32>
    %51 = arith.mulf %38, %50 : vector<2x16xf32>
    %52 = arith.truncf %51 : vector<2x16xf32> to vector<2x16xbf16>
    %c1_28 = arith.constant 1 : index
    %c0_29 = arith.constant 0 : index
    %c0_30 = arith.constant 0 : index
    %53 = vector.load %arg4[%c1_28, %c0_29, %c0_30] : memref<2x16x32xbf16, #tpu.memory_space<vmem>>, vector<1x16x32xbf16>
    %54 = vector.shape_cast %53 : vector<1x16x32xbf16> to vector<16x32xbf16>
    %cst_31 = arith.constant dense<0.000000e+00> : vector<2x32xf32>
    %55 = tpu.matmul %52, %54, %cst_31 {dimension_numbers = #tpu.dot_dimension_numbers<[1], [0], [0], [1], [0, 0, 1, 1], [], []>} : vector<2x16xbf16>, vector<16x32xbf16>, vector<2x32xf32> -> vector<2x32xf32>
    %c1_32 = arith.constant 1 : index
    %c0_33 = arith.constant 0 : index
    %c0_34 = arith.constant 0 : index
    %56 = vector.load %arg5[%c1_32, %c0_33, %c0_34] : memref<2x1x32xf32, #tpu.memory_space<vmem>>, vector<1x1x32xf32>
    %57 = vector.shape_cast %56 : vector<1x1x32xf32> to vector<1x32xf32>
    %58 = vector.broadcast %57 : vector<1x32xf32> to vector<2x32xf32>
    %59 = arith.addf %55, %58 : vector<2x32xf32>
    %60 = arith.addf %1, %59 : vector<2x32xf32>
    %61 = arith.truncf %1 : vector<2x32xf32> to vector<2x32xbf16>
    %c0_35 = arith.constant 0 : index
    %c0_36 = arith.constant 0 : index
    %c0_37 = arith.constant 0 : index
    %62 = vector.load %arg6[%c0_35, %c0_36, %c0_37] : memref<3x32x32xbf16, #tpu.memory_space<vmem>>, vector<1x32x32xbf16>
    %63 = vector.shape_cast %62 : vector<1x32x32xbf16> to vector<32x32xbf16>
    %cst_38 = arith.constant dense<0.000000e+00> : vector<2x32xf32>
    %64 = tpu.matmul %61, %63, %cst_38 {dimension_numbers = #tpu.dot_dimension_numbers<[1], [0], [0], [1], [0, 0, 1, 1], [], []>} : vector<2x32xbf16>, vector<32x32xbf16>, vector<2x32xf32> -> vector<2x32xf32>
    %65 = arith.truncf %31 : vector<2x32xf32> to vector<2x32xbf16>
    %c0_39 = arith.constant 0 : index
    %c0_40 = arith.constant 0 : index
    %c0_41 = arith.constant 0 : index
    %66 = vector.load %arg7[%c0_39, %c0_40, %c0_41] : memref<3x32x32xbf16, #tpu.memory_space<vmem>>, vector<1x32x32xbf16>
    %67 = vector.shape_cast %66 : vector<1x32x32xbf16> to vector<32x32xbf16>
    %cst_42 = arith.constant dense<0.000000e+00> : vector<2x32xf32>
    %68 = tpu.matmul %65, %67, %cst_42 {dimension_numbers = #tpu.dot_dimension_numbers<[1], [0], [0], [1], [0, 0, 1, 1], [], []>} : vector<2x32xbf16>, vector<32x32xbf16>, vector<2x32xf32> -> vector<2x32xf32>
    %69 = arith.addf %64, %68 : vector<2x32xf32>
    %c0_43 = arith.constant 0 : index
    %c0_44 = arith.constant 0 : index
    %c0_45 = arith.constant 0 : index
    %70 = vector.load %arg8[%c0_43, %c0_44, %c0_45] : memref<3x1x32xf32, #tpu.memory_space<vmem>>, vector<1x1x32xf32>
    %71 = vector.shape_cast %70 : vector<1x1x32xf32> to vector<1x32xf32>
    %72 = vector.broadcast %71 : vector<1x32xf32> to vector<2x32xf32>
    %73 = arith.addf %69, %72 : vector<2x32xf32>
    %74 = arith.truncf %1 : vector<2x32xf32> to vector<2x32xbf16>
    %c1_46 = arith.constant 1 : index
    %c0_47 = arith.constant 0 : index
    %c0_48 = arith.constant 0 : index
    %75 = vector.load %arg6[%c1_46, %c0_47, %c0_48] : memref<3x32x32xbf16, #tpu.memory_space<vmem>>, vector<1x32x32xbf16>
    %76 = vector.shape_cast %75 : vector<1x32x32xbf16> to vector<32x32xbf16>
    %cst_49 = arith.constant dense<0.000000e+00> : vector<2x32xf32>
    %77 = tpu.matmul %74, %76, %cst_49 {dimension_numbers = #tpu.dot_dimension_numbers<[1], [0], [0], [1], [0, 0, 1, 1], [], []>} : vector<2x32xbf16>, vector<32x32xbf16>, vector<2x32xf32> -> vector<2x32xf32>
    %78 = arith.truncf %60 : vector<2x32xf32> to vector<2x32xbf16>
    %c1_50 = arith.constant 1 : index
    %c0_51 = arith.constant 0 : index
    %c0_52 = arith.constant 0 : index
    %79 = vector.load %arg7[%c1_50, %c0_51, %c0_52] : memref<3x32x32xbf16, #tpu.memory_space<vmem>>, vector<1x32x32xbf16>
    %80 = vector.shape_cast %79 : vector<1x32x32xbf16> to vector<32x32xbf16>
    %cst_53 = arith.constant dense<0.000000e+00> : vector<2x32xf32>
    %81 = tpu.matmul %78, %80, %cst_53 {dimension_numbers = #tpu.dot_dimension_numbers<[1], [0], [0], [1], [0, 0, 1, 1], [], []>} : vector<2x32xbf16>, vector<32x32xbf16>, vector<2x32xf32> -> vector<2x32xf32>
    %82 = arith.addf %77, %81 : vector<2x32xf32>
    %c1_54 = arith.constant 1 : index
    %c0_55 = arith.constant 0 : index
    %c0_56 = arith.constant 0 : index
    %83 = vector.load %arg8[%c1_54, %c0_55, %c0_56] : memref<3x1x32xf32, #tpu.memory_space<vmem>>, vector<1x1x32xf32>
    %84 = vector.shape_cast %83 : vector<1x1x32xf32> to vector<1x32xf32>
    %85 = vector.broadcast %84 : vector<1x32xf32> to vector<2x32xf32>
    %86 = arith.addf %82, %85 : vector<2x32xf32>
    %87 = arith.truncf %73 : vector<2x32xf32> to vector<2x32xbf16>
    %c2 = arith.constant 2 : index
    %c0_57 = arith.constant 0 : index
    %c0_58 = arith.constant 0 : index
    %88 = vector.load %arg6[%c2, %c0_57, %c0_58] : memref<3x32x32xbf16, #tpu.memory_space<vmem>>, vector<1x32x32xbf16>
    %89 = vector.shape_cast %88 : vector<1x32x32xbf16> to vector<32x32xbf16>
    %cst_59 = arith.constant dense<0.000000e+00> : vector<2x32xf32>
    %90 = tpu.matmul %87, %89, %cst_59 {dimension_numbers = #tpu.dot_dimension_numbers<[1], [0], [0], [1], [0, 0, 1, 1], [], []>} : vector<2x32xbf16>, vector<32x32xbf16>, vector<2x32xf32> -> vector<2x32xf32>
    %91 = arith.truncf %86 : vector<2x32xf32> to vector<2x32xbf16>
    %c2_60 = arith.constant 2 : index
    %c0_61 = arith.constant 0 : index
    %c0_62 = arith.constant 0 : index
    %92 = vector.load %arg7[%c2_60, %c0_61, %c0_62] : memref<3x32x32xbf16, #tpu.memory_space<vmem>>, vector<1x32x32xbf16>
    %93 = vector.shape_cast %92 : vector<1x32x32xbf16> to vector<32x32xbf16>
    %cst_63 = arith.constant dense<0.000000e+00> : vector<2x32xf32>
    %94 = tpu.matmul %91, %93, %cst_63 {dimension_numbers = #tpu.dot_dimension_numbers<[1], [0], [0], [1], [0, 0, 1, 1], [], []>} : vector<2x32xbf16>, vector<32x32xbf16>, vector<2x32xf32> -> vector<2x32xf32>
    %95 = arith.addf %90, %94 : vector<2x32xf32>
    %c2_64 = arith.constant 2 : index
    %c0_65 = arith.constant 0 : index
    %c0_66 = arith.constant 0 : index
    %96 = vector.load %arg8[%c2_64, %c0_65, %c0_66] : memref<3x1x32xf32, #tpu.memory_space<vmem>>, vector<1x1x32xf32>
    %97 = vector.shape_cast %96 : vector<1x1x32xf32> to vector<1x32xf32>
    %98 = vector.broadcast %97 : vector<1x32xf32> to vector<2x32xf32>
    %99 = arith.addf %95, %98 : vector<2x32xf32>
    %100 = arith.truncf %99 : vector<2x32xf32> to vector<2x32xbf16>
    %c0_67 = arith.constant 0 : index
    %c0_68 = arith.constant 0 : index
    %101 = vector.load %arg9[%c0_67, %c0_68] : memref<32x3xbf16, #tpu.memory_space<vmem>>, vector<32x3xbf16>
    %cst_69 = arith.constant dense<0.000000e+00> : vector<2x3xf32>
    %102 = tpu.matmul %100, %101, %cst_69 {dimension_numbers = #tpu.dot_dimension_numbers<[1], [0], [0], [1], [0, 0, 1, 1], [], []>} : vector<2x32xbf16>, vector<32x3xbf16>, vector<2x3xf32> -> vector<2x3xf32>
    %c0_70 = arith.constant 0 : index
    %c0_71 = arith.constant 0 : index
    %103 = vector.load %arg10[%c0_70, %c0_71] : memref<1x3xf32, #tpu.memory_space<vmem>>, vector<1x3xf32>
    %104 = vector.broadcast %103 : vector<1x3xf32> to vector<2x3xf32>
    %105 = arith.addf %102, %104 : vector<2x3xf32>
    %c0_72 = arith.constant 0 : index
    %c0_73 = arith.constant 0 : index
    %106 = vector.load %arg11[%c0_72, %c0_73] : memref<2x3xf32, #tpu.memory_space<vmem>>, vector<2x3xf32>
    tpu.vector_store %arg11[%c0_72, %c0_73], %105 {strides = array<i32>} : memref<2x3xf32, #tpu.memory_space<vmem>>, vector<2x3xf32>,
    return
  }
  func.func @transform_0(%arg0: i32) -> (i32, i32) {
    %c0_i32 = arith.constant 0 : i32
    %c0_i32_0 = arith.constant 0 : i32
    %c0_i32_1 = arith.constant 0 : i32
    return %c0_i32, %c0_i32_0 : i32, i32
  }
  func.func @transform_1(%arg0: i32) -> (i32, i32, i32) {
    %c0_i32 = arith.constant 0 : i32
    %c0_i32_0 = arith.constant 0 : i32
    %c0_i32_1 = arith.constant 0 : i32
    %c0_i32_2 = arith.constant 0 : i32
    return %c0_i32, %c0_i32_0, %c0_i32_1 : i32, i32, i32
  }
  func.func @transform_2(%arg0: i32) -> (i32, i32, i32) {
    %c0_i32 = arith.constant 0 : i32
    %c0_i32_0 = arith.constant 0 : i32
    %c0_i32_1 = arith.constant 0 : i32
    %c0_i32_2 = arith.constant 0 : i32
    return %c0_i32, %c0_i32_0, %c0_i32_1 : i32, i32, i32
  }
  func.func @transform_3(%arg0: i32) -> (i32, i32, i32) {
    %c0_i32 = arith.constant 0 : i32
    %c0_i32_0 = arith.constant 0 : i32
    %c0_i32_1 = arith.constant 0 : i32
    %c0_i32_2 = arith.constant 0 : i32
    return %c0_i32, %c0_i32_0, %c0_i32_1 : i32, i32, i32
  }
  func.func @transform_4(%arg0: i32) -> (i32, i32, i32) {
    %c0_i32 = arith.constant 0 : i32
    %c0_i32_0 = arith.constant 0 : i32
    %c0_i32_1 = arith.constant 0 : i32
    %c0_i32_2 = arith.constant 0 : i32
    return %c0_i32, %c0_i32_0, %c0_i32_1 : i32, i32, i32
  }
  func.func @transform_5(%arg0: i32) -> (i32, i32, i32) {
    %c0_i32 = arith.constant 0 : i32
    %c0_i32_0 = arith.constant 0 : i32
    %c0_i32_1 = arith.constant 0 : i32
    %c0_i32_2 = arith.constant 0 : i32
    return %c0_i32, %c0_i32_0, %c0_i32_1 : i32, i32, i32
  }
  func.func @transform_6(%arg0: i32) -> (i32, i32, i32) {
    %c0_i32 = arith.constant 0 : i32
    %c0_i32_0 = arith.constant 0 : i32
    %c0_i32_1 = arith.constant 0 : i32
    %c0_i32_2 = arith.constant 0 : i32
    return %c0_i32, %c0_i32_0, %c0_i32_1 : i32, i32, i32
  }
  func.func @transform_7(%arg0: i32) -> (i32, i32, i32) {
    %c0_i32 = arith.constant 0 : i32
    %c0_i32_0 = arith.constant 0 : i32
    %c0_i32_1 = arith.constant 0 : i32
    %c0_i32_2 = arith.constant 0 : i32
    return %c0_i32, %c0_i32_0, %c0_i32_1 : i32, i32, i32
  }
  func.func @transform_8(%arg0: i32) -> (i32, i32) {
    %c0_i32 = arith.constant 0 : i32
    %c0_i32_0 = arith.constant 0 : i32
    %c0_i32_1 = arith.constant 0 : i32
    return %c0_i32, %c0_i32_0 : i32, i32
  }
  func.func @transform_9(%arg0: i32) -> (i32, i32) {
    %c0_i32 = arith.constant 0 : i32
    %c0_i32_0 = arith.constant 0 : i32
    %c0_i32_1 = arith.constant 0 : i32
    return %c0_i32, %c0_i32_0 : i32, i32
  }
  func.func @transform_10(%arg0: i32) -> (i32, i32) {
    %c0_i32 = arith.constant 0 : i32
    %c0_i32_0 = arith.constant 0 : i32
    %c0_i32_1 = arith.constant 0 : i32
    return %c0_i32, %c0_i32_0 : i32, i32
  }
}

</mosaic_0001>

<llo_original>
// kernel: kadapter_forward.3
$region0: #{kadapter_forward.3}
  #allocation0 [shape = 'u32[]', space=smem, size = 0x4, offset = 0x4, fixed_abs, tag = 'smem constant byte address 0x4 - core index']
  #allocation1 [shape = 'u32[144,128]{1,0:T(1,128)}', space=vmem, size = 0x12000, scoped, tag = 'internal scratch']
  %s0 = inlined_call_operand.vmem [shape: bf16[2,32], index: 0, kind: input, shape index: {}]
  %s1 = inlined_call_operand.vmem [shape: bf16[2,32,16], index: 1, kind: input, shape index: {}]
  %s2 = inlined_call_operand.vmem [shape: f32[2,1,16], index: 2, kind: input, shape index: {}]
  %s3 = inlined_call_operand.vmem [shape: bf16[2,16,32], index: 3, kind: input, shape index: {}]
  %s4 = inlined_call_operand.vmem [shape: f32[2,1,32], index: 4, kind: input, shape index: {}]
  %s5 = inlined_call_operand.vmem [shape: bf16[3,32,32], index: 5, kind: input, shape index: {}]
  %s6 = inlined_call_operand.vmem [shape: bf16[3,32,32], index: 6, kind: input, shape index: {}]
  %s7 = inlined_call_operand.vmem [shape: f32[3,1,32], index: 7, kind: input, shape index: {}]
  %s8 = inlined_call_operand.vmem [shape: bf16[32,3], index: 8, kind: input, shape index: {}]
  %s9 = inlined_call_operand.vmem [shape: f32[1,3], index: 9, kind: input, shape index: {}]
  %s10 = inlined_call_operand.hbm [shape: f32[2,3], index: 10, kind: output, shape index: {}]
  %s11 = sld [smem:[#allocation0]]
  $region50: #{kadapter_forward.3} parent=0
    _
  %s13 = ssub.s32 1, %s11
  %s14 = scalar_select 0, %s13, %s11
  $region1: #{kadapter_forward.3} parent=0
    #allocation2 [shape = 'u8[1024]{0}', space=vmem, size = 0x400, scoped, tag = 'output window, operand 0, single buffered']
    #allocation3 [shape = 's32[1]{0}', space=sflag, size = 0x4, scoped, tag = 'scoped memory for kadapter_forward.3']
    %15 = vsyncpa [#allocation3], 0
    // Predicated region
    $region2: #{kadapter_forward.3} parent=1 // pred_check
      _
    $region3: #{kadapter_forward.3} parent=1 // pred_check_branch
      %17 = sbr.rel (0) target = $region5
    $region4: #{kadapter_forward.3} parent=1 // pred_region
      _
    $region5: #{kadapter_forward.3} parent=1 // pred_fallthru
      _
    // Predicated region
    $region6: #{kadapter_forward.3} parent=1 // pred_check
      _
    $region7: #{kadapter_forward.3} parent=1 // pred_check_branch
      %19 = sbr.rel (0) target = $region9
    $region8: #{kadapter_forward.3} parent=1 // pred_region
      _
    $region9: #{kadapter_forward.3} parent=1 // pred_fallthru
      _
    // Predicated region
    $region10: #{kadapter_forward.3} parent=1 // pred_check
      _
    $region11: #{kadapter_forward.3} parent=1 // pred_check_branch
      %21 = sbr.rel (0) target = $region13
    $region12: #{kadapter_forward.3} parent=1 // pred_region
      _
    $region13: #{kadapter_forward.3} parent=1 // pred_fallthru
      _
    // Predicated region
    $region14: #{kadapter_forward.3} parent=1 // pred_check
      _
    $region15: #{kadapter_forward.3} parent=1 // pred_check_branch
      %23 = sbr.rel (0) target = $region17
    $region16: #{kadapter_forward.3} parent=1 // pred_region
      _
    $region17: #{kadapter_forward.3} parent=1 // pred_fallthru
      _
    // Predicated region
    $region18: #{kadapter_forward.3} parent=1 // pred_check
      _
    $region19: #{kadapter_forward.3} parent=1 // pred_check_branch
      %25 = sbr.rel (0) target = $region21
    $region20: #{kadapter_forward.3} parent=1 // pred_region
      _
    $region21: #{kadapter_forward.3} parent=1 // pred_fallthru
      _
    // Predicated region
    $region22: #{kadapter_forward.3} parent=1 // pred_check
      _
    $region23: #{kadapter_forward.3} parent=1 // pred_check_branch
      %27 = sbr.rel (0) target = $region25
    $region24: #{kadapter_forward.3} parent=1 // pred_region
      _
    $region25: #{kadapter_forward.3} parent=1 // pred_fallthru
      _
    // Predicated region
    $region26: #{kadapter_forward.3} parent=1 // pred_check
      _
    $region27: #{kadapter_forward.3} parent=1 // pred_check_branch
      %29 = sbr.rel (0) target = $region29
    $region28: #{kadapter_forward.3} parent=1 // pred_region
      _
    $region29: #{kadapter_forward.3} parent=1 // pred_fallthru
      _
    // Predicated region
    $region30: #{kadapter_forward.3} parent=1 // pred_check
      _
    $region31: #{kadapter_forward.3} parent=1 // pred_check_branch
      %31 = sbr.rel (0) target = $region33
    $region32: #{kadapter_forward.3} parent=1 // pred_region
      _
    $region33: #{kadapter_forward.3} parent=1 // pred_fallthru
      _
    // Predicated region
    $region34: #{kadapter_forward.3} parent=1 // pred_check
      _
    $region35: #{kadapter_forward.3} parent=1 // pred_check_branch
      %33 = sbr.rel (0) target = $region37
    $region36: #{kadapter_forward.3} parent=1 // pred_region
      _
    $region37: #{kadapter_forward.3} parent=1 // pred_fallthru
      _
    // Predicated region
    $region38: #{kadapter_forward.3} parent=1 // pred_check
      _
    $region39: #{kadapter_forward.3} parent=1 // pred_check_branch
      %35 = sbr.rel (0) target = $region41
    $region40: #{kadapter_forward.3} parent=1 // pred_region
      _
    $region41: #{kadapter_forward.3} parent=1 // pred_fallthru
      _
    %v37 = vld [vmem:[%s0] sm:$0x1]
    %v38 = vunpack.c.l.bf16 %v37
    %v39 = vld [vmem:[%s1] sm:$0xf]
    %v40 = vld [vmem:[%s1 + $0x4] sm:$0xf]
    %v41 = vld [vmem:[%s1 + $0x8] sm:$0xf]
    %v42 = vld [vmem:[%s1 + $0xc] sm:$0xf]
    %v43 = vld [vmem:[%s2] sm:$0x1]
    %v45 = vlaneseq
    %v46 = vshrl.u32 %v45, 7
    %v47 = vsub.s32 0, %v46
    %v48 = vrot.slane %v43, %v47
    %v54 = vunpack.c.l.b16 %v39
    %v55 = vunpack.c.l.b16 %v40
    %v56 = vunpack.c.l.b16 %v41
    %v57 = vunpack.c.l.b16 %v42
    %v58 = vpack.c.b16 %v55, %v54
    %v59 = vpack.c.b16 %v57, %v56
    %vm62 = vcmask 261120
    %v64 = vsel %vm62, %v37, 0
    %66 = vmatprep.subr.bf16.mxu0 0
    %67 = vmatpush1.bf16.msra.mxu0 %v58
    %68 = vmatprep.subr.bf16.mxu0 0
    %69 = vmatpush1.bf16.msra.mxu0 %v59
    %70 = vmatprep.subr.bf16.mxu0 0
    %71 = vmatpush1.bf16.msra.mxu0 0
    %72 = vmatprep.subr.bf16.mxu0 0
    %73 = vmatpush1.bf16.msra.mxu0 0
    %74 = vmatprep.subr.bf16.mxu0 0
    %75 = vmatpush1.bf16.msra.mxu0 0
    %76 = vmatprep.subr.bf16.mxu0 0
    %77 = vmatpush1.bf16.msra.mxu0 0
    %78 = vmatprep.subr.bf16.mxu0 0
    %79 = vmatpush1.bf16.msra.mxu0 0
    %80 = vmatprep.subr.bf16.mxu0 0
    %81 = vmatpush1.bf16.msra.mxu0 0
    %82 = vmatprep.subr.bf16.mxu0 0
    %83 = vmatpush1.bf16.msra.mxu0 0
    %84 = vmatprep.subr.bf16.mxu0 0
    %85 = vmatpush1.bf16.msra.mxu0 0
    %86 = vmatprep.subr.bf16.mxu0 0
    %87 = vmatpush1.bf16.msra.mxu0 0
    %88 = vmatprep.subr.bf16.mxu0 0
    %89 = vmatpush1.bf16.msra.mxu0 0
    %90 = vmatprep.subr.bf16.mxu0 0
    %91 = vmatpush1.bf16.msra.mxu0 0
    %92 = vmatprep.subr.bf16.mxu0 0
    %93 = vmatpush1.bf16.msra.mxu0 0
    %94 = vmatprep.subr.bf16.mxu0 0
    %95 = vmatpush1.bf16.msra.mxu0 0
    %96 = vmatprep.subr.bf16.mxu0 0
    %97 = vmatpush1.bf16.msra.mxu0 0
    %98 = vmatprep.mubr.bf16.mxu0 0
    %99 = vmatmul.mubr.bf16.gmra.mrb[0].mxu0 %v64
    %v100 = vpop.f32.mrb[0].mxu0
    %v101 = vadd.f32 %v48, %v100
    %v102 = vpop.f32.mrb[0].mxu0
    %v103 = vpop.f32.mrb[0].mxu0
    %v104 = vpop.f32.mrb[0].mxu0
    %105 = vdwg.mxu0
    %v106 = vmul.f32 %v101, %v101
    %v107 = vmul.f32 %v101, %v106
    %v108 = vmul.f32 %v107, 0.044715
    %v109 = vadd.f32 %v101, %v108
    %v110 = vmul.f32 %v109, 0.7978846
    %v111 = vtanh.pop %v110
    %v112 = vadd.f32 %v111, 1.0
    %v113 = vmul.f32 %v112, 0.5
    %v114 = vmul.f32 %v101, %v113
    %v115 = vpack.c.bf16 %v114, %v114
    %v116 = vld [vmem:[%s3] sm:$0xf]
    %v117 = vld [vmem:[%s3 + $0x4] sm:$0xf]
    %v118 = vld [vmem:[%s4] sm:$0x1]
    %v120 = vlaneseq
    %v121 = vshrl.u32 %v120, 7
    %v122 = vsub.s32 0, %v121
    %v123 = vrot.slane %v118, %v122
    %v127 = vunpack.c.l.b16 %v116
    %v128 = vunpack.c.l.b16 %v117
    %v129 = vpack.c.b16 %v128, %v127
    %vm131 = vcmask 130048
    %v133 = vsel %vm131, %v115, 0
    %135 = vmatprep.subr.bf16.mxu0 0
    %136 = vmatpush1.bf16.msra.mxu0 %v129
    %137 = vmatprep.subr.bf16.mxu0 0
    %138 = vmatpush1.bf16.msra.mxu0 0
    %139 = vmatprep.subr.bf16.mxu0 0
    %140 = vmatpush1.bf16.msra.mxu0 0
    %141 = vmatprep.subr.bf16.mxu0 0
    %142 = vmatpush1.bf16.msra.mxu0 0
    %143 = vmatprep.subr.bf16.mxu0 0
    %144 = vmatpush1.bf16.msra.mxu0 0
    %145 = vmatprep.subr.bf16.mxu0 0
    %146 = vmatpush1.bf16.msra.mxu0 0
    %147 = vmatprep.subr.bf16.mxu0 0
    %148 = vmatpush1.bf16.msra.mxu0 0
    %149 = vmatprep.subr.bf16.mxu0 0
    %150 = vmatpush1.bf16.msra.mxu0 0
    %151 = vmatprep.subr.bf16.mxu0 0
    %152 = vmatpush1.bf16.msra.mxu0 0
    %153 = vmatprep.subr.bf16.mxu0 0
    %154 = vmatpush1.bf16.msra.mxu0 0
    %155 = vmatprep.subr.bf16.mxu0 0
    %156 = vmatpush1.bf16.msra.mxu0 0
    %157 = vmatprep.subr.bf16.mxu0 0
    %158 = vmatpush1.bf16.msra.mxu0 0
    %159 = vmatprep.subr.bf16.mxu0 0
    %160 = vmatpush1.bf16.msra.mxu0 0
    %161 = vmatprep.subr.bf16.mxu0 0
    %162 = vmatpush1.bf16.msra.mxu0 0
    %163 = vmatprep.subr.bf16.mxu0 0
    %164 = vmatpush1.bf16.msra.mxu0 0
    %165 = vmatprep.subr.bf16.mxu0 0
    %166 = vmatpush1.bf16.msra.mxu0 0
    %167 = vmatprep.mubr.bf16.mxu0 0
    %168 = vmatmul.mubr.bf16.gmra.mrb[0].mxu0 %v133
    %v169 = vpop.f32.mrb[0].mxu0
    %v170 = vadd.f32 %v123, %v169
    %v171 = vpop.f32.mrb[0].mxu0
    %v172 = vpop.f32.mrb[0].mxu0
    %v173 = vpop.f32.mrb[0].mxu0
    %174 = vdwg.mxu0
    %v175 = vadd.f32 %v38, %v170
    %s176 = scalar_lea.vmem %s1, 16
    %v177 = vld [vmem:[%s176] sm:$0xf]
    %v178 = vld [vmem:[%s176 + $0x4] sm:$0xf]
    %v179 = vld [vmem:[%s176 + $0x8] sm:$0xf]
    %v180 = vld [vmem:[%s176 + $0xc] sm:$0xf]
    %s181 = scalar_lea.vmem %s2, 1
    %v182 = vld [vmem:[%s181] sm:$0x1]
    %v184 = vlaneseq
    %v185 = vshrl.u32 %v184, 7
    %v186 = vsub.s32 0, %v185
    %v187 = vrot.slane %v182, %v186
    %v193 = vunpack.c.l.b16 %v177
    %v194 = vunpack.c.l.b16 %v178
    %v195 = vunpack.c.l.b16 %v179
    %v196 = vunpack.c.l.b16 %v180
    %v197 = vpack.c.b16 %v194, %v193
    %v198 = vpack.c.b16 %v196, %v195
    %201 = vmatprep.subr.bf16.mxu0 0
    %202 = vmatpush1.bf16.msra.mxu0 %v197
    %203 = vmatprep.subr.bf16.mxu0 0
    %204 = vmatpush1.bf16.msra.mxu0 %v198
    %205 = vmatprep.subr.bf16.mxu0 0
    %206 = vmatpush1.bf16.msra.mxu0 0
    %207 = vmatprep.subr.bf16.mxu0 0
    %208 = vmatpush1.bf16.msra.mxu0 0
    %209 = vmatprep.subr.bf16.mxu0 0
    %210 = vmatpush1.bf16.msra.mxu0 0
    %211 = vmatprep.subr.bf16.mxu0 0
    %212 = vmatpush1.bf16.msra.mxu0 0
    %213 = vmatprep.subr.bf16.mxu0 0
    %214 = vmatpush1.bf16.msra.mxu0 0
    %215 = vmatprep.subr.bf16.mxu0 0
    %216 = vmatpush1.bf16.msra.mxu0 0
    %217 = vmatprep.subr.bf16.mxu0 0
    %218 = vmatpush1.bf16.msra.mxu0 0
    %219 = vmatprep.subr.bf16.mxu0 0
    %220 = vmatpush1.bf16.msra.mxu0 0
    %221 = vmatprep.subr.bf16.mxu0 0
    %222 = vmatpush1.bf16.msra.mxu0 0
    %223 = vmatprep.subr.bf16.mxu0 0
    %224 = vmatpush1.bf16.msra.mxu0 0
    %225 = vmatprep.subr.bf16.mxu0 0
    %226 = vmatpush1.bf16.msra.mxu0 0
    %227 = vmatprep.subr.bf16.mxu0 0
    %228 = vmatpush1.bf16.msra.mxu0 0
    %229 = vmatprep.subr.bf16.mxu0 0
    %230 = vmatpush1.bf16.msra.mxu0 0
    %231 = vmatprep.subr.bf16.mxu0 0
    %232 = vmatpush1.bf16.msra.mxu0 0
    %233 = vmatprep.mubr.bf16.mxu0 0
    %234 = vmatmul.mubr.bf16.gmra.mrb[0].mxu0 %v64
    %v235 = vpop.f32.mrb[0].mxu0
    %v236 = vadd.f32 %v187, %v235
    %v237 = vpop.f32.mrb[0].mxu0
    %v238 = vpop.f32.mrb[0].mxu0
    %v239 = vpop.f32.mrb[0].mxu0
    %240 = vdwg.mxu0
    %v241 = vmul.f32 %v236, %v236
    %v242 = vmul.f32 %v236, %v241
    %v243 = vmul.f32 %v242, 0.044715
    %v244 = vadd.f32 %v236, %v243
    %v245 = vmul.f32 %v244, 0.7978846
    %v246 = vtanh.pop %v245
    %v247 = vadd.f32 %v246, 1.0
    %v248 = vmul.f32 %v247, 0.5
    %v249 = vmul.f32 %v236, %v248
    %v250 = vpack.c.bf16 %v249, %v249
    %s251 = scalar_lea.vmem %s3, 8
    %v252 = vld [vmem:[%s251] sm:$0xf]
    %v253 = vld [vmem:[%s251 + $0x4] sm:$0xf]
    %s254 = scalar_lea.vmem %s4, 1
    %v255 = vld [vmem:[%s254] sm:$0x1]
    %v257 = vlaneseq
    %v258 = vshrl.u32 %v257, 7
    %v259 = vsub.s32 0, %v258
    %v260 = vrot.slane %v255, %v259
    %v264 = vunpack.c.l.b16 %v252
    %v265 = vunpack.c.l.b16 %v253
    %v266 = vpack.c.b16 %v265, %v264
    %v269 = vsel %vm131, %v250, 0
    %271 = vmatprep.subr.bf16.mxu0 0
    %272 = vmatpush1.bf16.msra.mxu0 %v266
    %273 = vmatprep.subr.bf16.mxu0 0
    %274 = vmatpush1.bf16.msra.mxu0 0
    %275 = vmatprep.subr.bf16.mxu0 0
    %276 = vmatpush1.bf16.msra.mxu0 0
    %277 = vmatprep.subr.bf16.mxu0 0
    %278 = vmatpush1.bf16.msra.mxu0 0
    %279 = vmatprep.subr.bf16.mxu0 0
    %280 = vmatpush1.bf16.msra.mxu0 0
    %281 = vmatprep.subr.bf16.mxu0 0
    %282 = vmatpush1.bf16.msra.mxu0 0
    %283 = vmatprep.subr.bf16.mxu0 0
    %284 = vmatpush1.bf16.msra.mxu0 0
    %285 = vmatprep.subr.bf16.mxu0 0
    %286 = vmatpush1.bf16.msra.mxu0 0
    %287 = vmatprep.subr.bf16.mxu0 0
    %288 = vmatpush1.bf16.msra.mxu0 0
    %289 = vmatprep.subr.bf16.mxu0 0
    %290 = vmatpush1.bf16.msra.mxu0 0
    %291 = vmatprep.subr.bf16.mxu0 0
    %292 = vmatpush1.bf16.msra.mxu0 0
    %293 = vmatprep.subr.bf16.mxu0 0
    %294 = vmatpush1.bf16.msra.mxu0 0
    %295 = vmatprep.subr.bf16.mxu0 0
    %296 = vmatpush1.bf16.msra.mxu0 0
    %297 = vmatprep.subr.bf16.mxu0 0
    %298 = vmatpush1.bf16.msra.mxu0 0
    %299 = vmatprep.subr.bf16.mxu0 0
    %300 = vmatpush1.bf16.msra.mxu0 0
    %301 = vmatprep.subr.bf16.mxu0 0
    %302 = vmatpush1.bf16.msra.mxu0 0
    %303 = vmatprep.mubr.bf16.mxu0 0
    %304 = vmatmul.mubr.bf16.gmra.mrb[0].mxu0 %v269
    %v305 = vpop.f32.mrb[0].mxu0
    %v306 = vadd.f32 %v260, %v305
    %v307 = vpop.f32.mrb[0].mxu0
    %v308 = vpop.f32.mrb[0].mxu0
    %v309 = vpop.f32.mrb[0].mxu0
    %310 = vdwg.mxu0
    %v311 = vadd.f32 %v38, %v306
    %v312 = vld [vmem:[%s5] sm:$0xf]
    %v313 = vld [vmem:[%s5 + $0x4] sm:$0xf]
    %v314 = vld [vmem:[%s5 + $0x8] sm:$0xf]
    %v315 = vld [vmem:[%s5 + $0xc] sm:$0xf]
    %v316 = vpack.c.bf16 %v175, %v175
    %v317 = vld [vmem:[%s6] sm:$0xf]
    %v318 = vld [vmem:[%s6 + $0x4] sm:$0xf]
    %v319 = vld [vmem:[%s6 + $0x8] sm:$0xf]
    %v320 = vld [vmem:[%s6 + $0xc] sm:$0xf]
    %v325 = vunpack.c.l.b16 %v317
    %v326 = vunpack.c.l.b16 %v318
    %v327 = vunpack.c.l.b16 %v319
    %v328 = vunpack.c.l.b16 %v320
    %v329 = vpack.c.b16 %v326, %v325
    %v330 = vpack.c.b16 %v328, %v327
    %v334 = vsel %vm62, %v316, 0
    %336 = vmatprep.subr.bf16.mxu0 0
    %337 = vmatpush1.bf16.msra.mxu0 %v329
    %338 = vmatprep.subr.bf16.mxu0 0
    %339 = vmatpush1.bf16.msra.mxu0 %v330
    %340 = vmatprep.subr.bf16.mxu0 0
    %341 = vmatpush1.bf16.msra.mxu0 0
    %342 = vmatprep.subr.bf16.mxu0 0
    %343 = vmatpush1.bf16.msra.mxu0 0
    %344 = vmatprep.subr.bf16.mxu0 0
    %345 = vmatpush1.bf16.msra.mxu0 0
    %346 = vmatprep.subr.bf16.mxu0 0
    %347 = vmatpush1.bf16.msra.mxu0 0
    %348 = vmatprep.subr.bf16.mxu0 0
    %349 = vmatpush1.bf16.msra.mxu0 0
    %350 = vmatprep.subr.bf16.mxu0 0
    %351 = vmatpush1.bf16.msra.mxu0 0
    %352 = vmatprep.subr.bf16.mxu0 0
    %353 = vmatpush1.bf16.msra.mxu0 0
    %354 = vmatprep.subr.bf16.mxu0 0
    %355 = vmatpush1.bf16.msra.mxu0 0
    %356 = vmatprep.subr.bf16.mxu0 0
    %357 = vmatpush1.bf16.msra.mxu0 0
    %358 = vmatprep.subr.bf16.mxu0 0
    %359 = vmatpush1.bf16.msra.mxu0 0
    %360 = vmatprep.subr.bf16.mxu0 0
    %361 = vmatpush1.bf16.msra.mxu0 0
    %362 = vmatprep.subr.bf16.mxu0 0
    %363 = vmatpush1.bf16.msra.mxu0 0
    %364 = vmatprep.subr.bf16.mxu0 0
    %365 = vmatpush1.bf16.msra.mxu0 0
    %366 = vmatprep.subr.bf16.mxu0 0
    %367 = vmatpush1.bf16.msra.mxu0 0
    %368 = vmatprep.mubr.bf16.mxu0 0
    %369 = vmatmul.mubr.bf16.gmra.mrb[0].mxu0 %v334
    %v370 = vpop.f32.mrb[0].mxu0
    %v371 = vadd.f32 0.0, %v370
    %v372 = vpop.f32.mrb[0].mxu0
    %v373 = vpop.f32.mrb[0].mxu0
    %v374 = vpop.f32.mrb[0].mxu0
    %375 = vdwg.mxu0
    %v380 = vunpack.c.l.b16 %v312
    %v381 = vunpack.c.l.b16 %v313
    %v382 = vunpack.c.l.b16 %v314
    %v383 = vunpack.c.l.b16 %v315
    %v384 = vpack.c.b16 %v381, %v380
    %v385 = vpack.c.b16 %v383, %v382
    %388 = vmatprep.subr.bf16.mxu0 0
    %389 = vmatpush1.bf16.msra.mxu0 %v384
    %390 = vmatprep.subr.bf16.mxu0 0
    %391 = vmatpush1.bf16.msra.mxu0 %v385
    %392 = vmatprep.subr.bf16.mxu0 0
    %393 = vmatpush1.bf16.msra.mxu0 0
    %394 = vmatprep.subr.bf16.mxu0 0
    %395 = vmatpush1.bf16.msra.mxu0 0
    %396 = vmatprep.subr.bf16.mxu0 0
    %397 = vmatpush1.bf16.msra.mxu0 0
    %398 = vmatprep.subr.bf16.mxu0 0
    %399 = vmatpush1.bf16.msra.mxu0 0
    %400 = vmatprep.subr.bf16.mxu0 0
    %401 = vmatpush1.bf16.msra.mxu0 0
    %402 = vmatprep.subr.bf16.mxu0 0
    %403 = vmatpush1.bf16.msra.mxu0 0
    %404 = vmatprep.subr.bf16.mxu0 0
    %405 = vmatpush1.bf16.msra.mxu0 0
    %406 = vmatprep.subr.bf16.mxu0 0
    %407 = vmatpush1.bf16.msra.mxu0 0
    %408 = vmatprep.subr.bf16.mxu0 0
    %409 = vmatpush1.bf16.msra.mxu0 0
    %410 = vmatprep.subr.bf16.mxu0 0
    %411 = vmatpush1.bf16.msra.mxu0 0
    %412 = vmatprep.subr.bf16.mxu0 0
    %413 = vmatpush1.bf16.msra.mxu0 0
    %414 = vmatprep.subr.bf16.mxu0 0
    %415 = vmatpush1.bf16.msra.mxu0 0
    %416 = vmatprep.subr.bf16.mxu0 0
    %417 = vmatpush1.bf16.msra.mxu0 0
    %418 = vmatprep.subr.bf16.mxu0 0
    %419 = vmatpush1.bf16.msra.mxu0 0
    %420 = vmatprep.mubr.bf16.mxu0 0
    %421 = vmatmul.mubr.bf16.gmra.mrb[0].mxu0 %v64
    %v422 = vpop.f32.mrb[0].mxu0
    %v423 = vadd.f32 %v371, %v422
    %v424 = vpop.f32.mrb[0].mxu0
    %v425 = vpop.f32.mrb[0].mxu0
    %v426 = vpop.f32.mrb[0].mxu0
    %427 = vdwg.mxu0
    %v428 = vld [vmem:[%s7] sm:$0x1]
    %v430 = vlaneseq
    %v431 = vshrl.u32 %v430, 7
    %v432 = vsub.s32 0, %v431
    %v433 = vrot.slane %v428, %v432
    %v435 = vadd.f32 %v423, %v433
    %s436 = scalar_lea.vmem %s5, 16
    %v437 = vld [vmem:[%s436] sm:$0xf]
    %v438 = vld [vmem:[%s436 + $0x4] sm:$0xf]
    %v439 = vld [vmem:[%s436 + $0x8] sm:$0xf]
    %v440 = vld [vmem:[%s436 + $0xc] sm:$0xf]
    %v441 = vpack.c.bf16 %v311, %v311
    %s442 = scalar_lea.vmem %s6, 16
    %v443 = vld [vmem:[%s442] sm:$0xf]
    %v444 = vld [vmem:[%s442 + $0x4] sm:$0xf]
    %v445 = vld [vmem:[%s442 + $0x8] sm:$0xf]
    %v446 = vld [vmem:[%s442 + $0xc] sm:$0xf]
    %v451 = vunpack.c.l.b16 %v443
    %v452 = vunpack.c.l.b16 %v444
    %v453 = vunpack.c.l.b16 %v445
    %v454 = vunpack.c.l.b16 %v446
    %v455 = vpack.c.b16 %v452, %v451
    %v456 = vpack.c.b16 %v454, %v453
    %v460 = vsel %vm62, %v441, 0
    %462 = vmatprep.subr.bf16.mxu0 0
    %463 = vmatpush1.bf16.msra.mxu0 %v455
    %464 = vmatprep.subr.bf16.mxu0 0
    %465 = vmatpush1.bf16.msra.mxu0 %v456
    %466 = vmatprep.subr.bf16.mxu0 0
    %467 = vmatpush1.bf16.msra.mxu0 0
    %468 = vmatprep.subr.bf16.mxu0 0
    %469 = vmatpush1.bf16.msra.mxu0 0
    %470 = vmatprep.subr.bf16.mxu0 0
    %471 = vmatpush1.bf16.msra.mxu0 0
    %472 = vmatprep.subr.bf16.mxu0 0
    %473 = vmatpush1.bf16.msra.mxu0 0
    %474 = vmatprep.subr.bf16.mxu0 0
    %475 = vmatpush1.bf16.msra.mxu0 0
    %476 = vmatprep.subr.bf16.mxu0 0
    %477 = vmatpush1.bf16.msra.mxu0 0
    %478 = vmatprep.subr.bf16.mxu0 0
    %479 = vmatpush1.bf16.msra.mxu0 0
    %480 = vmatprep.subr.bf16.mxu0 0
    %481 = vmatpush1.bf16.msra.mxu0 0
    %482 = vmatprep.subr.bf16.mxu0 0
    %483 = vmatpush1.bf16.msra.mxu0 0
    %484 = vmatprep.subr.bf16.mxu0 0
    %485 = vmatpush1.bf16.msra.mxu0 0
    %486 = vmatprep.subr.bf16.mxu0 0
    %487 = vmatpush1.bf16.msra.mxu0 0
    %488 = vmatprep.subr.bf16.mxu0 0
    %489 = vmatpush1.bf16.msra.mxu0 0
    %490 = vmatprep.subr.bf16.mxu0 0
    %491 = vmatpush1.bf16.msra.mxu0 0
    %492 = vmatprep.subr.bf16.mxu0 0
    %493 = vmatpush1.bf16.msra.mxu0 0
    %494 = vmatprep.mubr.bf16.mxu0 0
    %495 = vmatmul.mubr.bf16.gmra.mrb[0].mxu0 %v460
    %v496 = vpop.f32.mrb[0].mxu0
    %v497 = vadd.f32 0.0, %v496
    %v498 = vpop.f32.mrb[0].mxu0
    %v499 = vpop.f32.mrb[0].mxu0
    %v500 = vpop.f32.mrb[0].mxu0
    %501 = vdwg.mxu0
    %v506 = vunpack.c.l.b16 %v437
    %v507 = vunpack.c.l.b16 %v438
    %v508 = vunpack.c.l.b16 %v439
    %v509 = vunpack.c.l.b16 %v440
    %v510 = vpack.c.b16 %v507, %v506
    %v511 = vpack.c.b16 %v509, %v508
    %514 = vmatprep.subr.bf16.mxu0 0
    %515 = vmatpush1.bf16.msra.mxu0 %v510
    %516 = vmatprep.subr.bf16.mxu0 0
    %517 = vmatpush1.bf16.msra.mxu0 %v511
    %518 = vmatprep.subr.bf16.mxu0 0
    %519 = vmatpush1.bf16.msra.mxu0 0
    %520 = vmatprep.subr.bf16.mxu0 0
    %521 = vmatpush1.bf16.msra.mxu0 0
    %522 = vmatprep.subr.bf16.mxu0 0
    %523 = vmatpush1.bf16.msra.mxu0 0
    %524 = vmatprep.subr.bf16.mxu0 0
    %525 = vmatpush1.bf16.msra.mxu0 0
    %526 = vmatprep.subr.bf16.mxu0 0
    %527 = vmatpush1.bf16.msra.mxu0 0
    %528 = vmatprep.subr.bf16.mxu0 0
    %529 = vmatpush1.bf16.msra.mxu0 0
    %530 = vmatprep.subr.bf16.mxu0 0
    %531 = vmatpush1.bf16.msra.mxu0 0
    %532 = vmatprep.subr.bf16.mxu0 0
    %533 = vmatpush1.bf16.msra.mxu0 0
    %534 = vmatprep.subr.bf16.mxu0 0
    %535 = vmatpush1.bf16.msra.mxu0 0
    %536 = vmatprep.subr.bf16.mxu0 0
    %537 = vmatpush1.bf16.msra.mxu0 0
    %538 = vmatprep.subr.bf16.mxu0 0
    %539 = vmatpush1.bf16.msra.mxu0 0
    %540 = vmatprep.subr.bf16.mxu0 0
    %541 = vmatpush1.bf16.msra.mxu0 0
    %542 = vmatprep.subr.bf16.mxu0 0
    %543 = vmatpush1.bf16.msra.mxu0 0
    %544 = vmatprep.subr.bf16.mxu0 0
    %545 = vmatpush1.bf16.msra.mxu0 0
    %546 = vmatprep.mubr.bf16.mxu0 0
    %547 = vmatmul.mubr.bf16.gmra.mrb[0].mxu0 %v64
    %v548 = vpop.f32.mrb[0].mxu0
    %v549 = vadd.f32 %v497, %v548
    %v550 = vpop.f32.mrb[0].mxu0
    %v551 = vpop.f32.mrb[0].mxu0
    %v552 = vpop.f32.mrb[0].mxu0
    %553 = vdwg.mxu0
    %s554 = scalar_lea.vmem %s7, 1
    %v555 = vld [vmem:[%s554] sm:$0x1]
    %v557 = vlaneseq
    %v558 = vshrl.u32 %v557, 7
    %v559 = vsub.s32 0, %v558
    %v560 = vrot.slane %v555, %v559
    %v562 = vadd.f32 %v549, %v560
    %v563 = vpack.c.bf16 %v435, %v435
    %s564 = scalar_lea.vmem %s5, 32
    %v565 = vld [vmem:[%s564] sm:$0xf]
    %v566 = vld [vmem:[%s564 + $0x4] sm:$0xf]
    %v567 = vld [vmem:[%s564 + $0x8] sm:$0xf]
    %v568 = vld [vmem:[%s564 + $0xc] sm:$0xf]
    %v569 = vpack.c.bf16 %v562, %v562
    %s570 = scalar_lea.vmem %s6, 32
    %v571 = vld [vmem:[%s570] sm:$0xf]
    %v572 = vld [vmem:[%s570 + $0x4] sm:$0xf]
    %v573 = vld [vmem:[%s570 + $0x8] sm:$0xf]
    %v574 = vld [vmem:[%s570 + $0xc] sm:$0xf]
    %v579 = vunpack.c.l.b16 %v571
    %v580 = vunpack.c.l.b16 %v572
    %v581 = vunpack.c.l.b16 %v573
    %v582 = vunpack.c.l.b16 %v574
    %v583 = vpack.c.b16 %v580, %v579
    %v584 = vpack.c.b16 %v582, %v581
    %v588 = vsel %vm62, %v569, 0
    %590 = vmatprep.subr.bf16.mxu0 0
    %591 = vmatpush1.bf16.msra.mxu0 %v583
    %592 = vmatprep.subr.bf16.mxu0 0
    %593 = vmatpush1.bf16.msra.mxu0 %v584
    %594 = vmatprep.subr.bf16.mxu0 0
    %595 = vmatpush1.bf16.msra.mxu0 0
    %596 = vmatprep.subr.bf16.mxu0 0
    %597 = vmatpush1.bf16.msra.mxu0 0
    %598 = vmatprep.subr.bf16.mxu0 0
    %599 = vmatpush1.bf16.msra.mxu0 0
    %600 = vmatprep.subr.bf16.mxu0 0
    %601 = vmatpush1.bf16.msra.mxu0 0
    %602 = vmatprep.subr.bf16.mxu0 0
    %603 = vmatpush1.bf16.msra.mxu0 0
    %604 = vmatprep.subr.bf16.mxu0 0
    %605 = vmatpush1.bf16.msra.mxu0 0
    %606 = vmatprep.subr.bf16.mxu0 0
    %607 = vmatpush1.bf16.msra.mxu0 0
    %608 = vmatprep.subr.bf16.mxu0 0
    %609 = vmatpush1.bf16.msra.mxu0 0
    %610 = vmatprep.subr.bf16.mxu0 0
    %611 = vmatpush1.bf16.msra.mxu0 0
    %612 = vmatprep.subr.bf16.mxu0 0
    %613 = vmatpush1.bf16.msra.mxu0 0
    %614 = vmatprep.subr.bf16.mxu0 0
    %615 = vmatpush1.bf16.msra.mxu0 0
    %616 = vmatprep.subr.bf16.mxu0 0
    %617 = vmatpush1.bf16.msra.mxu0 0
    %618 = vmatprep.subr.bf16.mxu0 0
    %619 = vmatpush1.bf16.msra.mxu0 0
    %620 = vmatprep.subr.bf16.mxu0 0
    %621 = vmatpush1.bf16.msra.mxu0 0
    %622 = vmatprep.mubr.bf16.mxu0 0
    %623 = vmatmul.mubr.bf16.gmra.mrb[0].mxu0 %v588
    %v624 = vpop.f32.mrb[0].mxu0
    %v625 = vadd.f32 0.0, %v624
    %v626 = vpop.f32.mrb[0].mxu0
    %v627 = vpop.f32.mrb[0].mxu0
    %v628 = vpop.f32.mrb[0].mxu0
    %629 = vdwg.mxu0
    %v634 = vunpack.c.l.b16 %v565
    %v635 = vunpack.c.l.b16 %v566
    %v636 = vunpack.c.l.b16 %v567
    %v637 = vunpack.c.l.b16 %v568
    %v638 = vpack.c.b16 %v635, %v634
    %v639 = vpack.c.b16 %v637, %v636
    %v643 = vsel %vm62, %v563, 0
    %645 = vmatprep.subr.bf16.mxu0 0
    %646 = vmatpush1.bf16.msra.mxu0 %v638
    %647 = vmatprep.subr.bf16.mxu0 0
    %648 = vmatpush1.bf16.msra.mxu0 %v639
    %649 = vmatprep.subr.bf16.mxu0 0
    %650 = vmatpush1.bf16.msra.mxu0 0
    %651 = vmatprep.subr.bf16.mxu0 0
    %652 = vmatpush1.bf16.msra.mxu0 0
    %653 = vmatprep.subr.bf16.mxu0 0
    %654 = vmatpush1.bf16.msra.mxu0 0
    %655 = vmatprep.subr.bf16.mxu0 0
    %656 = vmatpush1.bf16.msra.mxu0 0
    %657 = vmatprep.subr.bf16.mxu0 0
    %658 = vmatpush1.bf16.msra.mxu0 0
    %659 = vmatprep.subr.bf16.mxu0 0
    %660 = vmatpush1.bf16.msra.mxu0 0
    %661 = vmatprep.subr.bf16.mxu0 0
    %662 = vmatpush1.bf16.msra.mxu0 0
    %663 = vmatprep.subr.bf16.mxu0 0
    %664 = vmatpush1.bf16.msra.mxu0 0
    %665 = vmatprep.subr.bf16.mxu0 0
    %666 = vmatpush1.bf16.msra.mxu0 0
    %667 = vmatprep.subr.bf16.mxu0 0
    %668 = vmatpush1.bf16.msra.mxu0 0
    %669 = vmatprep.subr.bf16.mxu0 0
    %670 = vmatpush1.bf16.msra.mxu0 0
    %671 = vmatprep.subr.bf16.mxu0 0
    %672 = vmatpush1.bf16.msra.mxu0 0
    %673 = vmatprep.subr.bf16.mxu0 0
    %674 = vmatpush1.bf16.msra.mxu0 0
    %675 = vmatprep.subr.bf16.mxu0 0
    %676 = vmatpush1.bf16.msra.mxu0 0
    %677 = vmatprep.mubr.bf16.mxu0 0
    %678 = vmatmul.mubr.bf16.gmra.mrb[0].mxu0 %v643
    %v679 = vpop.f32.mrb[0].mxu0
    %v680 = vadd.f32 %v625, %v679
    %v681 = vpop.f32.mrb[0].mxu0
    %v682 = vpop.f32.mrb[0].mxu0
    %v683 = vpop.f32.mrb[0].mxu0
    %684 = vdwg.mxu0
    %s685 = scalar_lea.vmem %s7, 2
    %v686 = vld [vmem:[%s685] sm:$0x1]
    %v688 = vlaneseq
    %v689 = vshrl.u32 %v688, 7
    %v690 = vsub.s32 0, %v689
    %v691 = vrot.slane %v686, %v690
    %v693 = vadd.f32 %v680, %v691
    %v694 = vpack.c.bf16 %v693, %v693
    %v695 = vld [vmem:[%s8] sm:$0xf]
    %v696 = vld [vmem:[%s8 + $0x4] sm:$0xf]
    %v697 = vld [vmem:[%s8 + $0x8] sm:$0xf]
    %v698 = vld [vmem:[%s8 + $0xc] sm:$0xf]
    %v699 = vld [vmem:[%s9] sm:$0x1]
    %v701 = vlaneseq
    %v702 = vshrl.u32 %v701, 7
    %v703 = vsub.s32 0, %v702
    %v704 = vrot.slane %v699, %v703
    %v710 = vunpack.c.l.b16 %v695
    %v711 = vunpack.c.l.b16 %v696
    %v712 = vunpack.c.l.b16 %v697
    %v713 = vunpack.c.l.b16 %v698
    %v714 = vpack.c.b16 %v711, %v710
    %v715 = vpack.c.b16 %v713, %v712
    %v719 = vsel %vm62, %v694, 0
    %721 = vmatprep.subr.bf16.mxu0 0
    %722 = vmatpush1.bf16.msra.mxu0 %v714
    %723 = vmatprep.subr.bf16.mxu0 0
    %724 = vmatpush1.bf16.msra.mxu0 %v715
    %725 = vmatprep.subr.bf16.mxu0 0
    %726 = vmatpush1.bf16.msra.mxu0 0
    %727 = vmatprep.subr.bf16.mxu0 0
    %728 = vmatpush1.bf16.msra.mxu0 0
    %729 = vmatprep.subr.bf16.mxu0 0
    %730 = vmatpush1.bf16.msra.mxu0 0
    %731 = vmatprep.subr.bf16.mxu0 0
    %732 = vmatpush1.bf16.msra.mxu0 0
    %733 = vmatprep.subr.bf16.mxu0 0
    %734 = vmatpush1.bf16.msra.mxu0 0
    %735 = vmatprep.subr.bf16.mxu0 0
    %736 = vmatpush1.bf16.msra.mxu0 0
    %737 = vmatprep.subr.bf16.mxu0 0
    %738 = vmatpush1.bf16.msra.mxu0 0
    %739 = vmatprep.subr.bf16.mxu0 0
    %740 = vmatpush1.bf16.msra.mxu0 0
    %741 = vmatprep.subr.bf16.mxu0 0
    %742 = vmatpush1.bf16.msra.mxu0 0
    %743 = vmatprep.subr.bf16.mxu0 0
    %744 = vmatpush1.bf16.msra.mxu0 0
    %745 = vmatprep.subr.bf16.mxu0 0
    %746 = vmatpush1.bf16.msra.mxu0 0
    %747 = vmatprep.subr.bf16.mxu0 0
    %748 = vmatpush1.bf16.msra.mxu0 0
    %749 = vmatprep.subr.bf16.mxu0 0
    %750 = vmatpush1.bf16.msra.mxu0 0
    %751 = vmatprep.subr.bf16.mxu0 0
    %752 = vmatpush1.bf16.msra.mxu0 0
    %753 = vmatprep.mubr.bf16.mxu0 0
    %754 = vmatmul.mubr.bf16.gmra.mrb[0].mxu0 %v719
    %v755 = vpop.f32.mrb[0].mxu0
    %v756 = vadd.f32 %v704, %v755
    %v757 = vpop.f32.mrb[0].mxu0
    %v758 = vpop.f32.mrb[0].mxu0
    %v759 = vpop.f32.mrb[0].mxu0
    %760 = vdwg.mxu0
    %vm761 = vcmask 17408
    %762 = vst.msk [vmem:[#allocation2] sm:$0x3] %vm761, %v756
    // Predicated region
    $region42: #{kadapter_forward.3} parent=1 // pred_check
      _
    $region43: #{kadapter_forward.3} parent=1 // pred_check_branch
      %764 = sbr.rel (0) target = $region45
    $region44: #{kadapter_forward.3} parent=1 // pred_region
      %s766 = ssub.s32 32, 32
      %767 = vsyncadd [#allocation3], %s766
      %s769 = sshll.u32 [#allocation2], 4
      %s770 = int_to_ptr.vmem [resolvable:$true] %s769
      %772 = dma.vmem_to_hbm [thread:$0]  %s770, 32, %s10, [#allocation3]
    $region45: #{kadapter_forward.3} parent=1 // pred_fallthru
      _
    // Predicated region
    $region46: #{kadapter_forward.3} parent=1 // pred_check
      _
    $region47: #{kadapter_forward.3} parent=1 // pred_check_branch
      %774 = sbr.rel (0) target = $region49
    $region48: #{kadapter_forward.3} parent=1 // pred_region
      %775 = dma.done [#allocation3], 32
    $region49: #{kadapter_forward.3} parent=1 // pred_fallthru
      _
    %776 = vsyncpa [#allocation3], 1

// kernel: kadapter_forward.2
$region0: #{kadapter_forward.2}
  #allocation0 [shape = 'u32[]', space=smem, size = 0x4, offset = 0x4, fixed_abs, tag = 'smem constant byte address 0x4 - core index']
  #allocation1 [shape = 'u32[144,128]{1,0:T(1,128)}', space=vmem, size = 0x12000, scoped, tag = 'internal scratch']
  #allocation2 [shape = 'f32[16,32]{1,0:T(8,128)}', space=vmem, size = 0x2000, scoped, tag = 'scratch operand']
  #allocation3 [shape = 'f32[16,32]{1,0:T(8,128)}', space=vmem, size = 0x2000, scoped, tag = 'scratch operand']
  %s0 = inlined_call_operand.vmem [shape: f32[16,32], index: 0, kind: input, shape index: {}]
  %s1 = inlined_call_operand.vmem [shape: f32[2,8], index: 1, kind: input, shape index: {}]
  %s2 = inlined_call_operand.vmem [shape: f32[1,32], index: 2, kind: input, shape index: {}]
  %s3 = inlined_call_operand.vmem [shape: f32[1,32], index: 3, kind: input, shape index: {}]
  %s4 = inlined_call_operand.vmem [shape: bf16[2,32,96], index: 4, kind: input, shape index: {}]
  %s5 = inlined_call_operand.vmem [shape: f32[2,1,96], index: 5, kind: input, shape index: {}]
  %s6 = inlined_call_operand.vmem [shape: bf16[2,32,32], index: 6, kind: input, shape index: {}]
  %s7 = inlined_call_operand.vmem [shape: f32[2,1,32], index: 7, kind: input, shape index: {}]
  %s8 = inlined_call_operand.vmem [shape: f32[2,1,32], index: 8, kind: input, shape index: {}]
  %s9 = inlined_call_operand.vmem [shape: f32[2,1,32], index: 9, kind: input, shape index: {}]
  %s10 = inlined_call_operand.vmem [shape: bf16[2,32,64], index: 10, kind: input, shape index: {}]
  %s11 = inlined_call_operand.vmem [shape: f32[2,1,64], index: 11, kind: input, shape index: {}]
  %s12 = inlined_call_operand.vmem [shape: bf16[2,64,32], index: 12, kind: input, shape index: {}]
  %s13 = inlined_call_operand.vmem [shape: f32[2,1,32], index: 13, kind: input, shape index: {}]
  %s14 = inlined_call_operand.vmem [shape: f32[2,1,32], index: 14, kind: input, shape index: {}]
  %s15 = inlined_call_operand.vmem [shape: f32[2,1,32], index: 15, kind: input, shape index: {}]
  %s16 = inlined_call_operand.vmem [shape: bf16[16,32], index: 16, kind: output, shape index: {}]
  %s17 = sld [smem:[#allocation0]]
  $region105: #{kadapter_forward.2} parent=0
    _
  %s19 = ssub.s32 1, %s17
  %s20 = scalar_select 0, %s19, %s17
  loop: start=0, step=1, limit=4
  $region2: #{kadapter_forward.2} parent=0 // loop_pre_header
    _
  $region3: #{kadapter_forward.2} parent=0 // loop_header
    %s22 = sphi 0, %s26
    %p23 = scmp.ge.s32.totalorder %s22, 4
    %s30 = sphi 0, %s30
    %s32 = sphi 0, %s30
    %s33 = sphi 0, %s32
    %s47 = sphi 0, %s33
    %s51 = sphi 0, %s51
    %s53 = sphi 0, %s51
    %s54 = sphi 0, %s53
    %s68 = sphi 0, %s54
    %s72 = sphi 0, %s72
    %s74 = sphi 0, %s72
    %s75 = sphi 0, %s74
    %s89 = sphi 0, %s75
    %s93 = sphi 0, %s93
    %s95 = sphi 0, %s93
    %s96 = sphi 0, %s95
    %s110 = sphi 0, %s96
    %s116 = sphi 0, %s118
    %s119 = sphi 0, %s116
    %s120 = sphi 0, %s119
    %s136 = sphi 0, %s120
    %s142 = sphi 0, %s144
    %s145 = sphi 0, %s142
    %s146 = sphi 0, %s145
    %s162 = sphi 0, %s146
    %s168 = sphi 0, %s170
    %s171 = sphi 0, %s168
    %s172 = sphi 0, %s171
    %s188 = sphi 0, %s172
    %s194 = sphi 0, %s196
    %s197 = sphi 0, %s194
    %s198 = sphi 0, %s197
    %s214 = sphi 0, %s198
    %s220 = sphi 0, %s222
    %s223 = sphi 0, %s220
    %s224 = sphi 0, %s223
    %s240 = sphi 0, %s224
    %s246 = sphi 0, %s248
    %s249 = sphi 0, %s246
    %s250 = sphi 0, %s249
    %s266 = sphi 0, %s250
    %s272 = sphi 0, %s274
    %s275 = sphi 0, %s272
    %s276 = sphi 0, %s275
    %s292 = sphi 0, %s276
    %s298 = sphi 0, %s300
    %s301 = sphi 0, %s298
    %s302 = sphi 0, %s301
    %s318 = sphi 0, %s302
    %s324 = sphi 0, %s326
    %s327 = sphi 0, %s324
    %s328 = sphi 0, %s327
    %s344 = sphi 0, %s328
    %s350 = sphi 0, %s352
    %s353 = sphi 0, %s350
    %s354 = sphi 0, %s353
    %s370 = sphi 0, %s354
    %s376 = sphi 0, %s378
    %s379 = sphi 0, %s376
    %s380 = sphi 0, %s379
    %s396 = sphi 0, %s380
    %s402 = sphi 0, %s404
    %s405 = sphi 0, %s402
    %s406 = sphi 0, %s405
    %s422 = sphi 0, %s406
    %s426 = sphi 0, %s426
    %s428 = sphi 0, %s426
    %s429 = sphi 0, %s428
    %s443 = sphi 0, %s429
  $region4: #{kadapter_forward.2} parent=0 // loop_header_branch
    %25 = sbr.rel (%p23) target = $region8
  $region5: #{kadapter_forward.2} parent=0 // loop_body
    %s27 = ssub.s32 %s22, 1
    %s28 = ssub.s32 %s22, 2
    %s29 = sadd.s32 %s22, 1
    %s31 = sadd.s32 %s30, 1
    %p34 = scmp.eq.s32.totalorder %s22, 1
    %p35 = scmp.ne.s32.totalorder %s30, %s32
    %p36 = scmp.eq.s32.totalorder %s22, 0
    %p37 = por %p35, %p36
    %p38 = scmp.ne.s32.totalorder %s30, %s32
    %p39 = scmp.eq.s32.totalorder %s27, 1
    %p40 = por %p38, %p39
    %p41 = scmp.ne.s32.totalorder %s32, %s33
    %p42 = scmp.eq.s32.totalorder %s27, 0
    %p43 = por %p41, %p42
    %p44 = scmp.ne.s32.totalorder %s32, %s33
    %p45 = scmp.eq.s32.totalorder %s28, 1
    %p46 = por %p44, %p45
    %p48 = scmp.ne.s32.totalorder %s33, %s47
    %p49 = scmp.eq.s32.totalorder %s28, 0
    %p50 = por %p48, %p49
    %s52 = sadd.s32 %s51, 1
    %p55 = scmp.eq.s32.totalorder %s22, 1
    %p56 = scmp.ne.s32.totalorder %s51, %s53
    %p57 = scmp.eq.s32.totalorder %s22, 0
    %p58 = por %p56, %p57
    %p59 = scmp.ne.s32.totalorder %s51, %s53
    %p60 = scmp.eq.s32.totalorder %s27, 1
    %p61 = por %p59, %p60
    %p62 = scmp.ne.s32.totalorder %s53, %s54
    %p63 = scmp.eq.s32.totalorder %s27, 0
    %p64 = por %p62, %p63
    %p65 = scmp.ne.s32.totalorder %s53, %s54
    %p66 = scmp.eq.s32.totalorder %s28, 1
    %p67 = por %p65, %p66
    %p69 = scmp.ne.s32.totalorder %s54, %s68
    %p70 = scmp.eq.s32.totalorder %s28, 0
    %p71 = por %p69, %p70
    %s73 = sadd.s32 %s72, 1
    %p76 = scmp.eq.s32.totalorder %s22, 1
    %p77 = scmp.ne.s32.totalorder %s72, %s74
    %p78 = scmp.eq.s32.totalorder %s22, 0
    %p79 = por %p77, %p78
    %p80 = scmp.ne.s32.totalorder %s72, %s74
    %p81 = scmp.eq.s32.totalorder %s27, 1
    %p82 = por %p80, %p81
    %p83 = scmp.ne.s32.totalorder %s74, %s75
    %p84 = scmp.eq.s32.totalorder %s27, 0
    %p85 = por %p83, %p84
    %p86 = scmp.ne.s32.totalorder %s74, %s75
    %p87 = scmp.eq.s32.totalorder %s28, 1
    %p88 = por %p86, %p87
    %p90 = scmp.ne.s32.totalorder %s75, %s89
    %p91 = scmp.eq.s32.totalorder %s28, 0
    %p92 = por %p90, %p91
    %s94 = sadd.s32 %s93, 1
    %p97 = scmp.eq.s32.totalorder %s22, 1
    %p98 = scmp.ne.s32.totalorder %s93, %s95
    %p99 = scmp.eq.s32.totalorder %s22, 0
    %p100 = por %p98, %p99
    %p101 = scmp.ne.s32.totalorder %s93, %s95
    %p102 = scmp.eq.s32.totalorder %s27, 1
    %p103 = por %p101, %p102
    %p104 = scmp.ne.s32.totalorder %s95, %s96
    %p105 = scmp.eq.s32.totalorder %s27, 0
    %p106 = por %p104, %p105
    %p107 = scmp.ne.s32.totalorder %s95, %s96
    %p108 = scmp.eq.s32.totalorder %s28, 1
    %p109 = por %p107, %p108
    %p111 = scmp.ne.s32.totalorder %s96, %s110
    %p112 = scmp.eq.s32.totalorder %s28, 0
    %p113 = por %p111, %p112
    %s114 = ssub.s32 %s22, %s29
    %p115 = scmp.eq.s32.totalorder %s114, 0
    %s117 = sadd.s32 %s116, 1
    %s118 = scalar_select %p115, %s116, %s117
    %p121 = pneg %p115
    %p122 = scmp.eq.s32.totalorder %s22, 1
    %p123 = por %p121, %p122
    %p124 = scmp.ne.s32.totalorder %s116, %s119
    %p125 = scmp.eq.s32.totalorder %s22, 0
    %p126 = por %p124, %p125
    %p127 = scmp.ne.s32.totalorder %s116, %s119
    %p128 = scmp.eq.s32.totalorder %s27, 1
    %p129 = por %p127, %p128
    %p130 = scmp.ne.s32.totalorder %s119, %s120
    %p131 = scmp.eq.s32.totalorder %s27, 0
    %p132 = por %p130, %p131
    %p133 = scmp.ne.s32.totalorder %s119, %s120
    %p134 = scmp.eq.s32.totalorder %s28, 1
    %p135 = por %p133, %p134
    %p137 = scmp.ne.s32.totalorder %s120, %s136
    %p138 = scmp.eq.s32.totalorder %s28, 0
    %p139 = por %p137, %p138
    %s140 = ssub.s32 %s22, %s29
    %p141 = scmp.eq.s32.totalorder %s140, 0
    %s143 = sadd.s32 %s142, 1
    %s144 = scalar_select %p141, %s142, %s143
    %p147 = pneg %p141
    %p148 = scmp.eq.s32.totalorder %s22, 1
    %p149 = por %p147, %p148
    %p150 = scmp.ne.s32.totalorder %s142, %s145
    %p151 = scmp.eq.s32.totalorder %s22, 0
    %p152 = por %p150, %p151
    %p153 = scmp.ne.s32.totalorder %s142, %s145
    %p154 = scmp.eq.s32.totalorder %s27, 1
    %p155 = por %p153, %p154
    %p156 = scmp.ne.s32.totalorder %s145, %s146
    %p157 = scmp.eq.s32.totalorder %s27, 0
    %p158 = por %p156, %p157
    %p159 = scmp.ne.s32.totalorder %s145, %s146
    %p160 = scmp.eq.s32.totalorder %s28, 1
    %p161 = por %p159, %p160
    %p163 = scmp.ne.s32.totalorder %s146, %s162
    %p164 = scmp.eq.s32.totalorder %s28, 0
    %p165 = por %p163, %p164
    %s166 = ssub.s32 %s22, %s29
    %p167 = scmp.eq.s32.totalorder %s166, 0
    %s169 = sadd.s32 %s168, 1
    %s170 = scalar_select %p167, %s168, %s169
    %p173 = pneg %p167
    %p174 = scmp.eq.s32.totalorder %s22, 1
    %p175 = por %p173, %p174
    %p176 = scmp.ne.s32.totalorder %s168, %s171
    %p177 = scmp.eq.s32.totalorder %s22, 0
    %p178 = por %p176, %p177
    %p179 = scmp.ne.s32.totalorder %s168, %s171
    %p180 = scmp.eq.s32.totalorder %s27, 1
    %p181 = por %p179, %p180
    %p182 = scmp.ne.s32.totalorder %s171, %s172
    %p183 = scmp.eq.s32.totalorder %s27, 0
    %p184 = por %p182, %p183
    %p185 = scmp.ne.s32.totalorder %s171, %s172
    %p186 = scmp.eq.s32.totalorder %s28, 1
    %p187 = por %p185, %p186
    %p189 = scmp.ne.s32.totalorder %s172, %s188
    %p190 = scmp.eq.s32.totalorder %s28, 0
    %p191 = por %p189, %p190
    %s192 = ssub.s32 %s22, %s29
    %p193 = scmp.eq.s32.totalorder %s192, 0
    %s195 = sadd.s32 %s194, 1
    %s196 = scalar_select %p193, %s194, %s195
    %p199 = pneg %p193
    %p200 = scmp.eq.s32.totalorder %s22, 1
    %p201 = por %p199, %p200
    %p202 = scmp.ne.s32.totalorder %s194, %s197
    %p203 = scmp.eq.s32.totalorder %s22, 0
    %p204 = por %p202, %p203
    %p205 = scmp.ne.s32.totalorder %s194, %s197
    %p206 = scmp.eq.s32.totalorder %s27, 1
    %p207 = por %p205, %p206
    %p208 = scmp.ne.s32.totalorder %s197, %s198
    %p209 = scmp.eq.s32.totalorder %s27, 0
    %p210 = por %p208, %p209
    %p211 = scmp.ne.s32.totalorder %s197, %s198
    %p212 = scmp.eq.s32.totalorder %s28, 1
    %p213 = por %p211, %p212
    %p215 = scmp.ne.s32.totalorder %s198, %s214
    %p216 = scmp.eq.s32.totalorder %s28, 0
    %p217 = por %p215, %p216
    %s218 = ssub.s32 %s22, %s29
    %p219 = scmp.eq.s32.totalorder %s218, 0
    %s221 = sadd.s32 %s220, 1
    %s222 = scalar_select %p219, %s220, %s221
    %p225 = pneg %p219
    %p226 = scmp.eq.s32.totalorder %s22, 1
    %p227 = por %p225, %p226
    %p228 = scmp.ne.s32.totalorder %s220, %s223
    %p229 = scmp.eq.s32.totalorder %s22, 0
    %p230 = por %p228, %p229
    %p231 = scmp.ne.s32.totalorder %s220, %s223
    %p232 = scmp.eq.s32.totalorder %s27, 1
    %p233 = por %p231, %p232
    %p234 = scmp.ne.s32.totalorder %s223, %s224
    %p235 = scmp.eq.s32.totalorder %s27, 0
    %p236 = por %p234, %p235
    %p237 = scmp.ne.s32.totalorder %s223, %s224
    %p238 = scmp.eq.s32.totalorder %s28, 1
    %p239 = por %p237, %p238
    %p241 = scmp.ne.s32.totalorder %s224, %s240
    %p242 = scmp.eq.s32.totalorder %s28, 0
    %p243 = por %p241, %p242
    %s244 = ssub.s32 %s22, %s29
    %p245 = scmp.eq.s32.totalorder %s244, 0
    %s247 = sadd.s32 %s246, 1
    %s248 = scalar_select %p245, %s246, %s247
    %p251 = pneg %p245
    %p252 = scmp.eq.s32.totalorder %s22, 1
    %p253 = por %p251, %p252
    %p254 = scmp.ne.s32.totalorder %s246, %s249
    %p255 = scmp.eq.s32.totalorder %s22, 0
    %p256 = por %p254, %p255
    %p257 = scmp.ne.s32.totalorder %s246, %s249
    %p258 = scmp.eq.s32.totalorder %s27, 1
    %p259 = por %p257, %p258
    %p260 = scmp.ne.s32.totalorder %s249, %s250
    %p261 = scmp.eq.s32.totalorder %s27, 0
    %p262 = por %p260, %p261
    %p263 = scmp.ne.s32.totalorder %s249, %s250
    %p264 = scmp.eq.s32.totalorder %s28, 1
    %p265 = por %p263, %p264
    %p267 = scmp.ne.s32.totalorder %s250, %s266
    %p268 = scmp.eq.s32.totalorder %s28, 0
    %p269 = por %p267, %p268
    %s270 = ssub.s32 %s22, %s29
    %p271 = scmp.eq.s32.totalorder %s270, 0
    %s273 = sadd.s32 %s272, 1
    %s274 = scalar_select %p271, %s272, %s273
    %p277 = pneg %p271
    %p278 = scmp.eq.s32.totalorder %s22, 1
    %p279 = por %p277, %p278
    %p280 = scmp.ne.s32.totalorder %s272, %s275
    %p281 = scmp.eq.s32.totalorder %s22, 0
    %p282 = por %p280, %p281
    %p283 = scmp.ne.s32.totalorder %s272, %s275
    %p284 = scmp.eq.s32.totalorder %s27, 1
    %p285 = por %p283, %p284
    %p286 = scmp.ne.s32.totalorder %s275, %s276
    %p287 = scmp.eq.s32.totalorder %s27, 0
    %p288 = por %p286, %p287
    %p289 = scmp.ne.s32.totalorder %s275, %s276
    %p290 = scmp.eq.s32.totalorder %s28, 1
    %p291 = por %p289, %p290
    %p293 = scmp.ne.s32.totalorder %s276, %s292
    %p294 = scmp.eq.s32.totalorder %s28, 0
    %p295 = por %p293, %p294
    %s296 = ssub.s32 %s22, %s29
    %p297 = scmp.eq.s32.totalorder %s296, 0
    %s299 = sadd.s32 %s298, 1
    %s300 = scalar_select %p297, %s298, %s299
    %p303 = pneg %p297
    %p304 = scmp.eq.s32.totalorder %s22, 1
    %p305 = por %p303, %p304
    %p306 = scmp.ne.s32.totalorder %s298, %s301
    %p307 = scmp.eq.s32.totalorder %s22, 0
    %p308 = por %p306, %p307
    %p309 = scmp.ne.s32.totalorder %s298, %s301
    %p310 = scmp.eq.s32.totalorder %s27, 1
    %p311 = por %p309, %p310
    %p312 = scmp.ne.s32.totalorder %s301, %s302
    %p313 = scmp.eq.s32.totalorder %s27, 0
    %p314 = por %p312, %p313
    %p315 = scmp.ne.s32.totalorder %s301, %s302
    %p316 = scmp.eq.s32.totalorder %s28, 1
    %p317 = por %p315, %p316
    %p319 = scmp.ne.s32.totalorder %s302, %s318
    %p320 = scmp.eq.s32.totalorder %s28, 0
    %p321 = por %p319, %p320
    %s322 = ssub.s32 %s22, %s29
    %p323 = scmp.eq.s32.totalorder %s322, 0
    %s325 = sadd.s32 %s324, 1
    %s326 = scalar_select %p323, %s324, %s325
    %p329 = pneg %p323
    %p330 = scmp.eq.s32.totalorder %s22, 1
    %p331 = por %p329, %p330
    %p332 = scmp.ne.s32.totalorder %s324, %s327
    %p333 = scmp.eq.s32.totalorder %s22, 0
    %p334 = por %p332, %p333
    %p335 = scmp.ne.s32.totalorder %s324, %s327
    %p336 = scmp.eq.s32.totalorder %s27, 1
    %p337 = por %p335, %p336
    %p338 = scmp.ne.s32.totalorder %s327, %s328
    %p339 = scmp.eq.s32.totalorder %s27, 0
    %p340 = por %p338, %p339
    %p341 = scmp.ne.s32.totalorder %s327, %s328
    %p342 = scmp.eq.s32.totalorder %s28, 1
    %p343 = por %p341, %p342
    %p345 = scmp.ne.s32.totalorder %s328, %s344
    %p346 = scmp.eq.s32.totalorder %s28, 0
    %p347 = por %p345, %p346
    %s348 = ssub.s32 %s22, %s29
    %p349 = scmp.eq.s32.totalorder %s348, 0
    %s351 = sadd.s32 %s350, 1
    %s352 = scalar_select %p349, %s350, %s351
    %p355 = pneg %p349
    %p356 = scmp.eq.s32.totalorder %s22, 1
    %p357 = por %p355, %p356
    %p358 = scmp.ne.s32.totalorder %s350, %s353
    %p359 = scmp.eq.s32.totalorder %s22, 0
    %p360 = por %p358, %p359
    %p361 = scmp.ne.s32.totalorder %s350, %s353
    %p362 = scmp.eq.s32.totalorder %s27, 1
    %p363 = por %p361, %p362
    %p364 = scmp.ne.s32.totalorder %s353, %s354
    %p365 = scmp.eq.s32.totalorder %s27, 0
    %p366 = por %p364, %p365
    %p367 = scmp.ne.s32.totalorder %s353, %s354
    %p368 = scmp.eq.s32.totalorder %s28, 1
    %p369 = por %p367, %p368
    %p371 = scmp.ne.s32.totalorder %s354, %s370
    %p372 = scmp.eq.s32.totalorder %s28, 0
    %p373 = por %p371, %p372
    %s374 = ssub.s32 %s22, %s29
    %p375 = scmp.eq.s32.totalorder %s374, 0
    %s377 = sadd.s32 %s376, 1
    %s378 = scalar_select %p375, %s376, %s377
    %p381 = pneg %p375
    %p382 = scmp.eq.s32.totalorder %s22, 1
    %p383 = por %p381, %p382
    %p384 = scmp.ne.s32.totalorder %s376, %s379
    %p385 = scmp.eq.s32.totalorder %s22, 0
    %p386 = por %p384, %p385
    %p387 = scmp.ne.s32.totalorder %s376, %s379
    %p388 = scmp.eq.s32.totalorder %s27, 1
    %p389 = por %p387, %p388
    %p390 = scmp.ne.s32.totalorder %s379, %s380
    %p391 = scmp.eq.s32.totalorder %s27, 0
    %p392 = por %p390, %p391
    %p393 = scmp.ne.s32.totalorder %s379, %s380
    %p394 = scmp.eq.s32.totalorder %s28, 1
    %p395 = por %p393, %p394
    %p397 = scmp.ne.s32.totalorder %s380, %s396
    %p398 = scmp.eq.s32.totalorder %s28, 0
    %p399 = por %p397, %p398
    %s400 = ssub.s32 %s22, %s29
    %p401 = scmp.eq.s32.totalorder %s400, 0
    %s403 = sadd.s32 %s402, 1
    %s404 = scalar_select %p401, %s402, %s403
    %p407 = pneg %p401
    %p408 = scmp.eq.s32.totalorder %s22, 1
    %p409 = por %p407, %p408
    %p410 = scmp.ne.s32.totalorder %s402, %s405
    %p411 = scmp.eq.s32.totalorder %s22, 0
    %p412 = por %p410, %p411
    %p413 = scmp.ne.s32.totalorder %s402, %s405
    %p414 = scmp.eq.s32.totalorder %s27, 1
    %p415 = por %p413, %p414
    %p416 = scmp.ne.s32.totalorder %s405, %s406
    %p417 = scmp.eq.s32.totalorder %s27, 0
    %p418 = por %p416, %p417
    %p419 = scmp.ne.s32.totalorder %s405, %s406
    %p420 = scmp.eq.s32.totalorder %s28, 1
    %p421 = por %p419, %p420
    %p423 = scmp.ne.s32.totalorder %s406, %s422
    %p424 = scmp.eq.s32.totalorder %s28, 0
    %p425 = por %p423, %p424
    %s427 = sadd.s32 %s426, 1
    %p430 = scmp.eq.s32.totalorder %s22, 1
    %p431 = scmp.ne.s32.totalorder %s426, %s428
    %p432 = scmp.eq.s32.totalorder %s22, 0
    %p433 = por %p431, %p432
    %p434 = scmp.ne.s32.totalorder %s426, %s428
    %p435 = scmp.eq.s32.totalorder %s27, 1
    %p436 = por %p434, %p435
    %p437 = scmp.ne.s32.totalorder %s428, %s429
    %p438 = scmp.eq.s32.totalorder %s27, 0
    %p439 = por %p437, %p438
    %p440 = scmp.ne.s32.totalorder %s428, %s429
    %p441 = scmp.eq.s32.totalorder %s28, 1
    %p442 = por %p440, %p441
    %p444 = scmp.ne.s32.totalorder %s429, %s443
    %p445 = scmp.eq.s32.totalorder %s28, 0
    %p446 = por %p444, %p445
    %p447 = scmp.le.s32.totalorder 1, %s22
    %p448 = scmp.lt.s32.totalorder %s22, 3
    %p449 = pnand %p447, %p448
    %p450 = pneg %p449
    // Predicated region
    $region9: #{kadapter_forward.2} parent=5 // pred_check
      _
    $region10: #{kadapter_forward.2} parent=5 // pred_check_branch
      %452 = sbr.rel (%p449) target = $region12
    $region11: #{kadapter_forward.2} parent=5 // pred_region
      %s453 = ssub.s32 %s22, 1
      // Predicated region
      $region13: #{kadapter_forward.2} parent=11 // pred_check
        %p454 = pneg %p43
      $region14: #{kadapter_forward.2} parent=11 // pred_check_branch
        %456 = sbr.rel (%p454) target = $region16
      $region15: #{kadapter_forward.2} parent=11 // pred_region
        _
      $region16: #{kadapter_forward.2} parent=11 // pred_fallthru
        _
      // Predicated region
      $region17: #{kadapter_forward.2} parent=11 // pred_check
        %p457 = pneg %p64
      $region18: #{kadapter_forward.2} parent=11 // pred_check_branch
        %459 = sbr.rel (%p457) target = $region20
      $region19: #{kadapter_forward.2} parent=11 // pred_region
        _
      $region20: #{kadapter_forward.2} parent=11 // pred_fallthru
        _
      // Predicated region
      $region21: #{kadapter_forward.2} parent=11 // pred_check
        %p460 = pneg %p85
      $region22: #{kadapter_forward.2} parent=11 // pred_check_branch
        %462 = sbr.rel (%p460) target = $region24
      $region23: #{kadapter_forward.2} parent=11 // pred_region
        _
      $region24: #{kadapter_forward.2} parent=11 // pred_fallthru
        _
      // Predicated region
      $region25: #{kadapter_forward.2} parent=11 // pred_check
        %p463 = pneg %p106
      $region26: #{kadapter_forward.2} parent=11 // pred_check_branch
        %465 = sbr.rel (%p463) target = $region28
      $region27: #{kadapter_forward.2} parent=11 // pred_region
        _
      $region28: #{kadapter_forward.2} parent=11 // pred_fallthru
        _
    $region12: #{kadapter_forward.2} parent=5 // pred_fallthru
      _
    %p466 = scmp.lt.s32.totalorder %s22, 2
    // Predicated region
    $region29: #{kadapter_forward.2} parent=5 // pred_check
      %p467 = pneg %p466
    $region30: #{kadapter_forward.2} parent=5 // pred_check_branch
      %469 = sbr.rel (%p467) target = $region32
    $region31: #{kadapter_forward.2} parent=5 // pred_region
      // Predicated region
      $region33: #{kadapter_forward.2} parent=31 // pred_check
        %p470 = pneg %p126
      $region34: #{kadapter_forward.2} parent=31 // pred_check_branch
        %472 = sbr.rel (%p470) target = $region36
      $region35: #{kadapter_forward.2} parent=31 // pred_region
        %p473 = scmp.lt.s32.totalorder %s22, 1
        %s474 = scalar_select %p473, %s22, 1
        %s475 = smul.addr %s474, 4
        %s476 = smul.addr %s475, 4
        %s477 = scalar_lea.vmem %s4, %s476
      $region36: #{kadapter_forward.2} parent=31 // pred_fallthru
        _
      // Predicated region
      $region37: #{kadapter_forward.2} parent=31 // pred_check
        %p478 = pneg %p152
      $region38: #{kadapter_forward.2} parent=31 // pred_check_branch
        %480 = sbr.rel (%p478) target = $region40
      $region39: #{kadapter_forward.2} parent=31 // pred_region
        %p481 = scmp.lt.s32.totalorder %s22, 1
        %s482 = scalar_select %p481, %s22, 1
        %s483 = scalar_lea.vmem %s5, %s482
      $region40: #{kadapter_forward.2} parent=31 // pred_fallthru
        _
      // Predicated region
      $region41: #{kadapter_forward.2} parent=31 // pred_check
        %p484 = pneg %p178
      $region42: #{kadapter_forward.2} parent=31 // pred_check_branch
        %486 = sbr.rel (%p484) target = $region44
      $region43: #{kadapter_forward.2} parent=31 // pred_region
        %p487 = scmp.lt.s32.totalorder %s22, 1
        %s488 = scalar_select %p487, %s22, 1
        %s489 = smul.addr %s488, 4
        %s490 = smul.addr %s489, 4
        %s491 = scalar_lea.vmem %s6, %s490
      $region44: #{kadapter_forward.2} parent=31 // pred_fallthru
        _
      // Predicated region
      $region45: #{kadapter_forward.2} parent=31 // pred_check
        %p492 = pneg %p204
      $region46: #{kadapter_forward.2} parent=31 // pred_check_branch
        %494 = sbr.rel (%p492) target = $region48
      $region47: #{kadapter_forward.2} parent=31 // pred_region
        %p495 = scmp.lt.s32.totalorder %s22, 1
        %s496 = scalar_select %p495, %s22, 1
        %s497 = scalar_lea.vmem %s7, %s496
      $region48: #{kadapter_forward.2} parent=31 // pred_fallthru
        _
      // Predicated region
      $region49: #{kadapter_forward.2} parent=31 // pred_check
        %p498 = pneg %p230
      $region50: #{kadapter_forward.2} parent=31 // pred_check_branch
        %500 = sbr.rel (%p498) target = $region52
      $region51: #{kadapter_forward.2} parent=31 // pred_region
        %p501 = scmp.lt.s32.totalorder %s22, 1
        %s502 = scalar_select %p501, %s22, 1
        %s503 = scalar_lea.vmem %s8, %s502
      $region52: #{kadapter_forward.2} parent=31 // pred_fallthru
        _
      // Predicated region
      $region53: #{kadapter_forward.2} parent=31 // pred_check
        %p504 = pneg %p256
      $region54: #{kadapter_forward.2} parent=31 // pred_check_branch
        %506 = sbr.rel (%p504) target = $region56
      $region55: #{kadapter_forward.2} parent=31 // pred_region
        %p507 = scmp.lt.s32.totalorder %s22, 1
        %s508 = scalar_select %p507, %s22, 1
        %s509 = scalar_lea.vmem %s9, %s508
      $region56: #{kadapter_forward.2} parent=31 // pred_fallthru
        _
      // Predicated region
      $region57: #{kadapter_forward.2} parent=31 // pred_check
        %p510 = pneg %p282
      $region58: #{kadapter_forward.2} parent=31 // pred_check_branch
        %512 = sbr.rel (%p510) target = $region60
      $region59: #{kadapter_forward.2} parent=31 // pred_region
        %p513 = scmp.lt.s32.totalorder %s22, 1
        %s514 = scalar_select %p513, %s22, 1
        %s515 = smul.addr %s514, 4
        %s516 = smul.addr %s515, 4
        %s517 = scalar_lea.vmem %s10, %s516
      $region60: #{kadapter_forward.2} parent=31 // pred_fallthru
        _
      // Predicated region
      $region61: #{kadapter_forward.2} parent=31 // pred_check
        %p518 = pneg %p308
      $region62: #{kadapter_forward.2} parent=31 // pred_check_branch
        %520 = sbr.rel (%p518) target = $region64
      $region63: #{kadapter_forward.2} parent=31 // pred_region
        %p521 = scmp.lt.s32.totalorder %s22, 1
        %s522 = scalar_select %p521, %s22, 1
        %s523 = scalar_lea.vmem %s11, %s522
      $region64: #{kadapter_forward.2} parent=31 // pred_fallthru
        _
      // Predicated region
      $region65: #{kadapter_forward.2} parent=31 // pred_check
        %p524 = pneg %p334
      $region66: #{kadapter_forward.2} parent=31 // pred_check_branch
        %526 = sbr.rel (%p524) target = $region68
      $region67: #{kadapter_forward.2} parent=31 // pred_region
        %p527 = scmp.lt.s32.totalorder %s22, 1
        %s528 = scalar_select %p527, %s22, 1
        %s529 = smul.addr %s528, 8
        %s530 = smul.addr %s529, 4
        %s531 = scalar_lea.vmem %s12, %s530
      $region68: #{kadapter_forward.2} parent=31 // pred_fallthru
        _
      // Predicated region
      $region69: #{kadapter_forward.2} parent=31 // pred_check
        %p532 = pneg %p360
      $region70: #{kadapter_forward.2} parent=31 // pred_check_branch
        %534 = sbr.rel (%p532) target = $region72
      $region71: #{kadapter_forward.2} parent=31 // pred_region
        %p535 = scmp.lt.s32.totalorder %s22, 1
        %s536 = scalar_select %p535, %s22, 1
        %s537 = scalar_lea.vmem %s13, %s536
      $region72: #{kadapter_forward.2} parent=31 // pred_fallthru
        _
      // Predicated region
      $region73: #{kadapter_forward.2} parent=31 // pred_check
        %p538 = pneg %p386
      $region74: #{kadapter_forward.2} parent=31 // pred_check_branch
        %540 = sbr.rel (%p538) target = $region76
      $region75: #{kadapter_forward.2} parent=31 // pred_region
        %p541 = scmp.lt.s32.totalorder %s22, 1
        %s542 = scalar_select %p541, %s22, 1
        %s543 = scalar_lea.vmem %s14, %s542
      $region76: #{kadapter_forward.2} parent=31 // pred_fallthru
        _
      // Predicated region
      $region77: #{kadapter_forward.2} parent=31 // pred_check
        %p544 = pneg %p412
      $region78: #{kadapter_forward.2} parent=31 // pred_check_branch
        %546 = sbr.rel (%p544) target = $region80
      $region79: #{kadapter_forward.2} parent=31 // pred_region
        %p547 = scmp.lt.s32.totalorder %s22, 1
        %s548 = scalar_select %p547, %s22, 1
        %s549 = scalar_lea.vmem %s15, %s548
      $region80: #{kadapter_forward.2} parent=31 // pred_fallthru
        _
    $region32: #{kadapter_forward.2} parent=5 // pred_fallthru
      _
    %p550 = scmp.le.s32.totalorder 1, %s22
    %p551 = scmp.lt.s32.totalorder %s22, 3
    %p552 = pnand %p550, %p551
    %p553 = pneg %p552
    // Predicated region
    $region81: #{kadapter_forward.2} parent=5 // pred_check
      _
    $region82: #{kadapter_forward.2} parent=5 // pred_check_branch
      %555 = sbr.rel (%p552) target = $region84
    $region83: #{kadapter_forward.2} parent=5 // pred_region
      %s556 = ssub.s32 %s22, 1
      %p557 = pneg %p43
      %p558 = pneg %p40
      %p559 = pneg %p64
      %p560 = pneg %p61
      %p561 = pneg %p85
      %p562 = pneg %p82
      %p563 = pneg %p106
      %p564 = pneg %p103
      %p565 = scmp.lt.s32.totalorder %s27, 1
      %s566 = scalar_select %p565, %s27, 1
      %s567 = smul.addr %s566, 4
      %s568 = smul.addr %s567, 4
      %s569 = scalar_lea.vmem %s4, %s568
      %p570 = pneg %p132
      %p571 = pneg %p129
      %p572 = scmp.lt.s32.totalorder %s27, 1
      %s573 = scalar_select %p572, %s27, 1
      %s574 = scalar_lea.vmem %s5, %s573
      %p575 = pneg %p158
      %p576 = pneg %p155
      %p577 = scmp.lt.s32.totalorder %s27, 1
      %s578 = scalar_select %p577, %s27, 1
      %s579 = smul.addr %s578, 4
      %s580 = smul.addr %s579, 4
      %s581 = scalar_lea.vmem %s6, %s580
      %p582 = pneg %p184
      %p583 = pneg %p181
      %p584 = scmp.lt.s32.totalorder %s27, 1
      %s585 = scalar_select %p584, %s27, 1
      %s586 = scalar_lea.vmem %s7, %s585
      %p587 = pneg %p210
      %p588 = pneg %p207
      %p589 = scmp.lt.s32.totalorder %s27, 1
      %s590 = scalar_select %p589, %s27, 1
      %s591 = scalar_lea.vmem %s8, %s590
      %p592 = pneg %p236
      %p593 = pneg %p233
      %p594 = scmp.lt.s32.totalorder %s27, 1
      %s595 = scalar_select %p594, %s27, 1
      %s596 = scalar_lea.vmem %s9, %s595
      %p597 = pneg %p262
      %p598 = pneg %p259
      %p599 = scmp.lt.s32.totalorder %s27, 1
      %s600 = scalar_select %p599, %s27, 1
      %s601 = smul.addr %s600, 4
      %s602 = smul.addr %s601, 4
      %s603 = scalar_lea.vmem %s10, %s602
      %p604 = pneg %p288
      %p605 = pneg %p285
      %p606 = scmp.lt.s32.totalorder %s27, 1
      %s607 = scalar_select %p606, %s27, 1
      %s608 = scalar_lea.vmem %s11, %s607
      %p609 = pneg %p314
      %p610 = pneg %p311
      %p611 = scmp.lt.s32.totalorder %s27, 1
      %s612 = scalar_select %p611, %s27, 1
      %s613 = smul.addr %s612, 8
      %s614 = smul.addr %s613, 4
      %s615 = scalar_lea.vmem %s12, %s614
      %p616 = pneg %p340
      %p617 = pneg %p337
      %p618 = scmp.lt.s32.totalorder %s27, 1
      %s619 = scalar_select %p618, %s27, 1
      %s620 = scalar_lea.vmem %s13, %s619
      %p621 = pneg %p366
      %p622 = pneg %p363
      %p623 = scmp.lt.s32.totalorder %s27, 1
      %s624 = scalar_select %p623, %s27, 1
      %s625 = scalar_lea.vmem %s14, %s624
      %p626 = pneg %p392
      %p627 = pneg %p389
      %p628 = scmp.lt.s32.totalorder %s27, 1
      %s629 = scalar_select %p628, %s27, 1
      %s630 = scalar_lea.vmem %s15, %s629
      %p631 = pneg %p418
      %p632 = pneg %p415
      %p633 = pneg %p439
      %p634 = pneg %p436
      %p635 = scmp.lt.s32.totalorder %s27, 1
      %s636 = scalar_select %p635, %s27, 1
      %s637 = smul.addr %s636, 4
      %s638 = smul.addr %s637, 4
      %s639 = scalar_lea.vmem %s4, %s638
      %p640 = scmp.lt.s32.totalorder %s27, 1
      %s641 = scalar_select %p640, %s27, 1
      %s642 = scalar_lea.vmem %s5, %s641
      %p643 = scmp.lt.s32.totalorder %s27, 1
      %s644 = scalar_select %p643, %s27, 1
      %s645 = smul.addr %s644, 4
      %s646 = smul.addr %s645, 4
      %s647 = scalar_lea.vmem %s6, %s646
      %p648 = scmp.lt.s32.totalorder %s27, 1
      %s649 = scalar_select %p648, %s27, 1
      %s650 = scalar_lea.vmem %s7, %s649
      %p651 = scmp.lt.s32.totalorder %s27, 1
      %s652 = scalar_select %p651, %s27, 1
      %s653 = scalar_lea.vmem %s8, %s652
      %p654 = scmp.lt.s32.totalorder %s27, 1
      %s655 = scalar_select %p654, %s27, 1
      %s656 = scalar_lea.vmem %s9, %s655
      %p657 = scmp.lt.s32.totalorder %s27, 1
      %s658 = scalar_select %p657, %s27, 1
      %s659 = smul.addr %s658, 4
      %s660 = smul.addr %s659, 4
      %s661 = scalar_lea.vmem %s10, %s660
      %p662 = scmp.lt.s32.totalorder %s27, 1
      %s663 = scalar_select %p662, %s27, 1
      %s664 = scalar_lea.vmem %s11, %s663
      %p665 = scmp.lt.s32.totalorder %s27, 1
      %s666 = scalar_select %p665, %s27, 1
      %s667 = smul.addr %s666, 8
      %s668 = smul.addr %s667, 4
      %s669 = scalar_lea.vmem %s12, %s668
      %p670 = scmp.lt.s32.totalorder %s27, 1
      %s671 = scalar_select %p670, %s27, 1
      %s672 = scalar_lea.vmem %s13, %s671
      %p673 = scmp.lt.s32.totalorder %s27, 1
      %s674 = scalar_select %p673, %s27, 1
      %s675 = scalar_lea.vmem %s14, %s674
      %p676 = scmp.lt.s32.totalorder %s27, 1
      %s677 = scalar_select %p676, %s27, 1
      %s678 = scalar_lea.vmem %s15, %s677
      %p680 = scmp.eq.s32.totalorder %s27, 0
      // Predicated region
      $region85: #{kadapter_forward.2} parent=83 // pred_check
        %p681 = pneg %p680
      $region86: #{kadapter_forward.2} parent=83 // pred_check_branch
        %683 = sbr.rel (%p681) target = $region88
      $region87: #{kadapter_forward.2} parent=83 // pred_region
        %v684 = vld [vmem:[%s0] sm:$0xff]
        %v685 = vld [vmem:[%s0 + $0x8] sm:$0xff]
        %v686 = vld [vmem:[%s2] sm:$0x1]
        %v687 = vld [vmem:[%s3] sm:$0x1]
        %vm688 = vcmask 261120
        %v689 = vsel %vm688, %v684, 0.0
        %690 = vadd.xlane.f32.xlu0 %v689
        %v691 = vpop.xlane.xlu0 %690
        %v692 = vsel %vm688, %v685, 0.0
        %693 = vadd.xlane.f32.xlu0 %v692
        %v694 = vpop.xlane.xlu0 %693
        %v695 = vrcp.pop 32.0
        %v696 = vmul.f32 %v691, %v695
        %v697 = vmul.f32 %v694, %v695
        %v698 = vsub.f32 %v684, %v696
        %v699 = vsub.f32 %v685, %v697
        %v700 = vmul.f32 %v698, %v698
        %v701 = vmul.f32 %v699, %v699
        %v702 = vsel %vm688, %v700, 0.0
        %703 = vadd.xlane.f32.xlu0 %v702
        %v704 = vpop.xlane.xlu0 %703
        %v705 = vsel %vm688, %v701, 0.0
        %706 = vadd.xlane.f32.xlu0 %v705
        %v707 = vpop.xlane.xlu0 %706
        %v708 = vmul.f32 %v704, %v695
        %v709 = vmul.f32 %v707, %v695
        %v710 = vadd.f32 %v708, 1e-05
        %v711 = vadd.f32 %v709, 1e-05
        %v712 = vrsqrt.pop %v710
        %v713 = vrsqrt.pop %v711
        %v714 = vmul.f32 %v698, %v712
        %v715 = vmul.f32 %v699, %v713
        %v717 = vlaneseq
        %v718 = vshrl.u32 %v717, 7
        %v719 = vsub.s32 0, %v718
        %v720 = vrot.slane %v686, %v719
        %v722 = vmul.f32 %v714, %v720
        %v723 = vmul.f32 %v715, %v720
        %v725 = vlaneseq
        %v726 = vshrl.u32 %v725, 7
        %v727 = vsub.s32 0, %v726
        %v728 = vrot.slane %v687, %v727
        %v730 = vadd.f32 %v722, %v728
        %v731 = vadd.f32 %v723, %v728
        %732 = vst.msk [vmem:[#allocation2] sm:$0xff] %vm688, %v730
        %733 = vst.msk [vmem:[#allocation2 + $0x8] sm:$0xff] %vm688, %v731
      $region88: #{kadapter_forward.2} parent=83 // pred_fallthru
        _
      %v734 = vld [vmem:[#allocation2] sm:$0xff]
      %v735 = vld [vmem:[#allocation2 + $0x8] sm:$0xff]
      %v736 = vld [vmem:[%s639] sm:$0xf]
      %v737 = vld [vmem:[%s639 + $0x4] sm:$0xf]
      %v738 = vld [vmem:[%s639 + $0x8] sm:$0xf]
      %v739 = vld [vmem:[%s639 + $0xc] sm:$0xf]
      %v740 = vpack.c.bf16 %v735, %v734
      %v741 = vld [vmem:[%s642] sm:$0x1]
      %v743 = vlaneseq
      %v744 = vshrl.u32 %v743, 7
      %v745 = vsub.s32 0, %v744
      %v746 = vrot.slane %v741, %v745
      %v752 = vunpack.c.l.b16 %v736
      %v753 = vunpack.c.l.b16 %v737
      %v754 = vunpack.c.l.b16 %v738
      %v755 = vunpack.c.l.b16 %v739
      %v756 = vpack.c.b16 %v753, %v752
      %v757 = vpack.c.b16 %v755, %v754
      %vm760 = vcmask 261120
      %v762 = vsel %vm760, %v740, 0
      %764 = vmatprep.subr.bf16.mxu0 0
      %765 = vmatpush1.bf16.msra.mxu0 %v756
      %766 = vmatprep.subr.bf16.mxu0 0
      %767 = vmatpush1.bf16.msra.mxu0 %v757
      %768 = vmatprep.subr.bf16.mxu0 0
      %769 = vmatpush1.bf16.msra.mxu0 0
      %770 = vmatprep.subr.bf16.mxu0 0
      %771 = vmatpush1.bf16.msra.mxu0 0
      %772 = vmatprep.subr.bf16.mxu0 0
      %773 = vmatpush1.bf16.msra.mxu0 0
      %774 = vmatprep.subr.bf16.mxu0 0
      %775 = vmatpush1.bf16.msra.mxu0 0
      %776 = vmatprep.subr.bf16.mxu0 0
      %777 = vmatpush1.bf16.msra.mxu0 0
      %778 = vmatprep.subr.bf16.mxu0 0
      %779 = vmatpush1.bf16.msra.mxu0 0
      %780 = vmatprep.subr.bf16.mxu0 0
      %781 = vmatpush1.bf16.msra.mxu0 0
      %782 = vmatprep.subr.bf16.mxu0 0
      %783 = vmatpush1.bf16.msra.mxu0 0
      %784 = vmatprep.subr.bf16.mxu0 0
      %785 = vmatpush1.bf16.msra.mxu0 0
      %786 = vmatprep.subr.bf16.mxu0 0
      %787 = vmatpush1.bf16.msra.mxu0 0
      %788 = vmatprep.subr.bf16.mxu0 0
      %789 = vmatpush1.bf16.msra.mxu0 0
      %790 = vmatprep.subr.bf16.mxu0 0
      %791 = vmatpush1.bf16.msra.mxu0 0
      %792 = vmatprep.subr.bf16.mxu0 0
      %793 = vmatpush1.bf16.msra.mxu0 0
      %794 = vmatprep.subr.bf16.mxu0 0
      %795 = vmatpush1.bf16.msra.mxu0 0
      %796 = vmatprep.mubr.bf16.mxu0 0
      %797 = vmatmul.mubr.bf16.gmra.mrb[0].mxu0 %v762
      %v798 = vpop.f32.mrb[0].mxu0
      %v799 = vadd.f32 %v746, %v798
      %v800 = vpop.f32.mrb[0].mxu0
      %v801 = vpop.f32.mrb[0].mxu0
      %v802 = vadd.f32 %v746, %v801
      %v803 = vpop.f32.mrb[0].mxu0
      %804 = vdwg.mxu0
      %v805 = vmul.f32 %v799, 0.35355338
      %v806 = vmul.f32 %v802, 0.35355338
      %809 = vrot.lane.b32.xlu0 %v805, 120
      %v810 = vpop.permute.xlu0 %809
      %811 = vrot.lane.b32.xlu0 %v806, 120
      %v812 = vpop.permute.xlu0 %811
      %815 = vrot.lane.b32.xlu0 %v805, 112
      %v816 = vpop.permute.xlu0 %815
      %817 = vrot.lane.b32.xlu0 %v806, 112
      %v818 = vpop.permute.xlu0 %817
      %821 = vrot.lane.b32.xlu0 %v805, 104
      %v822 = vpop.permute.xlu0 %821
      %823 = vrot.lane.b32.xlu0 %v806, 104
      %v824 = vpop.permute.xlu0 %823
      %v827 = vcombine.low %v805, %v816
      %v828 = vcombine.high %v805, %v816
      %v830 = vunpack.c.l.s4 1983009808
      %v831 = vunpack.c.0.s8 %v830
      %v832 = vlaneseq
      %v833 = vshrl.u32 %v832, 7
      %v834 = vsub.s32 %v831, %v833
      %v835 = vrot.slane %v827, %v834
      %v837 = vunpack.c.l.s4 1983009808
      %v838 = vunpack.c.0.s8 %v837
      %v839 = vlaneseq
      %v840 = vshrl.u32 %v839, 7
      %v841 = vsub.s32 %v838, %v840
      %v842 = vrot.slane %v828, %v841
      %v843 = vcombine.low %v810, %v822
      %v844 = vcombine.high %v810, %v822
      %v846 = vunpack.c.l.s4 1983009808
      %v847 = vunpack.c.0.s8 %v846
      %v848 = vlaneseq
      %v849 = vshrl.u32 %v848, 7
      %v850 = vsub.s32 %v847, %v849
      %v851 = vrot.slane %v843, %v850
      %v853 = vunpack.c.l.s4 1983009808
      %v854 = vunpack.c.0.s8 %v853
      %v855 = vlaneseq
      %v856 = vshrl.u32 %v855, 7
      %v857 = vsub.s32 %v854, %v856
      %v858 = vrot.slane %v844, %v857
      %v859 = vcombine.low %v835, %v851
      %v860 = vcombine.high %v835, %v851
      %v862 = vunpack.c.l.s4 1934713408
      %v863 = vunpack.c.0.s8 %v862
      %v864 = vlaneseq
      %v865 = vshrl.u32 %v864, 7
      %v866 = vsub.s32 %v863, %v865
      %v867 = vrot.slane %v859, %v866
      %v869 = vunpack.c.l.s4 1934713408
      %v870 = vunpack.c.0.s8 %v869
      %v871 = vlaneseq
      %v872 = vshrl.u32 %v871, 7
      %v873 = vsub.s32 %v870, %v872
      %v874 = vrot.slane %v860, %v873
      %v875 = vcombine.low %v842, %v858
      %v876 = vcombine.high %v842, %v858
      %v878 = vunpack.c.l.s4 1934713408
      %v879 = vunpack.c.0.s8 %v878
      %v880 = vlaneseq
      %v881 = vshrl.u32 %v880, 7
      %v882 = vsub.s32 %v879, %v881
      %v883 = vrot.slane %v875, %v882
      %v885 = vunpack.c.l.s4 1934713408
      %v886 = vunpack.c.0.s8 %v885
      %v887 = vlaneseq
      %v888 = vshrl.u32 %v887, 7
      %v889 = vsub.s32 %v886, %v888
      %v890 = vrot.slane %v876, %v889
      %v891 = vcombine.high %v867, 0.0
      %v892 = vcombine.high %v874, 0.0
      %v893 = vcombine.high %v883, 0.0
      %v894 = vcombine.high %v890, 0.0
      %v895 = vcombine.low %v806, %v818
      %v896 = vcombine.high %v806, %v818
      %v898 = vunpack.c.l.s4 1983009808
      %v899 = vunpack.c.0.s8 %v898
      %v900 = vlaneseq
      %v901 = vshrl.u32 %v900, 7
      %v902 = vsub.s32 %v899, %v901
      %v903 = vrot.slane %v895, %v902
      %v905 = vunpack.c.l.s4 1983009808
      %v906 = vunpack.c.0.s8 %v905
      %v907 = vlaneseq
      %v908 = vshrl.u32 %v907, 7
      %v909 = vsub.s32 %v906, %v908
      %v910 = vrot.slane %v896, %v909
      %v911 = vcombine.low %v812, %v824
      %v912 = vcombine.high %v812, %v824
      %v914 = vunpack.c.l.s4 1983009808
      %v915 = vunpack.c.0.s8 %v914
      %v916 = vlaneseq
      %v917 = vshrl.u32 %v916, 7
      %v918 = vsub.s32 %v915, %v917
      %v919 = vrot.slane %v911, %v918
      %v921 = vunpack.c.l.s4 1983009808
      %v922 = vunpack.c.0.s8 %v921
      %v923 = vlaneseq
      %v924 = vshrl.u32 %v923, 7
      %v925 = vsub.s32 %v922, %v924
      %v926 = vrot.slane %v912, %v925
      %v927 = vcombine.low %v903, %v919
      %v928 = vcombine.high %v903, %v919
      %v930 = vunpack.c.l.s4 1934713408
      %v931 = vunpack.c.0.s8 %v930
      %v932 = vlaneseq
      %v933 = vshrl.u32 %v932, 7
      %v934 = vsub.s32 %v931, %v933
      %v935 = vrot.slane %v927, %v934
      %v937 = vunpack.c.l.s4 1934713408
      %v938 = vunpack.c.0.s8 %v937
      %v939 = vlaneseq
      %v940 = vshrl.u32 %v939, 7
      %v941 = vsub.s32 %v938, %v940
      %v942 = vrot.slane %v928, %v941
      %v943 = vcombine.low %v910, %v926
      %v944 = vcombine.high %v910, %v926
      %v946 = vunpack.c.l.s4 1934713408
      %v947 = vunpack.c.0.s8 %v946
      %v948 = vlaneseq
      %v949 = vshrl.u32 %v948, 7
      %v950 = vsub.s32 %v947, %v949
      %v951 = vrot.slane %v943, %v950
      %v953 = vunpack.c.l.s4 1934713408
      %v954 = vunpack.c.0.s8 %v953
      %v955 = vlaneseq
      %v956 = vshrl.u32 %v955, 7
      %v957 = vsub.s32 %v954, %v956
      %v958 = vrot.slane %v944, %v957
      %v959 = vcombine.high %v935, 0.0
      %v960 = vcombine.high %v942, 0.0
      %v961 = vcombine.high %v951, 0.0
      %v962 = vcombine.high %v958, 0.0
      %965 = vrot.lane.b32.xlu0 %v799, 120
      %v966 = vpop.permute.xlu0 %965
      %967 = vrot.lane.b32.xlu0 %v802, 120
      %v968 = vpop.permute.xlu0 %967
      %969 = vrot.lane.b32.xlu0 %v799, 112
      %v970 = vpop.permute.xlu0 %969
      %971 = vrot.lane.b32.xlu0 %v802, 112
      %v972 = vpop.permute.xlu0 %971
      %973 = vrot.lane.b32.xlu0 %v799, 104
      %v974 = vpop.permute.xlu0 %973
      %975 = vrot.lane.b32.xlu0 %v802, 104
      %v976 = vpop.permute.xlu0 %975
      %977 = vrot.lane.b32.xlu0 %v799, 96
      %v978 = vpop.permute.xlu0 %977
      %979 = vrot.lane.b32.xlu0 %v802, 96
      %v980 = vpop.permute.xlu0 %979
      %981 = vrot.lane.b32.xlu0 %v966, 96
      %v982 = vpop.permute.xlu0 %981
      %983 = vrot.lane.b32.xlu0 %v968, 96
      %v984 = vpop.permute.xlu0 %983
      %985 = vrot.lane.b32.xlu0 %v970, 96
      %v986 = vpop.permute.xlu0 %985
      %987 = vrot.lane.b32.xlu0 %v972, 96
      %v988 = vpop.permute.xlu0 %987
      %989 = vrot.lane.b32.xlu0 %v974, 96
      %v990 = vpop.permute.xlu0 %989
      %991 = vrot.lane.b32.xlu0 %v976, 96
      %v992 = vpop.permute.xlu0 %991
      %v1001 = vcombine.low %v978, %v986
      %v1002 = vcombine.high %v978, %v986
      %v1004 = vunpack.c.l.s4 1983009808
      %v1005 = vunpack.c.0.s8 %v1004
      %v1006 = vlaneseq
      %v1007 = vshrl.u32 %v1006, 7
      %v1008 = vsub.s32 %v1005, %v1007
      %v1009 = vrot.slane %v1001, %v1008
      %v1011 = vunpack.c.l.s4 1983009808
      %v1012 = vunpack.c.0.s8 %v1011
      %v1013 = vlaneseq
      %v1014 = vshrl.u32 %v1013, 7
      %v1015 = vsub.s32 %v1012, %v1014
      %v1016 = vrot.slane %v1002, %v1015
      %v1017 = vcombine.low %v982, %v990
      %v1018 = vcombine.high %v982, %v990
      %v1020 = vunpack.c.l.s4 1983009808
      %v1021 = vunpack.c.0.s8 %v1020
      %v1022 = vlaneseq
      %v1023 = vshrl.u32 %v1022, 7
      %v1024 = vsub.s32 %v1021, %v1023
      %v1025 = vrot.slane %v1017, %v1024
      %v1027 = vunpack.c.l.s4 1983009808
      %v1028 = vunpack.c.0.s8 %v1027
      %v1029 = vlaneseq
      %v1030 = vshrl.u32 %v1029, 7
      %v1031 = vsub.s32 %v1028, %v1030
      %v1032 = vrot.slane %v1018, %v1031
      %v1033 = vcombine.low %v1009, %v1025
      %v1034 = vcombine.high %v1009, %v1025
      %v1036 = vunpack.c.l.s4 1934713408
      %v1037 = vunpack.c.0.s8 %v1036
      %v1038 = vlaneseq
      %v1039 = vshrl.u32 %v1038, 7
      %v1040 = vsub.s32 %v1037, %v1039
      %v1041 = vrot.slane %v1033, %v1040
      %v1043 = vunpack.c.l.s4 1934713408
      %v1044 = vunpack.c.0.s8 %v1043
      %v1045 = vlaneseq
      %v1046 = vshrl.u32 %v1045, 7
      %v1047 = vsub.s32 %v1044, %v1046
      %v1048 = vrot.slane %v1034, %v1047
      %v1049 = vcombine.low %v1016, %v1032
      %v1050 = vcombine.high %v1016, %v1032
      %v1052 = vunpack.c.l.s4 1934713408
      %v1053 = vunpack.c.0.s8 %v1052
      %v1054 = vlaneseq
      %v1055 = vshrl.u32 %v1054, 7
      %v1056 = vsub.s32 %v1053, %v1055
      %v1057 = vrot.slane %v1049, %v1056
      %v1059 = vunpack.c.l.s4 1934713408
      %v1060 = vunpack.c.0.s8 %v1059
      %v1061 = vlaneseq
      %v1062 = vshrl.u32 %v1061, 7
      %v1063 = vsub.s32 %v1060, %v1062
      %v1064 = vrot.slane %v1050, %v1063
      %v1065 = vcombine.high %v1041, 0.0
      %v1066 = vcombine.high %v1048, 0.0
      %v1067 = vcombine.high %v1057, 0.0
      %v1068 = vcombine.high %v1064, 0.0
      %v1069 = vcombine.low %v980, %v988
      %v1070 = vcombine.high %v980, %v988
      %v1072 = vunpack.c.l.s4 1983009808
      %v1073 = vunpack.c.0.s8 %v1072
      %v1074 = vlaneseq
      %v1075 = vshrl.u32 %v1074, 7
      %v1076 = vsub.s32 %v1073, %v1075
      %v1077 = vrot.slane %v1069, %v1076
      %v1079 = vunpack.c.l.s4 1983009808
      %v1080 = vunpack.c.0.s8 %v1079
      %v1081 = vlaneseq
      %v1082 = vshrl.u32 %v1081, 7
      %v1083 = vsub.s32 %v1080, %v1082
      %v1084 = vrot.slane %v1070, %v1083
      %v1085 = vcombine.low %v984, %v992
      %v1086 = vcombine.high %v984, %v992
      %v1088 = vunpack.c.l.s4 1983009808
      %v1089 = vunpack.c.0.s8 %v1088
      %v1090 = vlaneseq
      %v1091 = vshrl.u32 %v1090, 7
      %v1092 = vsub.s32 %v1089, %v1091
      %v1093 = vrot.slane %v1085, %v1092
      %v1095 = vunpack.c.l.s4 1983009808
      %v1096 = vunpack.c.0.s8 %v1095
      %v1097 = vlaneseq
      %v1098 = vshrl.u32 %v1097, 7
      %v1099 = vsub.s32 %v1096, %v1098
      %v1100 = vrot.slane %v1086, %v1099
      %v1101 = vcombine.low %v1077, %v1093
      %v1102 = vcombine.high %v1077, %v1093
      %v1104 = vunpack.c.l.s4 1934713408
      %v1105 = vunpack.c.0.s8 %v1104
      %v1106 = vlaneseq
      %v1107 = vshrl.u32 %v1106, 7
      %v1108 = vsub.s32 %v1105, %v1107
      %v1109 = vrot.slane %v1101, %v1108
      %v1111 = vunpack.c.l.s4 1934713408
      %v1112 = vunpack.c.0.s8 %v1111
      %v1113 = vlaneseq
      %v1114 = vshrl.u32 %v1113, 7
      %v1115 = vsub.s32 %v1112, %v1114
      %v1116 = vrot.slane %v1102, %v1115
      %v1117 = vcombine.low %v1084, %v1100
      %v1118 = vcombine.high %v1084, %v1100
      %v1120 = vunpack.c.l.s4 1934713408
      %v1121 = vunpack.c.0.s8 %v1120
      %v1122 = vlaneseq
      %v1123 = vshrl.u32 %v1122, 7
      %v1124 = vsub.s32 %v1121, %v1123
      %v1125 = vrot.slane %v1117, %v1124
      %v1127 = vunpack.c.l.s4 1934713408
      %v1128 = vunpack.c.0.s8 %v1127
      %v1129 = vlaneseq
      %v1130 = vshrl.u32 %v1129, 7
      %v1131 = vsub.s32 %v1128, %v1130
      %v1132 = vrot.slane %v1118, %v1131
      %v1133 = vcombine.high %v1109, 0.0
      %v1134 = vcombine.high %v1116, 0.0
      %v1135 = vcombine.high %v1125, 0.0
      %v1136 = vcombine.high %v1132, 0.0
      %1137 = vrot.lane.b32.xlu0 %v799, 64
      %v1138 = vpop.permute.xlu0 %1137
      %1139 = vrot.lane.b32.xlu0 %v802, 64
      %v1140 = vpop.permute.xlu0 %1139
      %1141 = vrot.lane.b32.xlu0 %v966, 64
      %v1142 = vpop.permute.xlu0 %1141
      %1143 = vrot.lane.b32.xlu0 %v968, 64
      %v1144 = vpop.permute.xlu0 %1143
      %1145 = vrot.lane.b32.xlu0 %v970, 64
      %v1146 = vpop.permute.xlu0 %1145
      %1147 = vrot.lane.b32.xlu0 %v972, 64
      %v1148 = vpop.permute.xlu0 %1147
      %1149 = vrot.lane.b32.xlu0 %v974, 64
      %v1150 = vpop.permute.xlu0 %1149
      %1151 = vrot.lane.b32.xlu0 %v976, 64
      %v1152 = vpop.permute.xlu0 %1151
      %v1161 = vcombine.low %v1138, %v1146
      %v1162 = vcombine.high %v1138, %v1146
      %v1164 = vunpack.c.l.s4 1983009808
      %v1165 = vunpack.c.0.s8 %v1164
      %v1166 = vlaneseq
      %v1167 = vshrl.u32 %v1166, 7
      %v1168 = vsub.s32 %v1165, %v1167
      %v1169 = vrot.slane %v1161, %v1168
      %v1171 = vunpack.c.l.s4 1983009808
      %v1172 = vunpack.c.0.s8 %v1171
      %v1173 = vlaneseq
      %v1174 = vshrl.u32 %v1173, 7
      %v1175 = vsub.s32 %v1172, %v1174
      %v1176 = vrot.slane %v1162, %v1175
      %v1177 = vcombine.low %v1142, %v1150
      %v1178 = vcombine.high %v1142, %v1150
      %v1180 = vunpack.c.l.s4 1983009808
      %v1181 = vunpack.c.0.s8 %v1180
      %v1182 = vlaneseq
      %v1183 = vshrl.u32 %v1182, 7
      %v1184 = vsub.s32 %v1181, %v1183
      %v1185 = vrot.slane %v1177, %v1184
      %v1187 = vunpack.c.l.s4 1983009808
      %v1188 = vunpack.c.0.s8 %v1187
      %v1189 = vlaneseq
      %v1190 = vshrl.u32 %v1189, 7
      %v1191 = vsub.s32 %v1188, %v1190
      %v1192 = vrot.slane %v1178, %v1191
      %v1193 = vcombine.low %v1169, %v1185
      %v1194 = vcombine.high %v1169, %v1185
      %v1196 = vunpack.c.l.s4 1934713408
      %v1197 = vunpack.c.0.s8 %v1196
      %v1198 = vlaneseq
      %v1199 = vshrl.u32 %v1198, 7
      %v1200 = vsub.s32 %v1197, %v1199
      %v1201 = vrot.slane %v1193, %v1200
      %v1203 = vunpack.c.l.s4 1934713408
      %v1204 = vunpack.c.0.s8 %v1203
      %v1205 = vlaneseq
      %v1206 = vshrl.u32 %v1205, 7
      %v1207 = vsub.s32 %v1204, %v1206
      %v1208 = vrot.slane %v1194, %v1207
      %v1209 = vcombine.low %v1176, %v1192
      %v1210 = vcombine.high %v1176, %v1192
      %v1212 = vunpack.c.l.s4 1934713408
      %v1213 = vunpack.c.0.s8 %v1212
      %v1214 = vlaneseq
      %v1215 = vshrl.u32 %v1214, 7
      %v1216 = vsub.s32 %v1213, %v1215
      %v1217 = vrot.slane %v1209, %v1216
      %v1219 = vunpack.c.l.s4 1934713408
      %v1220 = vunpack.c.0.s8 %v1219
      %v1221 = vlaneseq
      %v1222 = vshrl.u32 %v1221, 7
      %v1223 = vsub.s32 %v1220, %v1222
      %v1224 = vrot.slane %v1210, %v1223
      %v1225 = vcombine.high %v1201, 0.0
      %v1226 = vcombine.high %v1208, 0.0
      %v1227 = vcombine.high %v1217, 0.0
      %v1228 = vcombine.high %v1224, 0.0
      %v1229 = vcombine.low %v1140, %v1148
      %v1230 = vcombine.high %v1140, %v1148
      %v1232 = vunpack.c.l.s4 1983009808
      %v1233 = vunpack.c.0.s8 %v1232
      %v1234 = vlaneseq
      %v1235 = vshrl.u32 %v1234, 7
      %v1236 = vsub.s32 %v1233, %v1235
      %v1237 = vrot.slane %v1229, %v1236
      %v1239 = vunpack.c.l.s4 1983009808
      %v1240 = vunpack.c.0.s8 %v1239
      %v1241 = vlaneseq
      %v1242 = vshrl.u32 %v1241, 7
      %v1243 = vsub.s32 %v1240, %v1242
      %v1244 = vrot.slane %v1230, %v1243
      %v1245 = vcombine.low %v1144, %v1152
      %v1246 = vcombine.high %v1144, %v1152
      %v1248 = vunpack.c.l.s4 1983009808
      %v1249 = vunpack.c.0.s8 %v1248
      %v1250 = vlaneseq
      %v1251 = vshrl.u32 %v1250, 7
      %v1252 = vsub.s32 %v1249, %v1251
      %v1253 = vrot.slane %v1245, %v1252
      %v1255 = vunpack.c.l.s4 1983009808
      %v1256 = vunpack.c.0.s8 %v1255
      %v1257 = vlaneseq
      %v1258 = vshrl.u32 %v1257, 7
      %v1259 = vsub.s32 %v1256, %v1258
      %v1260 = vrot.slane %v1246, %v1259
      %v1261 = vcombine.low %v1237, %v1253
      %v1262 = vcombine.high %v1237, %v1253
      %v1264 = vunpack.c.l.s4 1934713408
      %v1265 = vunpack.c.0.s8 %v1264
      %v1266 = vlaneseq
      %v1267 = vshrl.u32 %v1266, 7
      %v1268 = vsub.s32 %v1265, %v1267
      %v1269 = vrot.slane %v1261, %v1268
      %v1271 = vunpack.c.l.s4 1934713408
      %v1272 = vunpack.c.0.s8 %v1271
      %v1273 = vlaneseq
      %v1274 = vshrl.u32 %v1273, 7
      %v1275 = vsub.s32 %v1272, %v1274
      %v1276 = vrot.slane %v1262, %v1275
      %v1277 = vcombine.low %v1244, %v1260
      %v1278 = vcombine.high %v1244, %v1260
      %v1280 = vunpack.c.l.s4 1934713408
      %v1281 = vunpack.c.0.s8 %v1280
      %v1282 = vlaneseq
      %v1283 = vshrl.u32 %v1282, 7
      %v1284 = vsub.s32 %v1281, %v1283
      %v1285 = vrot.slane %v1277, %v1284
      %v1287 = vunpack.c.l.s4 1934713408
      %v1288 = vunpack.c.0.s8 %v1287
      %v1289 = vlaneseq
      %v1290 = vshrl.u32 %v1289, 7
      %v1291 = vsub.s32 %v1288, %v1290
      %v1292 = vrot.slane %v1278, %v1291
      %v1293 = vcombine.high %v1269, 0.0
      %v1294 = vcombine.high %v1276, 0.0
      %v1295 = vcombine.high %v1285, 0.0
      %v1296 = vcombine.high %v1292, 0.0
      %v1297 = vld [vmem:[%s647] sm:$0xf]
      %v1298 = vld [vmem:[%s647 + $0x4] sm:$0xf]
      %v1299 = vld [vmem:[%s647 + $0x8] sm:$0xf]
      %v1300 = vld [vmem:[%s647 + $0xc] sm:$0xf]
      %v1301 = vld [vmem:[%s1] sm:$0x3]
      %v1302 = vpack.c.bf16 %v867, %v867
      %v1303 = vpack.c.bf16 %v891, %v891
      %v1304 = vpack.c.bf16 %v874, %v874
      %v1305 = vpack.c.bf16 %v892, %v892
      %v1306 = vpack.c.bf16 %v883, %v883
      %v1307 = vpack.c.bf16 %v893, %v893
      %v1308 = vpack.c.bf16 %v890, %v890
      %v1309 = vpack.c.bf16 %v894, %v894
      %v1310 = vpack.c.bf16 %v1041, %v1041
      %v1311 = vpack.c.bf16 %v1065, %v1065
      %v1312 = vpack.c.bf16 %v1048, %v1048
      %v1313 = vpack.c.bf16 %v1066, %v1066
      %v1314 = vpack.c.bf16 %v1057, %v1057
      %v1315 = vpack.c.bf16 %v1067, %v1067
      %v1316 = vpack.c.bf16 %v1064, %v1064
      %v1317 = vpack.c.bf16 %v1068, %v1068
      %v1318 = vpack.c.bf16 %v1201, %v1201
      %v1319 = vpack.c.bf16 %v1225, %v1225
      %v1320 = vpack.c.bf16 %v1208, %v1208
      %v1321 = vpack.c.bf16 %v1226, %v1226
      %v1322 = vpack.c.bf16 %v1217, %v1217
      %v1323 = vpack.c.bf16 %v1227, %v1227
      %v1324 = vpack.c.bf16 %v1224, %v1224
      %v1325 = vpack.c.bf16 %v1228, %v1228
      %v1326 = vlaneseq
      %v1327 = vshrl.u32 %v1326, 7
      %v1328 = vsub.s32 0, %v1327
      %v1329 = vrot.slane %v1301, %v1328
      %v1330 = vcombine.low %v1302, %v1306
      %v1332 = vunpack.c.l.s4 1983009808
      %v1333 = vunpack.c.0.s8 %v1332
      %v1334 = vlaneseq
      %v1335 = vshrl.u32 %v1334, 7
      %v1336 = vsub.s32 %v1333, %v1335
      %v1337 = vrot.slane %v1330, %v1336
      %v1338 = vcombine.low %v1304, %v1308
      %v1340 = vunpack.c.l.s4 1983009808
      %v1341 = vunpack.c.0.s8 %v1340
      %v1342 = vlaneseq
      %v1343 = vshrl.u32 %v1342, 7
      %v1344 = vsub.s32 %v1341, %v1343
      %v1345 = vrot.slane %v1338, %v1344
      %v1346 = vcombine.low %v1337, %v1345
      %v1348 = vunpack.c.l.s4 1934713408
      %v1349 = vunpack.c.0.s8 %v1348
      %v1350 = vlaneseq
      %v1351 = vshrl.u32 %v1350, 7
      %v1352 = vsub.s32 %v1349, %v1351
      %v1353 = vrot.slane %v1346, %v1352
      %v1354 = vcombine.high %v1353, 0
      %v1355 = vcombine.low %v1303, %v1307
      %v1357 = vunpack.c.l.s4 1983009808
      %v1358 = vunpack.c.0.s8 %v1357
      %v1359 = vlaneseq
      %v1360 = vshrl.u32 %v1359, 7
      %v1361 = vsub.s32 %v1358, %v1360
      %v1362 = vrot.slane %v1355, %v1361
      %v1363 = vcombine.low %v1305, %v1309
      %v1365 = vunpack.c.l.s4 1983009808
      %v1366 = vunpack.c.0.s8 %v1365
      %v1367 = vlaneseq
      %v1368 = vshrl.u32 %v1367, 7
      %v1369 = vsub.s32 %v1366, %v1368
      %v1370 = vrot.slane %v1363, %v1369
      %v1371 = vcombine.low %v1362, %v1370
      %v1373 = vunpack.c.l.s4 1934713408
      %v1374 = vunpack.c.0.s8 %v1373
      %v1375 = vlaneseq
      %v1376 = vshrl.u32 %v1375, 7
      %v1377 = vsub.s32 %v1374, %v1376
      %v1378 = vrot.slane %v1371, %v1377
      %v1379 = vcombine.high %v1378, 0
      %v1382 = vpack.i.b16 %v1378, %v1353
      %v1383 = vshrl.u32 %v1353, 16
      %v1384 = vshrl.u32 %v1378, 16
      %v1385 = vpack.i.b16 %v1384, %v1383
      %v1388 = vpack.i.b16 %v1379, %v1354
      %v1389 = vshrl.u32 %v1354, 16
      %v1390 = vshrl.u32 %v1379, 16
      %v1391 = vpack.i.b16 %v1390, %v1389
      %1392 = vxpose.xlu0.c.b16.start [1/8] %v1310, 128
      %1393 = vxpose.xlu0.c.b16.cont [2/8] 0, 128
      %1394 = vxpose.xlu0.c.b16.cont [3/8] 0, 128
      %1395 = vxpose.xlu0.c.b16.cont [4/8] 0, 128
      %1396 = vxpose.xlu0.c.b16.cont [5/8] 0, 128
      %1397 = vxpose.xlu0.c.b16.cont [6/8] 0, 128
      %1398 = vxpose.xlu0.c.b16.cont [7/8] 0, 128
      %1399 = vxpose.xlu0.c.b16.end [8/8] 0, 128
      %v1400 = vpop.trf.xlu0
      %v1401 = vpop.trf.xlu0
      %v1402 = vpop.trf.xlu0
      %v1403 = vpop.trf.xlu0
      %v1404 = vpop.trf.xlu0
      %v1405 = vpop.trf.xlu0
      %v1406 = vpop.trf.xlu0
      %v1407 = vpop.trf.xlu0
      %1408 = vxpose.xlu0.c.b16.start [1/8] %v1311, 128
      %1409 = vxpose.xlu0.c.b16.cont [2/8] 0, 128
      %1410 = vxpose.xlu0.c.b16.cont [3/8] 0, 128
      %1411 = vxpose.xlu0.c.b16.cont [4/8] 0, 128
      %1412 = vxpose.xlu0.c.b16.cont [5/8] 0, 128
      %1413 = vxpose.xlu0.c.b16.cont [6/8] 0, 128
      %1414 = vxpose.xlu0.c.b16.cont [7/8] 0, 128
      %1415 = vxpose.xlu0.c.b16.end [8/8] 0, 128
      %v1416 = vpop.trf.xlu0
      %v1417 = vpop.trf.xlu0
      %v1418 = vpop.trf.xlu0
      %v1419 = vpop.trf.xlu0
      %v1420 = vpop.trf.xlu0
      %v1421 = vpop.trf.xlu0
      %v1422 = vpop.trf.xlu0
      %v1423 = vpop.trf.xlu0
      %1424 = vxpose.xlu0.c.b16.start [1/8] %v1312, 128
      %1425 = vxpose.xlu0.c.b16.cont [2/8] 0, 128
      %1426 = vxpose.xlu0.c.b16.cont [3/8] 0, 128
      %1427 = vxpose.xlu0.c.b16.cont [4/8] 0, 128
      %1428 = vxpose.xlu0.c.b16.cont [5/8] 0, 128
      %1429 = vxpose.xlu0.c.b16.cont [6/8] 0, 128
      %1430 = vxpose.xlu0.c.b16.cont [7/8] 0, 128
      %1431 = vxpose.xlu0.c.b16.end [8/8] 0, 128
      %v1432 = vpop.trf.xlu0
      %v1433 = vpop.trf.xlu0
      %v1434 = vpop.trf.xlu0
      %v1435 = vpop.trf.xlu0
      %v1436 = vpop.trf.xlu0
      %v1437 = vpop.trf.xlu0
      %v1438 = vpop.trf.xlu0
      %v1439 = vpop.trf.xlu0
      %1440 = vxpose.xlu0.c.b16.start [1/8] %v1313, 128
      %1441 = vxpose.xlu0.c.b16.cont [2/8] 0, 128
      %1442 = vxpose.xlu0.c.b16.cont [3/8] 0, 128
      %1443 = vxpose.xlu0.c.b16.cont [4/8] 0, 128
      %1444 = vxpose.xlu0.c.b16.cont [5/8] 0, 128
      %1445 = vxpose.xlu0.c.b16.cont [6/8] 0, 128
      %1446 = vxpose.xlu0.c.b16.cont [7/8] 0, 128
      %1447 = vxpose.xlu0.c.b16.end [8/8] 0, 128
      %v1448 = vpop.trf.xlu0
      %v1449 = vpop.trf.xlu0
      %v1450 = vpop.trf.xlu0
      %v1451 = vpop.trf.xlu0
      %v1452 = vpop.trf.xlu0
      %v1453 = vpop.trf.xlu0
      %v1454 = vpop.trf.xlu0
      %v1455 = vpop.trf.xlu0
      %1456 = vxpose.xlu0.c.b16.start [1/8] %v1314, 128
      %1457 = vxpose.xlu0.c.b16.cont [2/8] 0, 128
      %1458 = vxpose.xlu0.c.b16.cont [3/8] 0, 128
      %1459 = vxpose.xlu0.c.b16.cont [4/8] 0, 128
      %1460 = vxpose.xlu0.c.b16.cont [5/8] 0, 128
      %1461 = vxpose.xlu0.c.b16.cont [6/8] 0, 128
      %1462 = vxpose.xlu0.c.b16.cont [7/8] 0, 128
      %1463 = vxpose.xlu0.c.b16.end [8/8] 0, 128
      %v1464 = vpop.trf.xlu0
      %v1465 = vpop.trf.xlu0
      %v1466 = vpop.trf.xlu0
      %v1467 = vpop.trf.xlu0
      %v1468 = vpop.trf.xlu0
      %v1469 = vpop.trf.xlu0
      %v1470 = vpop.trf.xlu0
      %v1471 = vpop.trf.xlu0
      %1472 = vxpose.xlu0.c.b16.start [1/8] %v1315, 128
      %1473 = vxpose.xlu0.c.b16.cont [2/8] 0, 128
      %1474 = vxpose.xlu0.c.b16.cont [3/8] 0, 128
      %1475 = vxpose.xlu0.c.b16.cont [4/8] 0, 128
      %1476 = vxpose.xlu0.c.b16.cont [5/8] 0, 128
      %1477 = vxpose.xlu0.c.b16.cont [6/8] 0, 128
      %1478 = vxpose.xlu0.c.b16.cont [7/8] 0, 128
      %1479 = vxpose.xlu0.c.b16.end [8/8] 0, 128
      %v1480 = vpop.trf.xlu0
      %v1481 = vpop.trf.xlu0
      %v1482 = vpop.trf.xlu0
      %v1483 = vpop.trf.xlu0
      %v1484 = vpop.trf.xlu0
      %v1485 = vpop.trf.xlu0
      %v1486 = vpop.trf.xlu0
      %v1487 = vpop.trf.xlu0
      %1488 = vxpose.xlu0.c.b16.start [1/8] %v1316, 128
      %1489 = vxpose.xlu0.c.b16.cont [2/8] 0, 128
      %1490 = vxpose.xlu0.c.b16.cont [3/8] 0, 128
      %1491 = vxpose.xlu0.c.b16.cont [4/8] 0, 128
      %1492 = vxpose.xlu0.c.b16.cont [5/8] 0, 128
      %1493 = vxpose.xlu0.c.b16.cont [6/8] 0, 128
      %1494 = vxpose.xlu0.c.b16.cont [7/8] 0, 128
      %1495 = vxpose.xlu0.c.b16.end [8/8] 0, 128
      %v1496 = vpop.trf.xlu0
      %v1497 = vpop.trf.xlu0
      %v1498 = vpop.trf.xlu0
      %v1499 = vpop.trf.xlu0
      %v1500 = vpop.trf.xlu0
      %v1501 = vpop.trf.xlu0
      %v1502 = vpop.trf.xlu0
      %v1503 = vpop.trf.xlu0
      %1504 = vxpose.xlu0.c.b16.start [1/8] %v1317, 128
      %1505 = vxpose.xlu0.c.b16.cont [2/8] 0, 128
      %1506 = vxpose.xlu0.c.b16.cont [3/8] 0, 128
      %1507 = vxpose.xlu0.c.b16.cont [4/8] 0, 128
      %1508 = vxpose.xlu0.c.b16.cont [5/8] 0, 128
      %1509 = vxpose.xlu0.c.b16.cont [6/8] 0, 128
      %1510 = vxpose.xlu0.c.b16.cont [7/8] 0, 128
      %1511 = vxpose.xlu0.c.b16.end [8/8] 0, 128
      %v1512 = vpop.trf.xlu0
      %v1513 = vpop.trf.xlu0
      %v1514 = vpop.trf.xlu0
      %v1515 = vpop.trf.xlu0
      %v1516 = vpop.trf.xlu0
      %v1517 = vpop.trf.xlu0
      %v1518 = vpop.trf.xlu0
      %v1519 = vpop.trf.xlu0
      %v1520 = vcombine.low %v1400, %v1464
      %v1522 = vunpack.c.l.s4 1983009808
      %v1523 = vunpack.c.0.s8 %v1522
      %v1524 = vlaneseq
      %v1525 = vshrl.u32 %v1524, 7
      %v1526 = vsub.s32 %v1523, %v1525
      %v1527 = vrot.slane %v1520, %v1526
      %v1528 = vcombine.low %v1432, %v1496
      %v1530 = vunpack.c.l.s4 1983009808
      %v1531 = vunpack.c.0.s8 %v1530
      %v1532 = vlaneseq
      %v1533 = vshrl.u32 %v1532, 7
      %v1534 = vsub.s32 %v1531, %v1533
      %v1535 = vrot.slane %v1528, %v1534
      %v1536 = vcombine.low %v1527, %v1535
      %v1537 = vcombine.high %v1527, %v1535
      %v1539 = vunpack.c.l.s4 1934713408
      %v1540 = vunpack.c.0.s8 %v1539
      %v1541 = vlaneseq
      %v1542 = vshrl.u32 %v1541, 7
      %v1543 = vsub.s32 %v1540, %v1542
      %v1544 = vrot.slane %v1536, %v1543
      %v1546 = vunpack.c.l.s4 1934713408
      %v1547 = vunpack.c.0.s8 %v1546
      %v1548 = vlaneseq
      %v1549 = vshrl.u32 %v1548, 7
      %v1550 = vsub.s32 %v1547, %v1549
      %v1551 = vrot.slane %v1537, %v1550
      %v1552 = vcombine.high %v1544, 0
      %v1553 = vcombine.high %v1551, 0
      %v1554 = vcombine.low %v1416, %v1480
      %v1556 = vunpack.c.l.s4 1983009808
      %v1557 = vunpack.c.0.s8 %v1556
      %v1558 = vlaneseq
      %v1559 = vshrl.u32 %v1558, 7
      %v1560 = vsub.s32 %v1557, %v1559
      %v1561 = vrot.slane %v1554, %v1560
      %v1562 = vcombine.low %v1448, %v1512
      %v1564 = vunpack.c.l.s4 1983009808
      %v1565 = vunpack.c.0.s8 %v1564
      %v1566 = vlaneseq
      %v1567 = vshrl.u32 %v1566, 7
      %v1568 = vsub.s32 %v1565, %v1567
      %v1569 = vrot.slane %v1562, %v1568
      %v1570 = vcombine.low %v1561, %v1569
      %v1571 = vcombine.high %v1561, %v1569
      %v1573 = vunpack.c.l.s4 1934713408
      %v1574 = vunpack.c.0.s8 %v1573
      %v1575 = vlaneseq
      %v1576 = vshrl.u32 %v1575, 7
      %v1577 = vsub.s32 %v1574, %v1576
      %v1578 = vrot.slane %v1570, %v1577
      %v1580 = vunpack.c.l.s4 1934713408
      %v1581 = vunpack.c.0.s8 %v1580
      %v1582 = vlaneseq
      %v1583 = vshrl.u32 %v1582, 7
      %v1584 = vsub.s32 %v1581, %v1583
      %v1585 = vrot.slane %v1571, %v1584
      %v1586 = vcombine.high %v1578, 0
      %v1587 = vcombine.high %v1585, 0
      %v1590 = vpack.i.b16 %v1578, %v1544
      %v1592 = vshrl.u32 %v1544, 16
      %v1593 = vshrl.u32 %v1578, 16
      %v1594 = vpack.i.b16 %v1593, %v1592
      %v1598 = vpack.i.b16 %v1586, %v1552
      %v1600 = vshrl.u32 %v1552, 16
      %v1601 = vshrl.u32 %v1586, 16
      %v1602 = vpack.i.b16 %v1601, %v1600
      %v1606 = vpack.i.b16 %v1585, %v1551
      %v1608 = vshrl.u32 %v1551, 16
      %v1609 = vshrl.u32 %v1585, 16
      %v1610 = vpack.i.b16 %v1609, %v1608
      %v1614 = vpack.i.b16 %v1587, %v1553
      %v1616 = vshrl.u32 %v1553, 16
      %v1617 = vshrl.u32 %v1587, 16
      %v1618 = vpack.i.b16 %v1617, %v1616
      %1620 = vxpose.xlu0.c.b16.start [1/8] %v1590, 128
      %1621 = vxpose.xlu0.c.b16.cont [2/8] 0, 128
      %1622 = vxpose.xlu0.c.b16.cont [3/8] 0, 128
      %1623 = vxpose.xlu0.c.b16.cont [4/8] 0, 128
      %1624 = vxpose.xlu0.c.b16.cont [5/8] 0, 128
      %1625 = vxpose.xlu0.c.b16.cont [6/8] 0, 128
      %1626 = vxpose.xlu0.c.b16.cont [7/8] 0, 128
      %1627 = vxpose.xlu0.c.b16.end [8/8] 0, 128
      %v1628 = vpop.trf.xlu0
      %v1629 = vpop.trf.xlu0
      %v1630 = vpop.trf.xlu0
      %v1631 = vpop.trf.xlu0
      %v1632 = vpop.trf.xlu0
      %v1633 = vpop.trf.xlu0
      %v1634 = vpop.trf.xlu0
      %v1635 = vpop.trf.xlu0
      %1636 = vxpose.xlu0.c.b16.start [1/8] %v1594, 128
      %1637 = vxpose.xlu0.c.b16.cont [2/8] 0, 128
      %1638 = vxpose.xlu0.c.b16.cont [3/8] 0, 128
      %1639 = vxpose.xlu0.c.b16.cont [4/8] 0, 128
      %1640 = vxpose.xlu0.c.b16.cont [5/8] 0, 128
      %1641 = vxpose.xlu0.c.b16.cont [6/8] 0, 128
      %1642 = vxpose.xlu0.c.b16.cont [7/8] 0, 128
      %1643 = vxpose.xlu0.c.b16.end [8/8] 0, 128
      %v1644 = vpop.trf.xlu0
      %v1645 = vpop.trf.xlu0
      %v1646 = vpop.trf.xlu0
      %v1647 = vpop.trf.xlu0
      %v1648 = vpop.trf.xlu0
      %v1649 = vpop.trf.xlu0
      %v1650 = vpop.trf.xlu0
      %v1651 = vpop.trf.xlu0
      %1652 = vxpose.xlu0.c.b16.start [1/8] %v1598, 128
      %1653 = vxpose.xlu0.c.b16.cont [2/8] 0, 128
      %1654 = vxpose.xlu0.c.b16.cont [3/8] 0, 128
      %1655 = vxpose.xlu0.c.b16.cont [4/8] 0, 128
      %1656 = vxpose.xlu0.c.b16.cont [5/8] 0, 128
      %1657 = vxpose.xlu0.c.b16.cont [6/8] 0, 128
      %1658 = vxpose.xlu0.c.b16.cont [7/8] 0, 128
      %1659 = vxpose.xlu0.c.b16.end [8/8] 0, 128
      %v1660 = vpop.trf.xlu0
      %v1661 = vpop.trf.xlu0
      %v1662 = vpop.trf.xlu0
      %v1663 = vpop.trf.xlu0
      %v1664 = vpop.trf.xlu0
      %v1665 = vpop.trf.xlu0
      %v1666 = vpop.trf.xlu0
      %v1667 = vpop.trf.xlu0
      %1668 = vxpose.xlu0.c.b16.start [1/8] %v1602, 128
      %1669 = vxpose.xlu0.c.b16.cont [2/8] 0, 128
      %1670 = vxpose.xlu0.c.b16.cont [3/8] 0, 128
      %1671 = vxpose.xlu0.c.b16.cont [4/8] 0, 128
      %1672 = vxpose.xlu0.c.b16.cont [5/8] 0, 128
      %1673 = vxpose.xlu0.c.b16.cont [6/8] 0, 128
      %1674 = vxpose.xlu0.c.b16.cont [7/8] 0, 128
      %1675 = vxpose.xlu0.c.b16.end [8/8] 0, 128
      %v1676 = vpop.trf.xlu0
      %v1677 = vpop.trf.xlu0
      %v1678 = vpop.trf.xlu0
      %v1679 = vpop.trf.xlu0
      %v1680 = vpop.trf.xlu0
      %v1681 = vpop.trf.xlu0
      %v1682 = vpop.trf.xlu0
      %v1683 = vpop.trf.xlu0
      %1684 = vxpose.xlu0.c.b16.start [1/8] %v1606, 128
      %1685 = vxpose.xlu0.c.b16.cont [2/8] 0, 128
      %1686 = vxpose.xlu0.c.b16.cont [3/8] 0, 128
      %1687 = vxpose.xlu0.c.b16.cont [4/8] 0, 128
      %1688 = vxpose.xlu0.c.b16.cont [5/8] 0, 128
      %1689 = vxpose.xlu0.c.b16.cont [6/8] 0, 128
      %1690 = vxpose.xlu0.c.b16.cont [7/8] 0, 128
      %1691 = vxpose.xlu0.c.b16.end [8/8] 0, 128
      %v1692 = vpop.trf.xlu0
      %v1693 = vpop.trf.xlu0
      %v1694 = vpop.trf.xlu0
      %v1695 = vpop.trf.xlu0
      %v1696 = vpop.trf.xlu0
      %v1697 = vpop.trf.xlu0
      %v1698 = vpop.trf.xlu0
      %v1699 = vpop.trf.xlu0
      %1700 = vxpose.xlu0.c.b16.start [1/8] %v1610, 128
      %1701 = vxpose.xlu0.c.b16.cont [2/8] 0, 128
      %1702 = vxpose.xlu0.c.b16.cont [3/8] 0, 128
      %1703 = vxpose.xlu0.c.b16.cont [4/8] 0, 128
      %1704 = vxpose.xlu0.c.b16.cont [5/8] 0, 128
      %1705 = vxpose.xlu0.c.b16.cont [6/8] 0, 128
      %1706 = vxpose.xlu0.c.b16.cont [7/8] 0, 128
      %1707 = vxpose.xlu0.c.b16.end [8/8] 0, 128
      %v1708 = vpop.trf.xlu0
      %v1709 = vpop.trf.xlu0
      %v1710 = vpop.trf.xlu0
      %v1711 = vpop.trf.xlu0
      %v1712 = vpop.trf.xlu0
      %v1713 = vpop.trf.xlu0
      %v1714 = vpop.trf.xlu0
      %v1715 = vpop.trf.xlu0
      %1716 = vxpose.xlu0.c.b16.start [1/8] %v1614, 128
      %1717 = vxpose.xlu0.c.b16.cont [2/8] 0, 128
      %1718 = vxpose.xlu0.c.b16.cont [3/8] 0, 128
      %1719 = vxpose.xlu0.c.b16.cont [4/8] 0, 128
      %1720 = vxpose.xlu0.c.b16.cont [5/8] 0, 128
      %1721 = vxpose.xlu0.c.b16.cont [6/8] 0, 128
      %1722 = vxpose.xlu0.c.b16.cont [7/8] 0, 128
      %1723 = vxpose.xlu0.c.b16.end [8/8] 0, 128
      %v1724 = vpop.trf.xlu0
      %v1725 = vpop.trf.xlu0
      %v1726 = vpop.trf.xlu0
      %v1727 = vpop.trf.xlu0
      %v1728 = vpop.trf.xlu0
      %v1729 = vpop.trf.xlu0
      %v1730 = vpop.trf.xlu0
      %v1731 = vpop.trf.xlu0
      %1732 = vxpose.xlu0.c.b16.start [1/8] %v1618, 128
      %1733 = vxpose.xlu0.c.b16.cont [2/8] 0, 128
      %1734 = vxpose.xlu0.c.b16.cont [3/8] 0, 128
      %1735 = vxpose.xlu0.c.b16.cont [4/8] 0, 128
      %1736 = vxpose.xlu0.c.b16.cont [5/8] 0, 128
      %1737 = vxpose.xlu0.c.b16.cont [6/8] 0, 128
      %1738 = vxpose.xlu0.c.b16.cont [7/8] 0, 128
      %1739 = vxpose.xlu0.c.b16.end [8/8] 0, 128
      %v1740 = vpop.trf.xlu0
      %v1741 = vpop.trf.xlu0
      %v1742 = vpop.trf.xlu0
      %v1743 = vpop.trf.xlu0
      %v1744 = vpop.trf.xlu0
      %v1745 = vpop.trf.xlu0
      %v1746 = vpop.trf.xlu0
      %v1747 = vpop.trf.xlu0
      %v1748 = vcombine.low %v1628, %v1692
      %v1750 = vunpack.c.l.s4 1983009808
      %v1751 = vunpack.c.0.s8 %v1750
      %v1752 = vlaneseq
      %v1753 = vshrl.u32 %v1752, 7
      %v1754 = vsub.s32 %v1751, %v1753
      %v1755 = vrot.slane %v1748, %v1754
      %v1756 = vcombine.low %v1660, %v1724
      %v1758 = vunpack.c.l.s4 1983009808
      %v1759 = vunpack.c.0.s8 %v1758
      %v1760 = vlaneseq
      %v1761 = vshrl.u32 %v1760, 7
      %v1762 = vsub.s32 %v1759, %v1761
      %v1763 = vrot.slane %v1756, %v1762
      %v1764 = vcombine.low %v1755, %v1763
      %v1766 = vunpack.c.l.s4 1934713408
      %v1767 = vunpack.c.0.s8 %v1766
      %v1768 = vlaneseq
      %v1769 = vshrl.u32 %v1768, 7
      %v1770 = vsub.s32 %v1767, %v1769
      %v1771 = vrot.slane %v1764, %v1770
      %v1772 = vcombine.high %v1771, 0
      %v1773 = vcombine.low %v1644, %v1708
      %v1775 = vunpack.c.l.s4 1983009808
      %v1776 = vunpack.c.0.s8 %v1775
      %v1777 = vlaneseq
      %v1778 = vshrl.u32 %v1777, 7
      %v1779 = vsub.s32 %v1776, %v1778
      %v1780 = vrot.slane %v1773, %v1779
      %v1781 = vcombine.low %v1676, %v1740
      %v1783 = vunpack.c.l.s4 1983009808
      %v1784 = vunpack.c.0.s8 %v1783
      %v1785 = vlaneseq
      %v1786 = vshrl.u32 %v1785, 7
      %v1787 = vsub.s32 %v1784, %v1786
      %v1788 = vrot.slane %v1781, %v1787
      %v1789 = vcombine.low %v1780, %v1788
      %v1791 = vunpack.c.l.s4 1934713408
      %v1792 = vunpack.c.0.s8 %v1791
      %v1793 = vlaneseq
      %v1794 = vshrl.u32 %v1793, 7
      %v1795 = vsub.s32 %v1792, %v1794
      %v1796 = vrot.slane %v1789, %v1795
      %v1797 = vcombine.high %v1796, 0
      %v1800 = vpack.i.b16 %v1796, %v1771
      %v1801 = vshrl.u32 %v1771, 16
      %v1802 = vshrl.u32 %v1796, 16
      %v1803 = vpack.i.b16 %v1802, %v1801
      %v1806 = vpack.i.b16 %v1797, %v1772
      %v1807 = vshrl.u32 %v1772, 16
      %v1808 = vshrl.u32 %v1797, 16
      %v1809 = vpack.i.b16 %v1808, %v1807
      %vm1810 = vcmask 64512
      %v1812 = vsel %vm1810, %v1382, 0
      %vm1814 = vcmask 1043456
      %v1816 = vsel %vm1814, %v1800, 0
      %1818 = vmatprep.subr.bf16.mxu0 0
      %1819 = vmatpush1.bf16.msra.mxu0 %v1816
      %1820 = vmatprep.subr.bf16.mxu0 0
      %1821 = vmatpush1.bf16.msra.mxu0 0
      %1822 = vmatprep.subr.bf16.mxu0 0
      %1823 = vmatpush1.bf16.msra.mxu0 0
      %1824 = vmatprep.subr.bf16.mxu0 0
      %1825 = vmatpush1.bf16.msra.mxu0 0
      %1826 = vmatprep.subr.bf16.mxu0 0
      %1827 = vmatpush1.bf16.msra.mxu0 0
      %1828 = vmatprep.subr.bf16.mxu0 0
      %1829 = vmatpush1.bf16.msra.mxu0 0
      %1830 = vmatprep.subr.bf16.mxu0 0
      %1831 = vmatpush1.bf16.msra.mxu0 0
      %1832 = vmatprep.subr.bf16.mxu0 0
      %1833 = vmatpush1.bf16.msra.mxu0 0
      %1834 = vmatprep.subr.bf16.mxu0 0
      %1835 = vmatpush1.bf16.msra.mxu0 0
      %1836 = vmatprep.subr.bf16.mxu0 0
      %1837 = vmatpush1.bf16.msra.mxu0 0
      %1838 = vmatprep.subr.bf16.mxu0 0
      %1839 = vmatpush1.bf16.msra.mxu0 0
      %1840 = vmatprep.subr.bf16.mxu0 0
      %1841 = vmatpush1.bf16.msra.mxu0 0
      %1842 = vmatprep.subr.bf16.mxu0 0
      %1843 = vmatpush1.bf16.msra.mxu0 0
      %1844 = vmatprep.subr.bf16.mxu0 0
      %1845 = vmatpush1.bf16.msra.mxu0 0
      %1846 = vmatprep.subr.bf16.mxu0 0
      %1847 = vmatpush1.bf16.msra.mxu0 0
      %1848 = vmatprep.subr.bf16.mxu0 0
      %1849 = vmatpush1.bf16.msra.mxu0 0
      %1850 = vmatprep.mubr.bf16.mxu0 0
      %1851 = vmatmul.mubr.bf16.gmra.mrb[0].mxu0 %v1812
      %v1852 = vpop.f32.mrb[0].mxu0
      %v1853 = vadd.f32 %v1329, %v1852
      %v1854 = vpop.f32.mrb[0].mxu0
      %v1855 = vpop.f32.mrb[0].mxu0
      %v1856 = vpop.f32.mrb[0].mxu0
      %1857 = vdwg.mxu0
      %v1859 = vsel %vm1810, %v1385, 0
      %v1862 = vsel %vm1814, %v1803, 0
      %1864 = vmatprep.subr.bf16.mxu0 0
      %1865 = vmatpush1.bf16.msra.mxu0 %v1862
      %1866 = vmatprep.subr.bf16.mxu0 0
      %1867 = vmatpush1.bf16.msra.mxu0 0
      %1868 = vmatprep.subr.bf16.mxu0 0
      %1869 = vmatpush1.bf16.msra.mxu0 0
      %1870 = vmatprep.subr.bf16.mxu0 0
      %1871 = vmatpush1.bf16.msra.mxu0 0
      %1872 = vmatprep.subr.bf16.mxu0 0
      %1873 = vmatpush1.bf16.msra.mxu0 0
      %1874 = vmatprep.subr.bf16.mxu0 0
      %1875 = vmatpush1.bf16.msra.mxu0 0
      %1876 = vmatprep.subr.bf16.mxu0 0
      %1877 = vmatpush1.bf16.msra.mxu0 0
      %1878 = vmatprep.subr.bf16.mxu0 0
      %1879 = vmatpush1.bf16.msra.mxu0 0
      %1880 = vmatprep.subr.bf16.mxu0 0
      %1881 = vmatpush1.bf16.msra.mxu0 0
      %1882 = vmatprep.subr.bf16.mxu0 0
      %1883 = vmatpush1.bf16.msra.mxu0 0
      %1884 = vmatprep.subr.bf16.mxu0 0
      %1885 = vmatpush1.bf16.msra.mxu0 0
      %1886 = vmatprep.subr.bf16.mxu0 0
      %1887 = vmatpush1.bf16.msra.mxu0 0
      %1888 = vmatprep.subr.bf16.mxu0 0
      %1889 = vmatpush1.bf16.msra.mxu0 0
      %1890 = vmatprep.subr.bf16.mxu0 0
      %1891 = vmatpush1.bf16.msra.mxu0 0
      %1892 = vmatprep.subr.bf16.mxu0 0
      %1893 = vmatpush1.bf16.msra.mxu0 0
      %1894 = vmatprep.subr.bf16.mxu0 0
      %1895 = vmatpush1.bf16.msra.mxu0 0
      %1896 = vmatprep.mubr.bf16.mxu0 0
      %1897 = vmatmul.mubr.bf16.gmra.mrb[0].mxu0 %v1859
      %v1898 = vpop.f32.mrb[0].mxu0
      %v1899 = vadd.f32 %v1329, %v1898
      %v1900 = vpop.f32.mrb[0].mxu0
      %v1901 = vpop.f32.mrb[0].mxu0
      %v1902 = vpop.f32.mrb[0].mxu0
      %1903 = vdwg.mxu0
      %v1905 = vsel %vm1810, %v1388, 0
      %v1908 = vsel %vm1814, %v1806, 0
      %1910 = vmatprep.subr.bf16.mxu0 0
      %1911 = vmatpush1.bf16.msra.mxu0 %v1908
      %1912 = vmatprep.subr.bf16.mxu0 0
      %1913 = vmatpush1.bf16.msra.mxu0 0
      %1914 = vmatprep.subr.bf16.mxu0 0
      %1915 = vmatpush1.bf16.msra.mxu0 0
      %1916 = vmatprep.subr.bf16.mxu0 0
      %1917 = vmatpush1.bf16.msra.mxu0 0
      %1918 = vmatprep.subr.bf16.mxu0 0
      %1919 = vmatpush1.bf16.msra.mxu0 0
      %1920 = vmatprep.subr.bf16.mxu0 0
      %1921 = vmatpush1.bf16.msra.mxu0 0
      %1922 = vmatprep.subr.bf16.mxu0 0
      %1923 = vmatpush1.bf16.msra.mxu0 0
      %1924 = vmatprep.subr.bf16.mxu0 0
      %1925 = vmatpush1.bf16.msra.mxu0 0
      %1926 = vmatprep.subr.bf16.mxu0 0
      %1927 = vmatpush1.bf16.msra.mxu0 0
      %1928 = vmatprep.subr.bf16.mxu0 0
      %1929 = vmatpush1.bf16.msra.mxu0 0
      %1930 = vmatprep.subr.bf16.mxu0 0
      %1931 = vmatpush1.bf16.msra.mxu0 0
      %1932 = vmatprep.subr.bf16.mxu0 0
      %1933 = vmatpush1.bf16.msra.mxu0 0
      %1934 = vmatprep.subr.bf16.mxu0 0
      %1935 = vmatpush1.bf16.msra.mxu0 0
      %1936 = vmatprep.subr.bf16.mxu0 0
      %1937 = vmatpush1.bf16.msra.mxu0 0
      %1938 = vmatprep.subr.bf16.mxu0 0
      %1939 = vmatpush1.bf16.msra.mxu0 0
      %1940 = vmatprep.subr.bf16.mxu0 0
      %1941 = vmatpush1.bf16.msra.mxu0 0
      %1942 = vmatprep.mubr.bf16.mxu0 0
      %1943 = vmatmul.mubr.bf16.gmra.mrb[0].mxu0 %v1905
      %v1944 = vpop.f32.mrb[0].mxu0
      %v1945 = vadd.f32 %v1329, %v1944
      %v1946 = vpop.f32.mrb[0].mxu0
      %v1947 = vpop.f32.mrb[0].mxu0
      %v1948 = vpop.f32.mrb[0].mxu0
      %1949 = vdwg.mxu0
      %v1951 = vsel %vm1810, %v1391, 0
      %v1954 = vsel %vm1814, %v1809, 0
      %1956 = vmatprep.subr.bf16.mxu0 0
      %1957 = vmatpush1.bf16.msra.mxu0 %v1954
      %1958 = vmatprep.subr.bf16.mxu0 0
      %1959 = vmatpush1.bf16.msra.mxu0 0
      %1960 = vmatprep.subr.bf16.mxu0 0
      %1961 = vmatpush1.bf16.msra.mxu0 0
      %1962 = vmatprep.subr.bf16.mxu0 0
      %1963 = vmatpush1.bf16.msra.mxu0 0
      %1964 = vmatprep.subr.bf16.mxu0 0
      %1965 = vmatpush1.bf16.msra.mxu0 0
      %1966 = vmatprep.subr.bf16.mxu0 0
      %1967 = vmatpush1.bf16.msra.mxu0 0
      %1968 = vmatprep.subr.bf16.mxu0 0
      %1969 = vmatpush1.bf16.msra.mxu0 0
      %1970 = vmatprep.subr.bf16.mxu0 0
      %1971 = vmatpush1.bf16.msra.mxu0 0
      %1972 = vmatprep.subr.bf16.mxu0 0
      %1973 = vmatpush1.bf16.msra.mxu0 0
      %1974 = vmatprep.subr.bf16.mxu0 0
      %1975 = vmatpush1.bf16.msra.mxu0 0
      %1976 = vmatprep.subr.bf16.mxu0 0
      %1977 = vmatpush1.bf16.msra.mxu0 0
      %1978 = vmatprep.subr.bf16.mxu0 0
      %1979 = vmatpush1.bf16.msra.mxu0 0
      %1980 = vmatprep.subr.bf16.mxu0 0
      %1981 = vmatpush1.bf16.msra.mxu0 0
      %1982 = vmatprep.subr.bf16.mxu0 0
      %1983 = vmatpush1.bf16.msra.mxu0 0
      %1984 = vmatprep.subr.bf16.mxu0 0
      %1985 = vmatpush1.bf16.msra.mxu0 0
      %1986 = vmatprep.subr.bf16.mxu0 0
      %1987 = vmatpush1.bf16.msra.mxu0 0
      %1988 = vmatprep.mubr.bf16.mxu0 0
      %1989 = vmatmul.mubr.bf16.gmra.mrb[0].mxu0 %v1951
      %v1990 = vpop.f32.mrb[0].mxu0
      %v1991 = vadd.f32 %v1329, %v1990
      %v1992 = vpop.f32.mrb[0].mxu0
      %v1993 = vpop.f32.mrb[0].mxu0
      %v1994 = vpop.f32.mrb[0].mxu0
      %1995 = vdwg.mxu0
      %v1996 = vsel %vm1810, %v1853, -inf
      %1997 = vmax.xlane.f32.xlu0 %v1996
      %v1998 = vpop.xlane.xlu0 %1997
      %v1999 = vsel %vm1810, %v1899, -inf
      %2000 = vmax.xlane.f32.xlu0 %v1999
      %v2001 = vpop.xlane.xlu0 %2000
      %v2002 = vsel %vm1810, %v1945, -inf
      %2003 = vmax.xlane.f32.xlu0 %v2002
      %v2004 = vpop.xlane.xlu0 %2003
      %v2005 = vsel %vm1810, %v1991, -inf
      %2006 = vmax.xlane.f32.xlu0 %v2005
      %v2007 = vpop.xlane.xlu0 %2006
      %v2008 = vsub.f32 %v1853, %v1998
      %v2009 = vsub.f32 %v1899, %v2001
      %v2010 = vsub.f32 %v1945, %v2004
      %v2011 = vsub.f32 %v1991, %v2007
      %v2012 = vmul.f32 %v2008, 1.442695
      %v2013 = vpow.pop %v2012
      %v2014 = vmul.f32 %v2009, 1.442695
      %v2015 = vpow.pop %v2014
      %v2016 = vmul.f32 %v2010, 1.442695
      %v2017 = vpow.pop %v2016
      %v2018 = vmul.f32 %v2011, 1.442695
      %v2019 = vpow.pop %v2018
      %v2020 = vsel %vm1810, %v2013, 0.0
      %2021 = vadd.xlane.f32.xlu0 %v2020
      %v2022 = vpop.xlane.xlu0 %2021
      %v2023 = vsel %vm1810, %v2015, 0.0
      %2024 = vadd.xlane.f32.xlu0 %v2023
      %v2025 = vpop.xlane.xlu0 %2024
      %v2026 = vsel %vm1810, %v2017, 0.0
      %2027 = vadd.xlane.f32.xlu0 %v2026
      %v2028 = vpop.xlane.xlu0 %2027
      %v2029 = vsel %vm1810, %v2019, 0.0
      %2030 = vadd.xlane.f32.xlu0 %v2029
      %v2031 = vpop.xlane.xlu0 %2030
      %v2032 = vrcp.pop %v2022
      %v2033 = vrcp.pop %v2025
      %v2034 = vrcp.pop %v2028
      %v2035 = vrcp.pop %v2031
      %v2036 = vmul.f32 %v2013, %v2032
      %v2037 = vmul.f32 %v2015, %v2033
      %v2038 = vmul.f32 %v2017, %v2034
      %v2039 = vmul.f32 %v2019, %v2035
      %v2040 = vpack.c.bf16 %v2036, %v2036
      %v2041 = vpack.c.bf16 %v2037, %v2037
      %v2042 = vpack.c.bf16 %v2038, %v2038
      %v2043 = vpack.c.bf16 %v2039, %v2039
      %v2044 = vcombine.low %v1318, %v1322
      %v2046 = vunpack.c.l.s4 1983009808
      %v2047 = vunpack.c.0.s8 %v2046
      %v2048 = vlaneseq
      %v2049 = vshrl.u32 %v2048, 7
      %v2050 = vsub.s32 %v2047, %v2049
      %v2051 = vrot.slane %v2044, %v2050
      %v2052 = vcombine.low %v1320, %v1324
      %v2054 = vunpack.c.l.s4 1983009808
      %v2055 = vunpack.c.0.s8 %v2054
      %v2056 = vlaneseq
      %v2057 = vshrl.u32 %v2056, 7
      %v2058 = vsub.s32 %v2055, %v2057
      %v2059 = vrot.slane %v2052, %v2058
      %v2060 = vcombine.low %v2051, %v2059
      %v2062 = vunpack.c.l.s4 1934713408
      %v2063 = vunpack.c.0.s8 %v2062
      %v2064 = vlaneseq
      %v2065 = vshrl.u32 %v2064, 7
      %v2066 = vsub.s32 %v2063, %v2065
      %v2067 = vrot.slane %v2060, %v2066
      %v2068 = vcombine.high %v2067, 0
      %v2069 = vcombine.low %v1319, %v1323
      %v2071 = vunpack.c.l.s4 1983009808
      %v2072 = vunpack.c.0.s8 %v2071
      %v2073 = vlaneseq
      %v2074 = vshrl.u32 %v2073, 7
      %v2075 = vsub.s32 %v2072, %v2074
      %v2076 = vrot.slane %v2069, %v2075
      %v2077 = vcombine.low %v1321, %v1325
      %v2079 = vunpack.c.l.s4 1983009808
      %v2080 = vunpack.c.0.s8 %v2079
      %v2081 = vlaneseq
      %v2082 = vshrl.u32 %v2081, 7
      %v2083 = vsub.s32 %v2080, %v2082
      %v2084 = vrot.slane %v2077, %v2083
      %v2085 = vcombine.low %v2076, %v2084
      %v2087 = vunpack.c.l.s4 1934713408
      %v2088 = vunpack.c.0.s8 %v2087
      %v2089 = vlaneseq
      %v2090 = vshrl.u32 %v2089, 7
      %v2091 = vsub.s32 %v2088, %v2090
      %v2092 = vrot.slane %v2085, %v2091
      %v2093 = vcombine.high %v2092, 0
      %v2096 = vpack.i.b16 %v2092, %v2067
      %v2097 = vshrl.u32 %v2067, 16
      %v2098 = vshrl.u32 %v2092, 16
      %v2099 = vpack.i.b16 %v2098, %v2097
      %v2102 = vpack.i.b16 %v2093, %v2068
      %v2103 = vshrl.u32 %v2068, 16
      %v2104 = vshrl.u32 %v2093, 16
      %v2105 = vpack.i.b16 %v2104, %v2103
      %v2107 = vsel %vm1810, %v2040, 0
      %v2110 = vsel %vm1814, %v2096, 0
      %2112 = vmatprep.subr.bf16.mxu0 0
      %2113 = vmatpush1.bf16.msra.mxu0 %v2110
      %2114 = vmatprep.subr.bf16.mxu0 0
      %2115 = vmatpush1.bf16.msra.mxu0 0
      %2116 = vmatprep.subr.bf16.mxu0 0
      %2117 = vmatpush1.bf16.msra.mxu0 0
      %2118 = vmatprep.subr.bf16.mxu0 0
      %2119 = vmatpush1.bf16.msra.mxu0 0
      %2120 = vmatprep.subr.bf16.mxu0 0
      %2121 = vmatpush1.bf16.msra.mxu0 0
      %2122 = vmatprep.subr.bf16.mxu0 0
      %2123 = vmatpush1.bf16.msra.mxu0 0
      %2124 = vmatprep.subr.bf16.mxu0 0
      %2125 = vmatpush1.bf16.msra.mxu0 0
      %2126 = vmatprep.subr.bf16.mxu0 0
      %2127 = vmatpush1.bf16.msra.mxu0 0
      %2128 = vmatprep.subr.bf16.mxu0 0
      %2129 = vmatpush1.bf16.msra.mxu0 0
      %2130 = vmatprep.subr.bf16.mxu0 0
      %2131 = vmatpush1.bf16.msra.mxu0 0
      %2132 = vmatprep.subr.bf16.mxu0 0
      %2133 = vmatpush1.bf16.msra.mxu0 0
      %2134 = vmatprep.subr.bf16.mxu0 0
      %2135 = vmatpush1.bf16.msra.mxu0 0
      %2136 = vmatprep.subr.bf16.mxu0 0
      %2137 = vmatpush1.bf16.msra.mxu0 0
      %2138 = vmatprep.subr.bf16.mxu0 0
      %2139 = vmatpush1.bf16.msra.mxu0 0
      %2140 = vmatprep.subr.bf16.mxu0 0
      %2141 = vmatpush1.bf16.msra.mxu0 0
      %2142 = vmatprep.subr.bf16.mxu0 0
      %2143 = vmatpush1.bf16.msra.mxu0 0
      %2144 = vmatprep.mubr.bf16.mxu0 0
      %2145 = vmatmul.mubr.bf16.gmra.mrb[0].mxu0 %v2107
      %v2146 = vpop.f32.mrb[0].mxu0
      %v2147 = vadd.f32 0.0, %v2146
      %v2148 = vpop.f32.mrb[0].mxu0
      %v2149 = vpop.f32.mrb[0].mxu0
      %v2150 = vpop.f32.mrb[0].mxu0
      %2151 = vdwg.mxu0
      %v2153 = vsel %vm1810, %v2041, 0
      %v2156 = vsel %vm1814, %v2099, 0
      %2158 = vmatprep.subr.bf16.mxu0 0
      %2159 = vmatpush1.bf16.msra.mxu0 %v2156
      %2160 = vmatprep.subr.bf16.mxu0 0
      %2161 = vmatpush1.bf16.msra.mxu0 0
      %2162 = vmatprep.subr.bf16.mxu0 0
      %2163 = vmatpush1.bf16.msra.mxu0 0
      %2164 = vmatprep.subr.bf16.mxu0 0
      %2165 = vmatpush1.bf16.msra.mxu0 0
      %2166 = vmatprep.subr.bf16.mxu0 0
      %2167 = vmatpush1.bf16.msra.mxu0 0
      %2168 = vmatprep.subr.bf16.mxu0 0
      %2169 = vmatpush1.bf16.msra.mxu0 0
      %2170 = vmatprep.subr.bf16.mxu0 0
      %2171 = vmatpush1.bf16.msra.mxu0 0
      %2172 = vmatprep.subr.bf16.mxu0 0
      %2173 = vmatpush1.bf16.msra.mxu0 0
      %2174 = vmatprep.subr.bf16.mxu0 0
      %2175 = vmatpush1.bf16.msra.mxu0 0
      %2176 = vmatprep.subr.bf16.mxu0 0
      %2177 = vmatpush1.bf16.msra.mxu0 0
      %2178 = vmatprep.subr.bf16.mxu0 0
      %2179 = vmatpush1.bf16.msra.mxu0 0
      %2180 = vmatprep.subr.bf16.mxu0 0
      %2181 = vmatpush1.bf16.msra.mxu0 0
      %2182 = vmatprep.subr.bf16.mxu0 0
      %2183 = vmatpush1.bf16.msra.mxu0 0
      %2184 = vmatprep.subr.bf16.mxu0 0
      %2185 = vmatpush1.bf16.msra.mxu0 0
      %2186 = vmatprep.subr.bf16.mxu0 0
      %2187 = vmatpush1.bf16.msra.mxu0 0
      %2188 = vmatprep.subr.bf16.mxu0 0
      %2189 = vmatpush1.bf16.msra.mxu0 0
      %2190 = vmatprep.mubr.bf16.mxu0 0
      %2191 = vmatmul.mubr.bf16.gmra.mrb[0].mxu0 %v2153
      %v2192 = vpop.f32.mrb[0].mxu0
      %v2193 = vadd.f32 0.0, %v2192
      %v2194 = vpop.f32.mrb[0].mxu0
      %v2195 = vpop.f32.mrb[0].mxu0
      %v2196 = vpop.f32.mrb[0].mxu0
      %2197 = vdwg.mxu0
      %v2199 = vsel %vm1810, %v2042, 0
      %v2202 = vsel %vm1814, %v2102, 0
      %2204 = vmatprep.subr.bf16.mxu0 0
      %2205 = vmatpush1.bf16.msra.mxu0 %v2202
      %2206 = vmatprep.subr.bf16.mxu0 0
      %2207 = vmatpush1.bf16.msra.mxu0 0
      %2208 = vmatprep.subr.bf16.mxu0 0
      %2209 = vmatpush1.bf16.msra.mxu0 0
      %2210 = vmatprep.subr.bf16.mxu0 0
      %2211 = vmatpush1.bf16.msra.mxu0 0
      %2212 = vmatprep.subr.bf16.mxu0 0
      %2213 = vmatpush1.bf16.msra.mxu0 0
      %2214 = vmatprep.subr.bf16.mxu0 0
      %2215 = vmatpush1.bf16.msra.mxu0 0
      %2216 = vmatprep.subr.bf16.mxu0 0
      %2217 = vmatpush1.bf16.msra.mxu0 0
      %2218 = vmatprep.subr.bf16.mxu0 0
      %2219 = vmatpush1.bf16.msra.mxu0 0
      %2220 = vmatprep.subr.bf16.mxu0 0
      %2221 = vmatpush1.bf16.msra.mxu0 0
      %2222 = vmatprep.subr.bf16.mxu0 0
      %2223 = vmatpush1.bf16.msra.mxu0 0
      %2224 = vmatprep.subr.bf16.mxu0 0
      %2225 = vmatpush1.bf16.msra.mxu0 0
      %2226 = vmatprep.subr.bf16.mxu0 0
      %2227 = vmatpush1.bf16.msra.mxu0 0
      %2228 = vmatprep.subr.bf16.mxu0 0
      %2229 = vmatpush1.bf16.msra.mxu0 0
      %2230 = vmatprep.subr.bf16.mxu0 0
      %2231 = vmatpush1.bf16.msra.mxu0 0
      %2232 = vmatprep.subr.bf16.mxu0 0
      %2233 = vmatpush1.bf16.msra.mxu0 0
      %2234 = vmatprep.subr.bf16.mxu0 0
      %2235 = vmatpush1.bf16.msra.mxu0 0
      %2236 = vmatprep.mubr.bf16.mxu0 0
      %2237 = vmatmul.mubr.bf16.gmra.mrb[0].mxu0 %v2199
      %v2238 = vpop.f32.mrb[0].mxu0
      %v2239 = vadd.f32 0.0, %v2238
      %v2240 = vpop.f32.mrb[0].mxu0
      %v2241 = vpop.f32.mrb[0].mxu0
      %v2242 = vpop.f32.mrb[0].mxu0
      %2243 = vdwg.mxu0
      %v2245 = vsel %vm1810, %v2043, 0
      %v2248 = vsel %vm1814, %v2105, 0
      %2250 = vmatprep.subr.bf16.mxu0 0
      %2251 = vmatpush1.bf16.msra.mxu0 %v2248
      %2252 = vmatprep.subr.bf16.mxu0 0
      %2253 = vmatpush1.bf16.msra.mxu0 0
      %2254 = vmatprep.subr.bf16.mxu0 0
      %2255 = vmatpush1.bf16.msra.mxu0 0
      %2256 = vmatprep.subr.bf16.mxu0 0
      %2257 = vmatpush1.bf16.msra.mxu0 0
      %2258 = vmatprep.subr.bf16.mxu0 0
      %2259 = vmatpush1.bf16.msra.mxu0 0
      %2260 = vmatprep.subr.bf16.mxu0 0
      %2261 = vmatpush1.bf16.msra.mxu0 0
      %2262 = vmatprep.subr.bf16.mxu0 0
      %2263 = vmatpush1.bf16.msra.mxu0 0
      %2264 = vmatprep.subr.bf16.mxu0 0
      %2265 = vmatpush1.bf16.msra.mxu0 0
      %2266 = vmatprep.subr.bf16.mxu0 0
      %2267 = vmatpush1.bf16.msra.mxu0 0
      %2268 = vmatprep.subr.bf16.mxu0 0
      %2269 = vmatpush1.bf16.msra.mxu0 0
      %2270 = vmatprep.subr.bf16.mxu0 0
      %2271 = vmatpush1.bf16.msra.mxu0 0
      %2272 = vmatprep.subr.bf16.mxu0 0
      %2273 = vmatpush1.bf16.msra.mxu0 0
      %2274 = vmatprep.subr.bf16.mxu0 0
      %2275 = vmatpush1.bf16.msra.mxu0 0
      %2276 = vmatprep.subr.bf16.mxu0 0
      %2277 = vmatpush1.bf16.msra.mxu0 0
      %2278 = vmatprep.subr.bf16.mxu0 0
      %2279 = vmatpush1.bf16.msra.mxu0 0
      %2280 = vmatprep.subr.bf16.mxu0 0
      %2281 = vmatpush1.bf16.msra.mxu0 0
      %2282 = vmatprep.mubr.bf16.mxu0 0
      %2283 = vmatmul.mubr.bf16.gmra.mrb[0].mxu0 %v2245
      %v2284 = vpop.f32.mrb[0].mxu0
      %v2285 = vadd.f32 0.0, %v2284
      %v2286 = vpop.f32.mrb[0].mxu0
      %v2287 = vpop.f32.mrb[0].mxu0
      %v2288 = vpop.f32.mrb[0].mxu0
      %2289 = vdwg.mxu0
      %v2290 = vpack.c.bf16 %v2147, %v2147
      %v2291 = vpack.c.bf16 %v2193, %v2193
      %v2292 = vpack.c.bf16 %v2239, %v2239
      %v2293 = vpack.c.bf16 %v2285, %v2285
      %v2295 = vsel %vm1810, %v2290, 0
      %v2298 = vsel %vm1814, %v1297, 0
      %2300 = vmatprep.subr.bf16.mxu0 0
      %2301 = vmatpush1.bf16.msra.mxu0 %v2298
      %2302 = vmatprep.subr.bf16.mxu0 0
      %2303 = vmatpush1.bf16.msra.mxu0 0
      %2304 = vmatprep.subr.bf16.mxu0 0
      %2305 = vmatpush1.bf16.msra.mxu0 0
      %2306 = vmatprep.subr.bf16.mxu0 0
      %2307 = vmatpush1.bf16.msra.mxu0 0
      %2308 = vmatprep.subr.bf16.mxu0 0
      %2309 = vmatpush1.bf16.msra.mxu0 0
      %2310 = vmatprep.subr.bf16.mxu0 0
      %2311 = vmatpush1.bf16.msra.mxu0 0
      %2312 = vmatprep.subr.bf16.mxu0 0
      %2313 = vmatpush1.bf16.msra.mxu0 0
      %2314 = vmatprep.subr.bf16.mxu0 0
      %2315 = vmatpush1.bf16.msra.mxu0 0
      %2316 = vmatprep.subr.bf16.mxu0 0
      %2317 = vmatpush1.bf16.msra.mxu0 0
      %2318 = vmatprep.subr.bf16.mxu0 0
      %2319 = vmatpush1.bf16.msra.mxu0 0
      %2320 = vmatprep.subr.bf16.mxu0 0
      %2321 = vmatpush1.bf16.msra.mxu0 0
      %2322 = vmatprep.subr.bf16.mxu0 0
      %2323 = vmatpush1.bf16.msra.mxu0 0
      %2324 = vmatprep.subr.bf16.mxu0 0
      %2325 = vmatpush1.bf16.msra.mxu0 0
      %2326 = vmatprep.subr.bf16.mxu0 0
      %2327 = vmatpush1.bf16.msra.mxu0 0
      %2328 = vmatprep.subr.bf16.mxu0 0
      %2329 = vmatpush1.bf16.msra.mxu0 0
      %2330 = vmatprep.subr.bf16.mxu0 0
      %2331 = vmatpush1.bf16.msra.mxu0 0
      %2332 = vmatprep.mubr.bf16.mxu0 0
      %2333 = vmatmul.mubr.bf16.gmra.mrb[0].mxu0 %v2295
      %v2334 = vpop.f32.mrb[0].mxu0
      %v2335 = vadd.f32 0.0, %v2334
      %v2336 = vpop.f32.mrb[0].mxu0
      %v2337 = vpop.f32.mrb[0].mxu0
      %v2338 = vpop.f32.mrb[0].mxu0
      %2339 = vdwg.mxu0
      %v2341 = vsel %vm1810, %v2291, 0
      %v2344 = vsel %vm1814, %v1298, 0
      %2346 = vmatprep.subr.bf16.mxu0 0
      %2347 = vmatpush1.bf16.msra.mxu0 %v2344
      %2348 = vmatprep.subr.bf16.mxu0 0
      %2349 = vmatpush1.bf16.msra.mxu0 0
      %2350 = vmatprep.subr.bf16.mxu0 0
      %2351 = vmatpush1.bf16.msra.mxu0 0
      %2352 = vmatprep.subr.bf16.mxu0 0
      %2353 = vmatpush1.bf16.msra.mxu0 0
      %2354 = vmatprep.subr.bf16.mxu0 0
      %2355 = vmatpush1.bf16.msra.mxu0 0
      %2356 = vmatprep.subr.bf16.mxu0 0
      %2357 = vmatpush1.bf16.msra.mxu0 0
      %2358 = vmatprep.subr.bf16.mxu0 0
      %2359 = vmatpush1.bf16.msra.mxu0 0
      %2360 = vmatprep.subr.bf16.mxu0 0
      %2361 = vmatpush1.bf16.msra.mxu0 0
      %2362 = vmatprep.subr.bf16.mxu0 0
      %2363 = vmatpush1.bf16.msra.mxu0 0
      %2364 = vmatprep.subr.bf16.mxu0 0
      %2365 = vmatpush1.bf16.msra.mxu0 0
      %2366 = vmatprep.subr.bf16.mxu0 0
      %2367 = vmatpush1.bf16.msra.mxu0 0
      %2368 = vmatprep.subr.bf16.mxu0 0
      %2369 = vmatpush1.bf16.msra.mxu0 0
      %2370 = vmatprep.subr.bf16.mxu0 0
      %2371 = vmatpush1.bf16.msra.mxu0 0
      %2372 = vmatprep.subr.bf16.mxu0 0
      %2373 = vmatpush1.bf16.msra.mxu0 0
      %2374 = vmatprep.subr.bf16.mxu0 0
      %2375 = vmatpush1.bf16.msra.mxu0 0
      %2376 = vmatprep.subr.bf16.mxu0 0
      %2377 = vmatpush1.bf16.msra.mxu0 0
      %2378 = vmatprep.mubr.bf16.mxu0 0
      %2379 = vmatmul.mubr.bf16.gmra.mrb[0].mxu0 %v2341
      %v2380 = vpop.f32.mrb[0].mxu0
      %v2381 = vadd.f32 0.0, %v2380
      %v2382 = vpop.f32.mrb[0].mxu0
      %v2383 = vpop.f32.mrb[0].mxu0
      %v2384 = vpop.f32.mrb[0].mxu0
      %2385 = vdwg.mxu0
      %v2387 = vsel %vm1810, %v2292, 0
      %v2390 = vsel %vm1814, %v1299, 0
      %2392 = vmatprep.subr.bf16.mxu0 0
      %2393 = vmatpush1.bf16.msra.mxu0 %v2390
      %2394 = vmatprep.subr.bf16.mxu0 0
      %2395 = vmatpush1.bf16.msra.mxu0 0
      %2396 = vmatprep.subr.bf16.mxu0 0
      %2397 = vmatpush1.bf16.msra.mxu0 0
      %2398 = vmatprep.subr.bf16.mxu0 0
      %2399 = vmatpush1.bf16.msra.mxu0 0
      %2400 = vmatprep.subr.bf16.mxu0 0
      %2401 = vmatpush1.bf16.msra.mxu0 0
      %2402 = vmatprep.subr.bf16.mxu0 0
      %2403 = vmatpush1.bf16.msra.mxu0 0
      %2404 = vmatprep.subr.bf16.mxu0 0
      %2405 = vmatpush1.bf16.msra.mxu0 0
      %2406 = vmatprep.subr.bf16.mxu0 0
      %2407 = vmatpush1.bf16.msra.mxu0 0
      %2408 = vmatprep.subr.bf16.mxu0 0
      %2409 = vmatpush1.bf16.msra.mxu0 0
      %2410 = vmatprep.subr.bf16.mxu0 0
      %2411 = vmatpush1.bf16.msra.mxu0 0
      %2412 = vmatprep.subr.bf16.mxu0 0
      %2413 = vmatpush1.bf16.msra.mxu0 0
      %2414 = vmatprep.subr.bf16.mxu0 0
      %2415 = vmatpush1.bf16.msra.mxu0 0
      %2416 = vmatprep.subr.bf16.mxu0 0
      %2417 = vmatpush1.bf16.msra.mxu0 0
      %2418 = vmatprep.subr.bf16.mxu0 0
      %2419 = vmatpush1.bf16.msra.mxu0 0
      %2420 = vmatprep.subr.bf16.mxu0 0
      %2421 = vmatpush1.bf16.msra.mxu0 0
      %2422 = vmatprep.subr.bf16.mxu0 0
      %2423 = vmatpush1.bf16.msra.mxu0 0
      %2424 = vmatprep.mubr.bf16.mxu0 0
      %2425 = vmatmul.mubr.bf16.gmra.mrb[0].mxu0 %v2387
      %v2426 = vpop.f32.mrb[0].mxu0
      %v2427 = vadd.f32 0.0, %v2426
      %v2428 = vpop.f32.mrb[0].mxu0
      %v2429 = vpop.f32.mrb[0].mxu0
      %v2430 = vpop.f32.mrb[0].mxu0
      %2431 = vdwg.mxu0
      %v2433 = vsel %vm1810, %v2293, 0
      %v2436 = vsel %vm1814, %v1300, 0
      %2438 = vmatprep.subr.bf16.mxu0 0
      %2439 = vmatpush1.bf16.msra.mxu0 %v2436
      %2440 = vmatprep.subr.bf16.mxu0 0
      %2441 = vmatpush1.bf16.msra.mxu0 0
      %2442 = vmatprep.subr.bf16.mxu0 0
      %2443 = vmatpush1.bf16.msra.mxu0 0
      %2444 = vmatprep.subr.bf16.mxu0 0
      %2445 = vmatpush1.bf16.msra.mxu0 0
      %2446 = vmatprep.subr.bf16.mxu0 0
      %2447 = vmatpush1.bf16.msra.mxu0 0
      %2448 = vmatprep.subr.bf16.mxu0 0
      %2449 = vmatpush1.bf16.msra.mxu0 0
      %2450 = vmatprep.subr.bf16.mxu0 0
      %2451 = vmatpush1.bf16.msra.mxu0 0
      %2452 = vmatprep.subr.bf16.mxu0 0
      %2453 = vmatpush1.bf16.msra.mxu0 0
      %2454 = vmatprep.subr.bf16.mxu0 0
      %2455 = vmatpush1.bf16.msra.mxu0 0
      %2456 = vmatprep.subr.bf16.mxu0 0
      %2457 = vmatpush1.bf16.msra.mxu0 0
      %2458 = vmatprep.subr.bf16.mxu0 0
      %2459 = vmatpush1.bf16.msra.mxu0 0
      %2460 = vmatprep.subr.bf16.mxu0 0
      %2461 = vmatpush1.bf16.msra.mxu0 0
      %2462 = vmatprep.subr.bf16.mxu0 0
      %2463 = vmatpush1.bf16.msra.mxu0 0
      %2464 = vmatprep.subr.bf16.mxu0 0
      %2465 = vmatpush1.bf16.msra.mxu0 0
      %2466 = vmatprep.subr.bf16.mxu0 0
      %2467 = vmatpush1.bf16.msra.mxu0 0
      %2468 = vmatprep.subr.bf16.mxu0 0
      %2469 = vmatpush1.bf16.msra.mxu0 0
      %2470 = vmatprep.mubr.bf16.mxu0 0
      %2471 = vmatmul.mubr.bf16.gmra.mrb[0].mxu0 %v2433
      %v2472 = vpop.f32.mrb[0].mxu0
      %v2473 = vadd.f32 0.0, %v2472
      %v2474 = vpop.f32.mrb[0].mxu0
      %v2475 = vpop.f32.mrb[0].mxu0
      %v2476 = vpop.f32.mrb[0].mxu0
      %2477 = vdwg.mxu0
      %v2478 = vsel %vm760, %v2335, 0.0
      %v2479 = vsel %vm760, %v2381, 0.0
      %v2480 = vadd.f32 %v2478, %v2479
      %v2481 = vsel %vm760, %v2427, 0.0
      %v2482 = vadd.f32 %v2480, %v2481
      %v2483 = vsel %vm760, %v2473, 0.0
      %v2484 = vadd.f32 %v2482, %v2483
      %2485 = vst.msk [vmem:[#allocation3] sm:$0xff] %vm760, %v2484
      %v2486 = vpack.c.bf16 %v935, %v935
      %v2487 = vpack.c.bf16 %v959, %v959
      %v2488 = vpack.c.bf16 %v942, %v942
      %v2489 = vpack.c.bf16 %v960, %v960
      %v2490 = vpack.c.bf16 %v951, %v951
      %v2491 = vpack.c.bf16 %v961, %v961
      %v2492 = vpack.c.bf16 %v958, %v958
      %v2493 = vpack.c.bf16 %v962, %v962
      %v2494 = vpack.c.bf16 %v1109, %v1109
      %v2495 = vpack.c.bf16 %v1133, %v1133
      %v2496 = vpack.c.bf16 %v1116, %v1116
      %v2497 = vpack.c.bf16 %v1134, %v1134
      %v2498 = vpack.c.bf16 %v1125, %v1125
      %v2499 = vpack.c.bf16 %v1135, %v1135
      %v2500 = vpack.c.bf16 %v1132, %v1132
      %v2501 = vpack.c.bf16 %v1136, %v1136
      %v2502 = vpack.c.bf16 %v1269, %v1269
      %v2503 = vpack.c.bf16 %v1293, %v1293
      %v2504 = vpack.c.bf16 %v1276, %v1276
      %v2505 = vpack.c.bf16 %v1294, %v1294
      %v2506 = vpack.c.bf16 %v1285, %v1285
      %v2507 = vpack.c.bf16 %v1295, %v1295
      %v2508 = vpack.c.bf16 %v1292, %v1292
      %v2509 = vpack.c.bf16 %v1296, %v1296
      %v2510 = vlaneseq
      %v2511 = vshrl.u32 %v2510, 7
      %v2512 = vsub.s32 1, %v2511
      %v2513 = vrot.slane %v1301, %v2512
      %v2514 = vcombine.low %v2486, %v2490
      %v2516 = vunpack.c.l.s4 1983009808
      %v2517 = vunpack.c.0.s8 %v2516
      %v2518 = vlaneseq
      %v2519 = vshrl.u32 %v2518, 7
      %v2520 = vsub.s32 %v2517, %v2519
      %v2521 = vrot.slane %v2514, %v2520
      %v2522 = vcombine.low %v2488, %v2492
      %v2524 = vunpack.c.l.s4 1983009808
      %v2525 = vunpack.c.0.s8 %v2524
      %v2526 = vlaneseq
      %v2527 = vshrl.u32 %v2526, 7
      %v2528 = vsub.s32 %v2525, %v2527
      %v2529 = vrot.slane %v2522, %v2528
      %v2530 = vcombine.low %v2521, %v2529
      %v2532 = vunpack.c.l.s4 1934713408
      %v2533 = vunpack.c.0.s8 %v2532
      %v2534 = vlaneseq
      %v2535 = vshrl.u32 %v2534, 7
      %v2536 = vsub.s32 %v2533, %v2535
      %v2537 = vrot.slane %v2530, %v2536
      %v2538 = vcombine.high %v2537, 0
      %v2539 = vcombine.low %v2487, %v2491
      %v2541 = vunpack.c.l.s4 1983009808
      %v2542 = vunpack.c.0.s8 %v2541
      %v2543 = vlaneseq
      %v2544 = vshrl.u32 %v2543, 7
      %v2545 = vsub.s32 %v2542, %v2544
      %v2546 = vrot.slane %v2539, %v2545
      %v2547 = vcombine.low %v2489, %v2493
      %v2549 = vunpack.c.l.s4 1983009808
      %v2550 = vunpack.c.0.s8 %v2549
      %v2551 = vlaneseq
      %v2552 = vshrl.u32 %v2551, 7
      %v2553 = vsub.s32 %v2550, %v2552
      %v2554 = vrot.slane %v2547, %v2553
      %v2555 = vcombine.low %v2546, %v2554
      %v2557 = vunpack.c.l.s4 1934713408
      %v2558 = vunpack.c.0.s8 %v2557
      %v2559 = vlaneseq
      %v2560 = vshrl.u32 %v2559, 7
      %v2561 = vsub.s32 %v2558, %v2560
      %v2562 = vrot.slane %v2555, %v2561
      %v2563 = vcombine.high %v2562, 0
      %v2566 = vpack.i.b16 %v2562, %v2537
      %v2567 = vshrl.u32 %v2537, 16
      %v2568 = vshrl.u32 %v2562, 16
      %v2569 = vpack.i.b16 %v2568, %v2567
      %v2572 = vpack.i.b16 %v2563, %v2538
      %v2573 = vshrl.u32 %v2538, 16
      %v2574 = vshrl.u32 %v2563, 16
      %v2575 = vpack.i.b16 %v2574, %v2573
      %2576 = vxpose.xlu0.c.b16.start [1/8] %v2494, 128
      %2577 = vxpose.xlu0.c.b16.cont [2/8] 0, 128
      %2578 = vxpose.xlu0.c.b16.cont [3/8] 0, 128
      %2579 = vxpose.xlu0.c.b16.cont [4/8] 0, 128
      %2580 = vxpose.xlu0.c.b16.cont [5/8] 0, 128
      %2581 = vxpose.xlu0.c.b16.cont [6/8] 0, 128
      %2582 = vxpose.xlu0.c.b16.cont [7/8] 0, 128
      %2583 = vxpose.xlu0.c.b16.end [8/8] 0, 128
      %v2584 = vpop.trf.xlu0
      %v2585 = vpop.trf.xlu0
      %v2586 = vpop.trf.xlu0
      %v2587 = vpop.trf.xlu0
      %v2588 = vpop.trf.xlu0
      %v2589 = vpop.trf.xlu0
      %v2590 = vpop.trf.xlu0
      %v2591 = vpop.trf.xlu0
      %2592 = vxpose.xlu0.c.b16.start [1/8] %v2495, 128
      %2593 = vxpose.xlu0.c.b16.cont [2/8] 0, 128
      %2594 = vxpose.xlu0.c.b16.cont [3/8] 0, 128
      %2595 = vxpose.xlu0.c.b16.cont [4/8] 0, 128
      %2596 = vxpose.xlu0.c.b16.cont [5/8] 0, 128
      %2597 = vxpose.xlu0.c.b16.cont [6/8] 0, 128
      %2598 = vxpose.xlu0.c.b16.cont [7/8] 0, 128
      %2599 = vxpose.xlu0.c.b16.end [8/8] 0, 128
      %v2600 = vpop.trf.xlu0
      %v2601 = vpop.trf.xlu0
      %v2602 = vpop.trf.xlu0
      %v2603 = vpop.trf.xlu0
      %v2604 = vpop.trf.xlu0
      %v2605 = vpop.trf.xlu0
      %v2606 = vpop.trf.xlu0
      %v2607 = vpop.trf.xlu0
      %2608 = vxpose.xlu0.c.b16.start [1/8] %v2496, 128
      %2609 = vxpose.xlu0.c.b16.cont [2/8] 0, 128
      %2610 = vxpose.xlu0.c.b16.cont [3/8] 0, 128
      %2611 = vxpose.xlu0.c.b16.cont [4/8] 0, 128
      %2612 = vxpose.xlu0.c.b16.cont [5/8] 0, 128
      %2613 = vxpose.xlu0.c.b16.cont [6/8] 0, 128
      %2614 = vxpose.xlu0.c.b16.cont [7/8] 0, 128
      %2615 = vxpose.xlu0.c.b16.end [8/8] 0, 128
      %v2616 = vpop.trf.xlu0
      %v2617 = vpop.trf.xlu0
      %v2618 = vpop.trf.xlu0
      %v2619 = vpop.trf.xlu0
      %v2620 = vpop.trf.xlu0
      %v2621 = vpop.trf.xlu0
      %v2622 = vpop.trf.xlu0
      %v2623 = vpop.trf.xlu0
      %2624 = vxpose.xlu0.c.b16.start [1/8] %v2497, 128
      %2625 = vxpose.xlu0.c.b16.cont [2/8] 0, 128
      %2626 = vxpose.xlu0.c.b16.cont [3/8] 0, 128
      %2627 = vxpose.xlu0.c.b16.cont [4/8] 0, 128
      %2628 = vxpose.xlu0.c.b16.cont [5/8] 0, 128
      %2629 = vxpose.xlu0.c.b16.cont [6/8] 0, 128
      %2630 = vxpose.xlu0.c.b16.cont [7/8] 0, 128
      %2631 = vxpose.xlu0.c.b16.end [8/8] 0, 128
      %v2632 = vpop.trf.xlu0
      %v2633 = vpop.trf.xlu0
      %v2634 = vpop.trf.xlu0
      %v2635 = vpop.trf.xlu0
      %v2636 = vpop.trf.xlu0
      %v2637 = vpop.trf.xlu0
      %v2638 = vpop.trf.xlu0
      %v2639 = vpop.trf.xlu0
      %2640 = vxpose.xlu0.c.b16.start [1/8] %v2498, 128
      %2641 = vxpose.xlu0.c.b16.cont [2/8] 0, 128
      %2642 = vxpose.xlu0.c.b16.cont [3/8] 0, 128
      %2643 = vxpose.xlu0.c.b16.cont [4/8] 0, 128
      %2644 = vxpose.xlu0.c.b16.cont [5/8] 0, 128
      %2645 = vxpose.xlu0.c.b16.cont [6/8] 0, 128
      %2646 = vxpose.xlu0.c.b16.cont [7/8] 0, 128
      %2647 = vxpose.xlu0.c.b16.end [8/8] 0, 128
      %v2648 = vpop.trf.xlu0
      %v2649 = vpop.trf.xlu0
      %v2650 = vpop.trf.xlu0
      %v2651 = vpop.trf.xlu0
      %v2652 = vpop.trf.xlu0
      %v2653 = vpop.trf.xlu0
      %v2654 = vpop.trf.xlu0
      %v2655 = vpop.trf.xlu0
      %2656 = vxpose.xlu0.c.b16.start [1/8] %v2499, 128
      %2657 = vxpose.xlu0.c.b16.cont [2/8] 0, 128
      %2658 = vxpose.xlu0.c.b16.cont [3/8] 0, 128
      %2659 = vxpose.xlu0.c.b16.cont [4/8] 0, 128
      %2660 = vxpose.xlu0.c.b16.cont [5/8] 0, 128
      %2661 = vxpose.xlu0.c.b16.cont [6/8] 0, 128
      %2662 = vxpose.xlu0.c.b16.cont [7/8] 0, 128
      %2663 = vxpose.xlu0.c.b16.end [8/8] 0, 128
      %v2664 = vpop.trf.xlu0
      %v2665 = vpop.trf.xlu0
      %v2666 = vpop.trf.xlu0
      %v2667 = vpop.trf.xlu0
      %v2668 = vpop.trf.xlu0
      %v2669 = vpop.trf.xlu0
      %v2670 = vpop.trf.xlu0
      %v2671 = vpop.trf.xlu0
      %2672 = vxpose.xlu0.c.b16.start [1/8] %v2500, 128
      %2673 = vxpose.xlu0.c.b16.cont [2/8] 0, 128
      %2674 = vxpose.xlu0.c.b16.cont [3/8] 0, 128
      %2675 = vxpose.xlu0.c.b16.cont [4/8] 0, 128
      %2676 = vxpose.xlu0.c.b16.cont [5/8] 0, 128
      %2677 = vxpose.xlu0.c.b16.cont [6/8] 0, 128
      %2678 = vxpose.xlu0.c.b16.cont [7/8] 0, 128
      %2679 = vxpose.xlu0.c.b16.end [8/8] 0, 128
      %v2680 = vpop.trf.xlu0
      %v2681 = vpop.trf.xlu0
      %v2682 = vpop.trf.xlu0
      %v2683 = vpop.trf.xlu0
      %v2684 = vpop.trf.xlu0
      %v2685 = vpop.trf.xlu0
      %v2686 = vpop.trf.xlu0
      %v2687 = vpop.trf.xlu0
      %2688 = vxpose.xlu0.c.b16.start [1/8] %v2501, 128
      %2689 = vxpose.xlu0.c.b16.cont [2/8] 0, 128
      %2690 = vxpose.xlu0.c.b16.cont [3/8] 0, 128
      %2691 = vxpose.xlu0.c.b16.cont [4/8] 0, 128
      %2692 = vxpose.xlu0.c.b16.cont [5/8] 0, 128
      %2693 = vxpose.xlu0.c.b16.cont [6/8] 0, 128
      %2694 = vxpose.xlu0.c.b16.cont [7/8] 0, 128
      %2695 = vxpose.xlu0.c.b16.end [8/8] 0, 128
      %v2696 = vpop.trf.xlu0
      %v2697 = vpop.trf.xlu0
      %v2698 = vpop.trf.xlu0
      %v2699 = vpop.trf.xlu0
      %v2700 = vpop.trf.xlu0
      %v2701 = vpop.trf.xlu0
      %v2702 = vpop.trf.xlu0
      %v2703 = vpop.trf.xlu0
      %v2704 = vcombine.low %v2584, %v2648
      %v2706 = vunpack.c.l.s4 1983009808
      %v2707 = vunpack.c.0.s8 %v2706
      %v2708 = vlaneseq
      %v2709 = vshrl.u32 %v2708, 7
      %v2710 = vsub.s32 %v2707, %v2709
      %v2711 = vrot.slane %v2704, %v2710
      %v2712 = vcombine.low %v2616, %v2680
      %v2714 = vunpack.c.l.s4 1983009808
      %v2715 = vunpack.c.0.s8 %v2714
      %v2716 = vlaneseq
      %v2717 = vshrl.u32 %v2716, 7
      %v2718 = vsub.s32 %v2715, %v2717
      %v2719 = vrot.slane %v2712, %v2718
      %v2720 = vcombine.low %v2711, %v2719
      %v2721 = vcombine.high %v2711, %v2719
      %v2723 = vunpack.c.l.s4 1934713408
      %v2724 = vunpack.c.0.s8 %v2723
      %v2725 = vlaneseq
      %v2726 = vshrl.u32 %v2725, 7
      %v2727 = vsub.s32 %v2724, %v2726
      %v2728 = vrot.slane %v2720, %v2727
      %v2730 = vunpack.c.l.s4 1934713408
      %v2731 = vunpack.c.0.s8 %v2730
      %v2732 = vlaneseq
      %v2733 = vshrl.u32 %v2732, 7
      %v2734 = vsub.s32 %v2731, %v2733
      %v2735 = vrot.slane %v2721, %v2734
      %v2736 = vcombine.high %v2728, 0
      %v2737 = vcombine.high %v2735, 0
      %v2738 = vcombine.low %v2600, %v2664
      %v2740 = vunpack.c.l.s4 1983009808
      %v2741 = vunpack.c.0.s8 %v2740
      %v2742 = vlaneseq
      %v2743 = vshrl.u32 %v2742, 7
      %v2744 = vsub.s32 %v2741, %v2743
      %v2745 = vrot.slane %v2738, %v2744
      %v2746 = vcombine.low %v2632, %v2696
      %v2748 = vunpack.c.l.s4 1983009808
      %v2749 = vunpack.c.0.s8 %v2748
      %v2750 = vlaneseq
      %v2751 = vshrl.u32 %v2750, 7
      %v2752 = vsub.s32 %v2749, %v2751
      %v2753 = vrot.slane %v2746, %v2752
      %v2754 = vcombine.low %v2745, %v2753
      %v2755 = vcombine.high %v2745, %v2753
      %v2757 = vunpack.c.l.s4 1934713408
      %v2758 = vunpack.c.0.s8 %v2757
      %v2759 = vlaneseq
      %v2760 = vshrl.u32 %v2759, 7
      %v2761 = vsub.s32 %v2758, %v2760
      %v2762 = vrot.slane %v2754, %v2761
      %v2764 = vunpack.c.l.s4 1934713408
      %v2765 = vunpack.c.0.s8 %v2764
      %v2766 = vlaneseq
      %v2767 = vshrl.u32 %v2766, 7
      %v2768 = vsub.s32 %v2765, %v2767
      %v2769 = vrot.slane %v2755, %v2768
      %v2770 = vcombine.high %v2762, 0
      %v2771 = vcombine.high %v2769, 0
      %v2774 = vpack.i.b16 %v2762, %v2728
      %v2776 = vshrl.u32 %v2728, 16
      %v2777 = vshrl.u32 %v2762, 16
      %v2778 = vpack.i.b16 %v2777, %v2776
      %v2782 = vpack.i.b16 %v2770, %v2736
      %v2784 = vshrl.u32 %v2736, 16
      %v2785 = vshrl.u32 %v2770, 16
      %v2786 = vpack.i.b16 %v2785, %v2784
      %v2790 = vpack.i.b16 %v2769, %v2735
      %v2792 = vshrl.u32 %v2735, 16
      %v2793 = vshrl.u32 %v2769, 16
      %v2794 = vpack.i.b16 %v2793, %v2792
      %v2798 = vpack.i.b16 %v2771, %v2737
      %v2800 = vshrl.u32 %v2737, 16
      %v2801 = vshrl.u32 %v2771, 16
      %v2802 = vpack.i.b16 %v2801, %v2800
      %2804 = vxpose.xlu0.c.b16.start [1/8] %v2774, 128
      %2805 = vxpose.xlu0.c.b16.cont [2/8] 0, 128
      %2806 = vxpose.xlu0.c.b16.cont [3/8] 0, 128
      %2807 = vxpose.xlu0.c.b16.cont [4/8] 0, 128
      %2808 = vxpose.xlu0.c.b16.cont [5/8] 0, 128
      %2809 = vxpose.xlu0.c.b16.cont [6/8] 0, 128
      %2810 = vxpose.xlu0.c.b16.cont [7/8] 0, 128
      %2811 = vxpose.xlu0.c.b16.end [8/8] 0, 128
      %v2812 = vpop.trf.xlu0
      %v2813 = vpop.trf.xlu0
      %v2814 = vpop.trf.xlu0
      %v2815 = vpop.trf.xlu0
      %v2816 = vpop.trf.xlu0
      %v2817 = vpop.trf.xlu0
      %v2818 = vpop.trf.xlu0
      %v2819 = vpop.trf.xlu0
      %2820 = vxpose.xlu0.c.b16.start [1/8] %v2778, 128
      %2821 = vxpose.xlu0.c.b16.cont [2/8] 0, 128
      %2822 = vxpose.xlu0.c.b16.cont [3/8] 0, 128
      %2823 = vxpose.xlu0.c.b16.cont [4/8] 0, 128
      %2824 = vxpose.xlu0.c.b16.cont [5/8] 0, 128
      %2825 = vxpose.xlu0.c.b16.cont [6/8] 0, 128
      %2826 = vxpose.xlu0.c.b16.cont [7/8] 0, 128
      %2827 = vxpose.xlu0.c.b16.end [8/8] 0, 128
      %v2828 = vpop.trf.xlu0
      %v2829 = vpop.trf.xlu0
      %v2830 = vpop.trf.xlu0
      %v2831 = vpop.trf.xlu0
      %v2832 = vpop.trf.xlu0
      %v2833 = vpop.trf.xlu0
      %v2834 = vpop.trf.xlu0
      %v2835 = vpop.trf.xlu0
      %2836 = vxpose.xlu0.c.b16.start [1/8] %v2782, 128
      %2837 = vxpose.xlu0.c.b16.cont [2/8] 0, 128
      %2838 = vxpose.xlu0.c.b16.cont [3/8] 0, 128
      %2839 = vxpose.xlu0.c.b16.cont [4/8] 0, 128
      %2840 = vxpose.xlu0.c.b16.cont [5/8] 0, 128
      %2841 = vxpose.xlu0.c.b16.cont [6/8] 0, 128
      %2842 = vxpose.xlu0.c.b16.cont [7/8] 0, 128
      %2843 = vxpose.xlu0.c.b16.end [8/8] 0, 128
      %v2844 = vpop.trf.xlu0
      %v2845 = vpop.trf.xlu0
      %v2846 = vpop.trf.xlu0
      %v2847 = vpop.trf.xlu0
      %v2848 = vpop.trf.xlu0
      %v2849 = vpop.trf.xlu0
      %v2850 = vpop.trf.xlu0
      %v2851 = vpop.trf.xlu0
      %2852 = vxpose.xlu0.c.b16.start [1/8] %v2786, 128
      %2853 = vxpose.xlu0.c.b16.cont [2/8] 0, 128
      %2854 = vxpose.xlu0.c.b16.cont [3/8] 0, 128
      %2855 = vxpose.xlu0.c.b16.cont [4/8] 0, 128
      %2856 = vxpose.xlu0.c.b16.cont [5/8] 0, 128
      %2857 = vxpose.xlu0.c.b16.cont [6/8] 0, 128
      %2858 = vxpose.xlu0.c.b16.cont [7/8] 0, 128
      %2859 = vxpose.xlu0.c.b16.end [8/8] 0, 128
      %v2860 = vpop.trf.xlu0
      %v2861 = vpop.trf.xlu0
      %v2862 = vpop.trf.xlu0
      %v2863 = vpop.trf.xlu0
      %v2864 = vpop.trf.xlu0
      %v2865 = vpop.trf.xlu0
      %v2866 = vpop.trf.xlu0
      %v2867 = vpop.trf.xlu0
      %2868 = vxpose.xlu0.c.b16.start [1/8] %v2790, 128
      %2869 = vxpose.xlu0.c.b16.cont [2/8] 0, 128
      %2870 = vxpose.xlu0.c.b16.cont [3/8] 0, 128
      %2871 = vxpose.xlu0.c.b16.cont [4/8] 0, 128
      %2872 = vxpose.xlu0.c.b16.cont [5/8] 0, 128
      %2873 = vxpose.xlu0.c.b16.cont [6/8] 0, 128
      %2874 = vxpose.xlu0.c.b16.cont [7/8] 0, 128
      %2875 = vxpose.xlu0.c.b16.end [8/8] 0, 128
      %v2876 = vpop.trf.xlu0
      %v2877 = vpop.trf.xlu0
      %v2878 = vpop.trf.xlu0
      %v2879 = vpop.trf.xlu0
      %v2880 = vpop.trf.xlu0
      %v2881 = vpop.trf.xlu0
      %v2882 = vpop.trf.xlu0
      %v2883 = vpop.trf.xlu0
      %2884 = vxpose.xlu0.c.b16.start [1/8] %v2794, 128
      %2885 = vxpose.xlu0.c.b16.cont [2/8] 0, 128
      %2886 = vxpose.xlu0.c.b16.cont [3/8] 0, 128
      %2887 = vxpose.xlu0.c.b16.cont [4/8] 0, 128
      %2888 = vxpose.xlu0.c.b16.cont [5/8] 0, 128
      %2889 = vxpose.xlu0.c.b16.cont [6/8] 0, 128
      %2890 = vxpose.xlu0.c.b16.cont [7/8] 0, 128
      %2891 = vxpose.xlu0.c.b16.end [8/8] 0, 128
      %v2892 = vpop.trf.xlu0
      %v2893 = vpop.trf.xlu0
      %v2894 = vpop.trf.xlu0
      %v2895 = vpop.trf.xlu0
      %v2896 = vpop.trf.xlu0
      %v2897 = vpop.trf.xlu0
      %v2898 = vpop.trf.xlu0
      %v2899 = vpop.trf.xlu0
      %2900 = vxpose.xlu0.c.b16.start [1/8] %v2798, 128
      %2901 = vxpose.xlu0.c.b16.cont [2/8] 0, 128
      %2902 = vxpose.xlu0.c.b16.cont [3/8] 0, 128
      %2903 = vxpose.xlu0.c.b16.cont [4/8] 0, 128
      %2904 = vxpose.xlu0.c.b16.cont [5/8] 0, 128
      %2905 = vxpose.xlu0.c.b16.cont [6/8] 0, 128
      %2906 = vxpose.xlu0.c.b16.cont [7/8] 0, 128
      %2907 = vxpose.xlu0.c.b16.end [8/8] 0, 128
      %v2908 = vpop.trf.xlu0
      %v2909 = vpop.trf.xlu0
      %v2910 = vpop.trf.xlu0
      %v2911 = vpop.trf.xlu0
      %v2912 = vpop.trf.xlu0
      %v2913 = vpop.trf.xlu0
      %v2914 = vpop.trf.xlu0
      %v2915 = vpop.trf.xlu0
      %2916 = vxpose.xlu0.c.b16.start [1/8] %v2802, 128
      %2917 = vxpose.xlu0.c.b16.cont [2/8] 0, 128
      %2918 = vxpose.xlu0.c.b16.cont [3/8] 0, 128
      %2919 = vxpose.xlu0.c.b16.cont [4/8] 0, 128
      %2920 = vxpose.xlu0.c.b16.cont [5/8] 0, 128
      %2921 = vxpose.xlu0.c.b16.cont [6/8] 0, 128
      %2922 = vxpose.xlu0.c.b16.cont [7/8] 0, 128
      %2923 = vxpose.xlu0.c.b16.end [8/8] 0, 128
      %v2924 = vpop.trf.xlu0
      %v2925 = vpop.trf.xlu0
      %v2926 = vpop.trf.xlu0
      %v2927 = vpop.trf.xlu0
      %v2928 = vpop.trf.xlu0
      %v2929 = vpop.trf.xlu0
      %v2930 = vpop.trf.xlu0
      %v2931 = vpop.trf.xlu0
      %v2932 = vcombine.low %v2812, %v2876
      %v2934 = vunpack.c.l.s4 1983009808
      %v2935 = vunpack.c.0.s8 %v2934
      %v2936 = vlaneseq
      %v2937 = vshrl.u32 %v2936, 7
      %v2938 = vsub.s32 %v2935, %v2937
      %v2939 = vrot.slane %v2932, %v2938
      %v2940 = vcombine.low %v2844, %v2908
      %v2942 = vunpack.c.l.s4 1983009808
      %v2943 = vunpack.c.0.s8 %v2942
      %v2944 = vlaneseq
      %v2945 = vshrl.u32 %v2944, 7
      %v2946 = vsub.s32 %v2943, %v2945
      %v2947 = vrot.slane %v2940, %v2946
      %v2948 = vcombine.low %v2939, %v2947
      %v2950 = vunpack.c.l.s4 1934713408
      %v2951 = vunpack.c.0.s8 %v2950
      %v2952 = vlaneseq
      %v2953 = vshrl.u32 %v2952, 7
      %v2954 = vsub.s32 %v2951, %v2953
      %v2955 = vrot.slane %v2948, %v2954
      %v2956 = vcombine.high %v2955, 0
      %v2957 = vcombine.low %v2828, %v2892
      %v2959 = vunpack.c.l.s4 1983009808
      %v2960 = vunpack.c.0.s8 %v2959
      %v2961 = vlaneseq
      %v2962 = vshrl.u32 %v2961, 7
      %v2963 = vsub.s32 %v2960, %v2962
      %v2964 = vrot.slane %v2957, %v2963
      %v2965 = vcombine.low %v2860, %v2924
      %v2967 = vunpack.c.l.s4 1983009808
      %v2968 = vunpack.c.0.s8 %v2967
      %v2969 = vlaneseq
      %v2970 = vshrl.u32 %v2969, 7
      %v2971 = vsub.s32 %v2968, %v2970
      %v2972 = vrot.slane %v2965, %v2971
      %v2973 = vcombine.low %v2964, %v2972
      %v2975 = vunpack.c.l.s4 1934713408
      %v2976 = vunpack.c.0.s8 %v2975
      %v2977 = vlaneseq
      %v2978 = vshrl.u32 %v2977, 7
      %v2979 = vsub.s32 %v2976, %v2978
      %v2980 = vrot.slane %v2973, %v2979
      %v2981 = vcombine.high %v2980, 0
      %v2984 = vpack.i.b16 %v2980, %v2955
      %v2985 = vshrl.u32 %v2955, 16
      %v2986 = vshrl.u32 %v2980, 16
      %v2987 = vpack.i.b16 %v2986, %v2985
      %v2990 = vpack.i.b16 %v2981, %v2956
      %v2991 = vshrl.u32 %v2956, 16
      %v2992 = vshrl.u32 %v2981, 16
      %v2993 = vpack.i.b16 %v2992, %v2991
      %v2995 = vsel %vm1810, %v2566, 0
      %v2998 = vsel %vm1814, %v2984, 0
      %3000 = vmatprep.subr.bf16.mxu0 0
      %3001 = vmatpush1.bf16.msra.mxu0 %v2998
      %3002 = vmatprep.subr.bf16.mxu0 0
      %3003 = vmatpush1.bf16.msra.mxu0 0
      %3004 = vmatprep.subr.bf16.mxu0 0
      %3005 = vmatpush1.bf16.msra.mxu0 0
      %3006 = vmatprep.subr.bf16.mxu0 0
      %3007 = vmatpush1.bf16.msra.mxu0 0
      %3008 = vmatprep.subr.bf16.mxu0 0
      %3009 = vmatpush1.bf16.msra.mxu0 0
      %3010 = vmatprep.subr.bf16.mxu0 0
      %3011 = vmatpush1.bf16.msra.mxu0 0
      %3012 = vmatprep.subr.bf16.mxu0 0
      %3013 = vmatpush1.bf16.msra.mxu0 0
      %3014 = vmatprep.subr.bf16.mxu0 0
      %3015 = vmatpush1.bf16.msra.mxu0 0
      %3016 = vmatprep.subr.bf16.mxu0 0
      %3017 = vmatpush1.bf16.msra.mxu0 0
      %3018 = vmatprep.subr.bf16.mxu0 0
      %3019 = vmatpush1.bf16.msra.mxu0 0
      %3020 = vmatprep.subr.bf16.mxu0 0
      %3021 = vmatpush1.bf16.msra.mxu0 0
      %3022 = vmatprep.subr.bf16.mxu0 0
      %3023 = vmatpush1.bf16.msra.mxu0 0
      %3024 = vmatprep.subr.bf16.mxu0 0
      %3025 = vmatpush1.bf16.msra.mxu0 0
      %3026 = vmatprep.subr.bf16.mxu0 0
      %3027 = vmatpush1.bf16.msra.mxu0 0
      %3028 = vmatprep.subr.bf16.mxu0 0
      %3029 = vmatpush1.bf16.msra.mxu0 0
      %3030 = vmatprep.subr.bf16.mxu0 0
      %3031 = vmatpush1.bf16.msra.mxu0 0
      %3032 = vmatprep.mubr.bf16.mxu0 0
      %3033 = vmatmul.mubr.bf16.gmra.mrb[0].mxu0 %v2995
      %v3034 = vpop.f32.mrb[0].mxu0
      %v3035 = vadd.f32 %v2513, %v3034
      %v3036 = vpop.f32.mrb[0].mxu0
      %v3037 = vpop.f32.mrb[0].mxu0
      %v3038 = vpop.f32.mrb[0].mxu0
      %3039 = vdwg.mxu0
      %v3041 = vsel %vm1810, %v2569, 0
      %v3044 = vsel %vm1814, %v2987, 0
      %3046 = vmatprep.subr.bf16.mxu0 0
      %3047 = vmatpush1.bf16.msra.mxu0 %v3044
      %3048 = vmatprep.subr.bf16.mxu0 0
      %3049 = vmatpush1.bf16.msra.mxu0 0
      %3050 = vmatprep.subr.bf16.mxu0 0
      %3051 = vmatpush1.bf16.msra.mxu0 0
      %3052 = vmatprep.subr.bf16.mxu0 0
      %3053 = vmatpush1.bf16.msra.mxu0 0
      %3054 = vmatprep.subr.bf16.mxu0 0
      %3055 = vmatpush1.bf16.msra.mxu0 0
      %3056 = vmatprep.subr.bf16.mxu0 0
      %3057 = vmatpush1.bf16.msra.mxu0 0
      %3058 = vmatprep.subr.bf16.mxu0 0
      %3059 = vmatpush1.bf16.msra.mxu0 0
      %3060 = vmatprep.subr.bf16.mxu0 0
      %3061 = vmatpush1.bf16.msra.mxu0 0
      %3062 = vmatprep.subr.bf16.mxu0 0
      %3063 = vmatpush1.bf16.msra.mxu0 0
      %3064 = vmatprep.subr.bf16.mxu0 0
      %3065 = vmatpush1.bf16.msra.mxu0 0
      %3066 = vmatprep.subr.bf16.mxu0 0
      %3067 = vmatpush1.bf16.msra.mxu0 0
      %3068 = vmatprep.subr.bf16.mxu0 0
      %3069 = vmatpush1.bf16.msra.mxu0 0
      %3070 = vmatprep.subr.bf16.mxu0 0
      %3071 = vmatpush1.bf16.msra.mxu0 0
      %3072 = vmatprep.subr.bf16.mxu0 0
      %3073 = vmatpush1.bf16.msra.mxu0 0
      %3074 = vmatprep.subr.bf16.mxu0 0
      %3075 = vmatpush1.bf16.msra.mxu0 0
      %3076 = vmatprep.subr.bf16.mxu0 0
      %3077 = vmatpush1.bf16.msra.mxu0 0
      %3078 = vmatprep.mubr.bf16.mxu0 0
      %3079 = vmatmul.mubr.bf16.gmra.mrb[0].mxu0 %v3041
      %v3080 = vpop.f32.mrb[0].mxu0
      %v3081 = vadd.f32 %v2513, %v3080
      %v3082 = vpop.f32.mrb[0].mxu0
      %v3083 = vpop.f32.mrb[0].mxu0
      %v3084 = vpop.f32.mrb[0].mxu0
      %3085 = vdwg.mxu0
      %v3087 = vsel %vm1810, %v2572, 0
      %v3090 = vsel %vm1814, %v2990, 0
      %3092 = vmatprep.subr.bf16.mxu0 0
      %3093 = vmatpush1.bf16.msra.mxu0 %v3090
      %3094 = vmatprep.subr.bf16.mxu0 0
      %3095 = vmatpush1.bf16.msra.mxu0 0
      %3096 = vmatprep.subr.bf16.mxu0 0
      %3097 = vmatpush1.bf16.msra.mxu0 0
      %3098 = vmatprep.subr.bf16.mxu0 0
      %3099 = vmatpush1.bf16.msra.mxu0 0
      %3100 = vmatprep.subr.bf16.mxu0 0
      %3101 = vmatpush1.bf16.msra.mxu0 0
      %3102 = vmatprep.subr.bf16.mxu0 0
      %3103 = vmatpush1.bf16.msra.mxu0 0
      %3104 = vmatprep.subr.bf16.mxu0 0
      %3105 = vmatpush1.bf16.msra.mxu0 0
      %3106 = vmatprep.subr.bf16.mxu0 0
      %3107 = vmatpush1.bf16.msra.mxu0 0
      %3108 = vmatprep.subr.bf16.mxu0 0
      %3109 = vmatpush1.bf16.msra.mxu0 0
      %3110 = vmatprep.subr.bf16.mxu0 0
      %3111 = vmatpush1.bf16.msra.mxu0 0
      %3112 = vmatprep.subr.bf16.mxu0 0
      %3113 = vmatpush1.bf16.msra.mxu0 0
      %3114 = vmatprep.subr.bf16.mxu0 0
      %3115 = vmatpush1.bf16.msra.mxu0 0
      %3116 = vmatprep.subr.bf16.mxu0 0
      %3117 = vmatpush1.bf16.msra.mxu0 0
      %3118 = vmatprep.subr.bf16.mxu0 0
      %3119 = vmatpush1.bf16.msra.mxu0 0
      %3120 = vmatprep.subr.bf16.mxu0 0
      %3121 = vmatpush1.bf16.msra.mxu0 0
      %3122 = vmatprep.subr.bf16.mxu0 0
      %3123 = vmatpush1.bf16.msra.mxu0 0
      %3124 = vmatprep.mubr.bf16.mxu0 0
      %3125 = vmatmul.mubr.bf16.gmra.mrb[0].mxu0 %v3087
      %v3126 = vpop.f32.mrb[0].mxu0
      %v3127 = vadd.f32 %v2513, %v3126
      %v3128 = vpop.f32.mrb[0].mxu0
      %v3129 = vpop.f32.mrb[0].mxu0
      %v3130 = vpop.f32.mrb[0].mxu0
      %3131 = vdwg.mxu0
      %v3133 = vsel %vm1810, %v2575, 0
      %v3136 = vsel %vm1814, %v2993, 0
      %3138 = vmatprep.subr.bf16.mxu0 0
      %3139 = vmatpush1.bf16.msra.mxu0 %v3136
      %3140 = vmatprep.subr.bf16.mxu0 0
      %3141 = vmatpush1.bf16.msra.mxu0 0
      %3142 = vmatprep.subr.bf16.mxu0 0
      %3143 = vmatpush1.bf16.msra.mxu0 0
      %3144 = vmatprep.subr.bf16.mxu0 0
      %3145 = vmatpush1.bf16.msra.mxu0 0
      %3146 = vmatprep.subr.bf16.mxu0 0
      %3147 = vmatpush1.bf16.msra.mxu0 0
      %3148 = vmatprep.subr.bf16.mxu0 0
      %3149 = vmatpush1.bf16.msra.mxu0 0
      %3150 = vmatprep.subr.bf16.mxu0 0
      %3151 = vmatpush1.bf16.msra.mxu0 0
      %3152 = vmatprep.subr.bf16.mxu0 0
      %3153 = vmatpush1.bf16.msra.mxu0 0
      %3154 = vmatprep.subr.bf16.mxu0 0
      %3155 = vmatpush1.bf16.msra.mxu0 0
      %3156 = vmatprep.subr.bf16.mxu0 0
      %3157 = vmatpush1.bf16.msra.mxu0 0
      %3158 = vmatprep.subr.bf16.mxu0 0
      %3159 = vmatpush1.bf16.msra.mxu0 0
      %3160 = vmatprep.subr.bf16.mxu0 0
      %3161 = vmatpush1.bf16.msra.mxu0 0
      %3162 = vmatprep.subr.bf16.mxu0 0
      %3163 = vmatpush1.bf16.msra.mxu0 0
      %3164 = vmatprep.subr.bf16.mxu0 0
      %3165 = vmatpush1.bf16.msra.mxu0 0
      %3166 = vmatprep.subr.bf16.mxu0 0
      %3167 = vmatpush1.bf16.msra.mxu0 0
      %3168 = vmatprep.subr.bf16.mxu0 0
      %3169 = vmatpush1.bf16.msra.mxu0 0
      %3170 = vmatprep.mubr.bf16.mxu0 0
      %3171 = vmatmul.mubr.bf16.gmra.mrb[0].mxu0 %v3133
      %v3172 = vpop.f32.mrb[0].mxu0
      %v3173 = vadd.f32 %v2513, %v3172
      %v3174 = vpop.f32.mrb[0].mxu0
      %v3175 = vpop.f32.mrb[0].mxu0
      %v3176 = vpop.f32.mrb[0].mxu0
      %3177 = vdwg.mxu0
      %v3178 = vsel %vm1810, %v3035, -inf
      %3179 = vmax.xlane.f32.xlu0 %v3178
      %v3180 = vpop.xlane.xlu0 %3179
      %v3181 = vsel %vm1810, %v3081, -inf
      %3182 = vmax.xlane.f32.xlu0 %v3181
      %v3183 = vpop.xlane.xlu0 %3182
      %v3184 = vsel %vm1810, %v3127, -inf
      %3185 = vmax.xlane.f32.xlu0 %v3184
      %v3186 = vpop.xlane.xlu0 %3185
      %v3187 = vsel %vm1810, %v3173, -inf
      %3188 = vmax.xlane.f32.xlu0 %v3187
      %v3189 = vpop.xlane.xlu0 %3188
      %v3190 = vsub.f32 %v3035, %v3180
      %v3191 = vsub.f32 %v3081, %v3183
      %v3192 = vsub.f32 %v3127, %v3186
      %v3193 = vsub.f32 %v3173, %v3189
      %v3194 = vmul.f32 %v3190, 1.442695
      %v3195 = vpow.pop %v3194
      %v3196 = vmul.f32 %v3191, 1.442695
      %v3197 = vpow.pop %v3196
      %v3198 = vmul.f32 %v3192, 1.442695
      %v3199 = vpow.pop %v3198
      %v3200 = vmul.f32 %v3193, 1.442695
      %v3201 = vpow.pop %v3200
      %v3202 = vsel %vm1810, %v3195, 0.0
      %3203 = vadd.xlane.f32.xlu0 %v3202
      %v3204 = vpop.xlane.xlu0 %3203
      %v3205 = vsel %vm1810, %v3197, 0.0
      %3206 = vadd.xlane.f32.xlu0 %v3205
      %v3207 = vpop.xlane.xlu0 %3206
      %v3208 = vsel %vm1810, %v3199, 0.0
      %3209 = vadd.xlane.f32.xlu0 %v3208
      %v3210 = vpop.xlane.xlu0 %3209
      %v3211 = vsel %vm1810, %v3201, 0.0
      %3212 = vadd.xlane.f32.xlu0 %v3211
      %v3213 = vpop.xlane.xlu0 %3212
      %v3214 = vrcp.pop %v3204
      %v3215 = vrcp.pop %v3207
      %v3216 = vrcp.pop %v3210
      %v3217 = vrcp.pop %v3213
      %v3218 = vmul.f32 %v3195, %v3214
      %v3219 = vmul.f32 %v3197, %v3215
      %v3220 = vmul.f32 %v3199, %v3216
      %v3221 = vmul.f32 %v3201, %v3217
      %v3222 = vpack.c.bf16 %v3218, %v3218
      %v3223 = vpack.c.bf16 %v3219, %v3219
      %v3224 = vpack.c.bf16 %v3220, %v3220
      %v3225 = vpack.c.bf16 %v3221, %v3221
      %v3226 = vcombine.low %v2502, %v2506
      %v3228 = vunpack.c.l.s4 1983009808
      %v3229 = vunpack.c.0.s8 %v3228
      %v3230 = vlaneseq
      %v3231 = vshrl.u32 %v3230, 7
      %v3232 = vsub.s32 %v3229, %v3231
      %v3233 = vrot.slane %v3226, %v3232
      %v3234 = vcombine.low %v2504, %v2508
      %v3236 = vunpack.c.l.s4 1983009808
      %v3237 = vunpack.c.0.s8 %v3236
      %v3238 = vlaneseq
      %v3239 = vshrl.u32 %v3238, 7
      %v3240 = vsub.s32 %v3237, %v3239
      %v3241 = vrot.slane %v3234, %v3240
      %v3242 = vcombine.low %v3233, %v3241
      %v3244 = vunpack.c.l.s4 1934713408
      %v3245 = vunpack.c.0.s8 %v3244
      %v3246 = vlaneseq
      %v3247 = vshrl.u32 %v3246, 7
      %v3248 = vsub.s32 %v3245, %v3247
      %v3249 = vrot.slane %v3242, %v3248
      %v3250 = vcombine.high %v3249, 0
      %v3251 = vcombine.low %v2503, %v2507
      %v3253 = vunpack.c.l.s4 1983009808
      %v3254 = vunpack.c.0.s8 %v3253
      %v3255 = vlaneseq
      %v3256 = vshrl.u32 %v3255, 7
      %v3257 = vsub.s32 %v3254, %v3256
      %v3258 = vrot.slane %v3251, %v3257
      %v3259 = vcombine.low %v2505, %v2509
      %v3261 = vunpack.c.l.s4 1983009808
      %v3262 = vunpack.c.0.s8 %v3261
      %v3263 = vlaneseq
      %v3264 = vshrl.u32 %v3263, 7
      %v3265 = vsub.s32 %v3262, %v3264
      %v3266 = vrot.slane %v3259, %v3265
      %v3267 = vcombine.low %v3258, %v3266
      %v3269 = vunpack.c.l.s4 1934713408
      %v3270 = vunpack.c.0.s8 %v3269
      %v3271 = vlaneseq
      %v3272 = vshrl.u32 %v3271, 7
      %v3273 = vsub.s32 %v3270, %v3272
      %v3274 = vrot.slane %v3267, %v3273
      %v3275 = vcombine.high %v3274, 0
      %v3278 = vpack.i.b16 %v3274, %v3249
      %v3279 = vshrl.u32 %v3249, 16
      %v3280 = vshrl.u32 %v3274, 16
      %v3281 = vpack.i.b16 %v3280, %v3279
      %v3284 = vpack.i.b16 %v3275, %v3250
      %v3285 = vshrl.u32 %v3250, 16
      %v3286 = vshrl.u32 %v3275, 16
      %v3287 = vpack.i.b16 %v3286, %v3285
      %v3289 = vsel %vm1810, %v3222, 0
      %v3292 = vsel %vm1814, %v3278, 0
      %3294 = vmatprep.subr.bf16.mxu0 0
      %3295 = vmatpush1.bf16.msra.mxu0 %v3292
      %3296 = vmatprep.subr.bf16.mxu0 0
      %3297 = vmatpush1.bf16.msra.mxu0 0
      %3298 = vmatprep.subr.bf16.mxu0 0
      %3299 = vmatpush1.bf16.msra.mxu0 0
      %3300 = vmatprep.subr.bf16.mxu0 0
      %3301 = vmatpush1.bf16.msra.mxu0 0
      %3302 = vmatprep.subr.bf16.mxu0 0
      %3303 = vmatpush1.bf16.msra.mxu0 0
      %3304 = vmatprep.subr.bf16.mxu0 0
      %3305 = vmatpush1.bf16.msra.mxu0 0
      %3306 = vmatprep.subr.bf16.mxu0 0
      %3307 = vmatpush1.bf16.msra.mxu0 0
      %3308 = vmatprep.subr.bf16.mxu0 0
      %3309 = vmatpush1.bf16.msra.mxu0 0
      %3310 = vmatprep.subr.bf16.mxu0 0
      %3311 = vmatpush1.bf16.msra.mxu0 0
      %3312 = vmatprep.subr.bf16.mxu0 0
      %3313 = vmatpush1.bf16.msra.mxu0 0
      %3314 = vmatprep.subr.bf16.mxu0 0
      %3315 = vmatpush1.bf16.msra.mxu0 0
      %3316 = vmatprep.subr.bf16.mxu0 0
      %3317 = vmatpush1.bf16.msra.mxu0 0
      %3318 = vmatprep.subr.bf16.mxu0 0
      %3319 = vmatpush1.bf16.msra.mxu0 0
      %3320 = vmatprep.subr.bf16.mxu0 0
      %3321 = vmatpush1.bf16.msra.mxu0 0
      %3322 = vmatprep.subr.bf16.mxu0 0
      %3323 = vmatpush1.bf16.msra.mxu0 0
      %3324 = vmatprep.subr.bf16.mxu0 0
      %3325 = vmatpush1.bf16.msra.mxu0 0
      %3326 = vmatprep.mubr.bf16.mxu0 0
      %3327 = vmatmul.mubr.bf16.gmra.mrb[0].mxu0 %v3289
      %v3328 = vpop.f32.mrb[0].mxu0
      %v3329 = vadd.f32 0.0, %v3328
      %v3330 = vpop.f32.mrb[0].mxu0
      %v3331 = vpop.f32.mrb[0].mxu0
      %v3332 = vpop.f32.mrb[0].mxu0
      %3333 = vdwg.mxu0
      %v3335 = vsel %vm1810, %v3223, 0
      %v3338 = vsel %vm1814, %v3281, 0
      %3340 = vmatprep.subr.bf16.mxu0 0
      %3341 = vmatpush1.bf16.msra.mxu0 %v3338
      %3342 = vmatprep.subr.bf16.mxu0 0
      %3343 = vmatpush1.bf16.msra.mxu0 0
      %3344 = vmatprep.subr.bf16.mxu0 0
      %3345 = vmatpush1.bf16.msra.mxu0 0
      %3346 = vmatprep.subr.bf16.mxu0 0
      %3347 = vmatpush1.bf16.msra.mxu0 0
      %3348 = vmatprep.subr.bf16.mxu0 0
      %3349 = vmatpush1.bf16.msra.mxu0 0
      %3350 = vmatprep.subr.bf16.mxu0 0
      %3351 = vmatpush1.bf16.msra.mxu0 0
      %3352 = vmatprep.subr.bf16.mxu0 0
      %3353 = vmatpush1.bf16.msra.mxu0 0
      %3354 = vmatprep.subr.bf16.mxu0 0
      %3355 = vmatpush1.bf16.msra.mxu0 0
      %3356 = vmatprep.subr.bf16.mxu0 0
      %3357 = vmatpush1.bf16.msra.mxu0 0
      %3358 = vmatprep.subr.bf16.mxu0 0
      %3359 = vmatpush1.bf16.msra.mxu0 0
      %3360 = vmatprep.subr.bf16.mxu0 0
      %3361 = vmatpush1.bf16.msra.mxu0 0
      %3362 = vmatprep.subr.bf16.mxu0 0
      %3363 = vmatpush1.bf16.msra.mxu0 0
      %3364 = vmatprep.subr.bf16.mxu0 0
      %3365 = vmatpush1.bf16.msra.mxu0 0
      %3366 = vmatprep.subr.bf16.mxu0 0
      %3367 = vmatpush1.bf16.msra.mxu0 0
      %3368 = vmatprep.subr.bf16.mxu0 0
      %3369 = vmatpush1.bf16.msra.mxu0 0
      %3370 = vmatprep.subr.bf16.mxu0 0
      %3371 = vmatpush1.bf16.msra.mxu0 0
      %3372 = vmatprep.mubr.bf16.mxu0 0
      %3373 = vmatmul.mubr.bf16.gmra.mrb[0].mxu0 %v3335
      %v3374 = vpop.f32.mrb[0].mxu0
      %v3375 = vadd.f32 0.0, %v3374
      %v3376 = vpop.f32.mrb[0].mxu0
      %v3377 = vpop.f32.mrb[0].mxu0
      %v3378 = vpop.f32.mrb[0].mxu0
      %3379 = vdwg.mxu0
      %v3381 = vsel %vm1810, %v3224, 0
      %v3384 = vsel %vm1814, %v3284, 0
      %3386 = vmatprep.subr.bf16.mxu0 0
      %3387 = vmatpush1.bf16.msra.mxu0 %v3384
      %3388 = vmatprep.subr.bf16.mxu0 0
      %3389 = vmatpush1.bf16.msra.mxu0 0
      %3390 = vmatprep.subr.bf16.mxu0 0
      %3391 = vmatpush1.bf16.msra.mxu0 0
      %3392 = vmatprep.subr.bf16.mxu0 0
      %3393 = vmatpush1.bf16.msra.mxu0 0
      %3394 = vmatprep.subr.bf16.mxu0 0
      %3395 = vmatpush1.bf16.msra.mxu0 0
      %3396 = vmatprep.subr.bf16.mxu0 0
      %3397 = vmatpush1.bf16.msra.mxu0 0
      %3398 = vmatprep.subr.bf16.mxu0 0
      %3399 = vmatpush1.bf16.msra.mxu0 0
      %3400 = vmatprep.subr.bf16.mxu0 0
      %3401 = vmatpush1.bf16.msra.mxu0 0
      %3402 = vmatprep.subr.bf16.mxu0 0
      %3403 = vmatpush1.bf16.msra.mxu0 0
      %3404 = vmatprep.subr.bf16.mxu0 0
      %3405 = vmatpush1.bf16.msra.mxu0 0
      %3406 = vmatprep.subr.bf16.mxu0 0
      %3407 = vmatpush1.bf16.msra.mxu0 0
      %3408 = vmatprep.subr.bf16.mxu0 0
      %3409 = vmatpush1.bf16.msra.mxu0 0
      %3410 = vmatprep.subr.bf16.mxu0 0
      %3411 = vmatpush1.bf16.msra.mxu0 0
      %3412 = vmatprep.subr.bf16.mxu0 0
      %3413 = vmatpush1.bf16.msra.mxu0 0
      %3414 = vmatprep.subr.bf16.mxu0 0
      %3415 = vmatpush1.bf16.msra.mxu0 0
      %3416 = vmatprep.subr.bf16.mxu0 0
      %3417 = vmatpush1.bf16.msra.mxu0 0
      %3418 = vmatprep.mubr.bf16.mxu0 0
      %3419 = vmatmul.mubr.bf16.gmra.mrb[0].mxu0 %v3381
      %v3420 = vpop.f32.mrb[0].mxu0
      %v3421 = vadd.f32 0.0, %v3420
      %v3422 = vpop.f32.mrb[0].mxu0
      %v3423 = vpop.f32.mrb[0].mxu0
      %v3424 = vpop.f32.mrb[0].mxu0
      %3425 = vdwg.mxu0
      %v3427 = vsel %vm1810, %v3225, 0
      %v3430 = vsel %vm1814, %v3287, 0
      %3432 = vmatprep.subr.bf16.mxu0 0
      %3433 = vmatpush1.bf16.msra.mxu0 %v3430
      %3434 = vmatprep.subr.bf16.mxu0 0
      %3435 = vmatpush1.bf16.msra.mxu0 0
      %3436 = vmatprep.subr.bf16.mxu0 0
      %3437 = vmatpush1.bf16.msra.mxu0 0
      %3438 = vmatprep.subr.bf16.mxu0 0
      %3439 = vmatpush1.bf16.msra.mxu0 0
      %3440 = vmatprep.subr.bf16.mxu0 0
      %3441 = vmatpush1.bf16.msra.mxu0 0
      %3442 = vmatprep.subr.bf16.mxu0 0
      %3443 = vmatpush1.bf16.msra.mxu0 0
      %3444 = vmatprep.subr.bf16.mxu0 0
      %3445 = vmatpush1.bf16.msra.mxu0 0
      %3446 = vmatprep.subr.bf16.mxu0 0
      %3447 = vmatpush1.bf16.msra.mxu0 0
      %3448 = vmatprep.subr.bf16.mxu0 0
      %3449 = vmatpush1.bf16.msra.mxu0 0
      %3450 = vmatprep.subr.bf16.mxu0 0
      %3451 = vmatpush1.bf16.msra.mxu0 0
      %3452 = vmatprep.subr.bf16.mxu0 0
      %3453 = vmatpush1.bf16.msra.mxu0 0
      %3454 = vmatprep.subr.bf16.mxu0 0
      %3455 = vmatpush1.bf16.msra.mxu0 0
      %3456 = vmatprep.subr.bf16.mxu0 0
      %3457 = vmatpush1.bf16.msra.mxu0 0
      %3458 = vmatprep.subr.bf16.mxu0 0
      %3459 = vmatpush1.bf16.msra.mxu0 0
      %3460 = vmatprep.subr.bf16.mxu0 0
      %3461 = vmatpush1.bf16.msra.mxu0 0
      %3462 = vmatprep.subr.bf16.mxu0 0
      %3463 = vmatpush1.bf16.msra.mxu0 0
      %3464 = vmatprep.mubr.bf16.mxu0 0
      %3465 = vmatmul.mubr.bf16.gmra.mrb[0].mxu0 %v3427
      %v3466 = vpop.f32.mrb[0].mxu0
      %v3467 = vadd.f32 0.0, %v3466
      %v3468 = vpop.f32.mrb[0].mxu0
      %v3469 = vpop.f32.mrb[0].mxu0
      %v3470 = vpop.f32.mrb[0].mxu0
      %3471 = vdwg.mxu0
      %v3472 = vpack.c.bf16 %v3329, %v3329
      %v3473 = vpack.c.bf16 %v3375, %v3375
      %v3474 = vpack.c.bf16 %v3421, %v3421
      %v3475 = vpack.c.bf16 %v3467, %v3467
      %v3477 = vsel %vm1810, %v3472, 0
      %3479 = vmatprep.subr.bf16.mxu0 0
      %3480 = vmatpush1.bf16.msra.mxu0 %v2298
      %3481 = vmatprep.subr.bf16.mxu0 0
      %3482 = vmatpush1.bf16.msra.mxu0 0
      %3483 = vmatprep.subr.bf16.mxu0 0
      %3484 = vmatpush1.bf16.msra.mxu0 0
      %3485 = vmatprep.subr.bf16.mxu0 0
      %3486 = vmatpush1.bf16.msra.mxu0 0
      %3487 = vmatprep.subr.bf16.mxu0 0
      %3488 = vmatpush1.bf16.msra.mxu0 0
      %3489 = vmatprep.subr.bf16.mxu0 0
      %3490 = vmatpush1.bf16.msra.mxu0 0
      %3491 = vmatprep.subr.bf16.mxu0 0
      %3492 = vmatpush1.bf16.msra.mxu0 0
      %3493 = vmatprep.subr.bf16.mxu0 0
      %3494 = vmatpush1.bf16.msra.mxu0 0
      %3495 = vmatprep.subr.bf16.mxu0 0
      %3496 = vmatpush1.bf16.msra.mxu0 0
      %3497 = vmatprep.subr.bf16.mxu0 0
      %3498 = vmatpush1.bf16.msra.mxu0 0
      %3499 = vmatprep.subr.bf16.mxu0 0
      %3500 = vmatpush1.bf16.msra.mxu0 0
      %3501 = vmatprep.subr.bf16.mxu0 0
      %3502 = vmatpush1.bf16.msra.mxu0 0
      %3503 = vmatprep.subr.bf16.mxu0 0
      %3504 = vmatpush1.bf16.msra.mxu0 0
      %3505 = vmatprep.subr.bf16.mxu0 0
      %3506 = vmatpush1.bf16.msra.mxu0 0
      %3507 = vmatprep.subr.bf16.mxu0 0
      %3508 = vmatpush1.bf16.msra.mxu0 0
      %3509 = vmatprep.subr.bf16.mxu0 0
      %3510 = vmatpush1.bf16.msra.mxu0 0
      %3511 = vmatprep.mubr.bf16.mxu0 0
      %3512 = vmatmul.mubr.bf16.gmra.mrb[0].mxu0 %v3477
      %v3513 = vpop.f32.mrb[0].mxu0
      %v3514 = vadd.f32 0.0, %v3513
      %v3515 = vpop.f32.mrb[0].mxu0
      %v3516 = vpop.f32.mrb[0].mxu0
      %v3517 = vpop.f32.mrb[0].mxu0
      %3518 = vdwg.mxu0
      %v3520 = vsel %vm1810, %v3473, 0
      %3522 = vmatprep.subr.bf16.mxu0 0
      %3523 = vmatpush1.bf16.msra.mxu0 %v2344
      %3524 = vmatprep.subr.bf16.mxu0 0
      %3525 = vmatpush1.bf16.msra.mxu0 0
      %3526 = vmatprep.subr.bf16.mxu0 0
      %3527 = vmatpush1.bf16.msra.mxu0 0
      %3528 = vmatprep.subr.bf16.mxu0 0
      %3529 = vmatpush1.bf16.msra.mxu0 0
      %3530 = vmatprep.subr.bf16.mxu0 0
      %3531 = vmatpush1.bf16.msra.mxu0 0
      %3532 = vmatprep.subr.bf16.mxu0 0
      %3533 = vmatpush1.bf16.msra.mxu0 0
      %3534 = vmatprep.subr.bf16.mxu0 0
      %3535 = vmatpush1.bf16.msra.mxu0 0
      %3536 = vmatprep.subr.bf16.mxu0 0
      %3537 = vmatpush1.bf16.msra.mxu0 0
      %3538 = vmatprep.subr.bf16.mxu0 0
      %3539 = vmatpush1.bf16.msra.mxu0 0
      %3540 = vmatprep.subr.bf16.mxu0 0
      %3541 = vmatpush1.bf16.msra.mxu0 0
      %3542 = vmatprep.subr.bf16.mxu0 0
      %3543 = vmatpush1.bf16.msra.mxu0 0
      %3544 = vmatprep.subr.bf16.mxu0 0
      %3545 = vmatpush1.bf16.msra.mxu0 0
      %3546 = vmatprep.subr.bf16.mxu0 0
      %3547 = vmatpush1.bf16.msra.mxu0 0
      %3548 = vmatprep.subr.bf16.mxu0 0
      %3549 = vmatpush1.bf16.msra.mxu0 0
      %3550 = vmatprep.subr.bf16.mxu0 0
      %3551 = vmatpush1.bf16.msra.mxu0 0
      %3552 = vmatprep.subr.bf16.mxu0 0
      %3553 = vmatpush1.bf16.msra.mxu0 0
      %3554 = vmatprep.mubr.bf16.mxu0 0
      %3555 = vmatmul.mubr.bf16.gmra.mrb[0].mxu0 %v3520
      %v3556 = vpop.f32.mrb[0].mxu0
      %v3557 = vadd.f32 0.0, %v3556
      %v3558 = vpop.f32.mrb[0].mxu0
      %v3559 = vpop.f32.mrb[0].mxu0
      %v3560 = vpop.f32.mrb[0].mxu0
      %3561 = vdwg.mxu0
      %v3563 = vsel %vm1810, %v3474, 0
      %3565 = vmatprep.subr.bf16.mxu0 0
      %3566 = vmatpush1.bf16.msra.mxu0 %v2390
      %3567 = vmatprep.subr.bf16.mxu0 0
      %3568 = vmatpush1.bf16.msra.mxu0 0
      %3569 = vmatprep.subr.bf16.mxu0 0
      %3570 = vmatpush1.bf16.msra.mxu0 0
      %3571 = vmatprep.subr.bf16.mxu0 0
      %3572 = vmatpush1.bf16.msra.mxu0 0
      %3573 = vmatprep.subr.bf16.mxu0 0
      %3574 = vmatpush1.bf16.msra.mxu0 0
      %3575 = vmatprep.subr.bf16.mxu0 0
      %3576 = vmatpush1.bf16.msra.mxu0 0
      %3577 = vmatprep.subr.bf16.mxu0 0
      %3578 = vmatpush1.bf16.msra.mxu0 0
      %3579 = vmatprep.subr.bf16.mxu0 0
      %3580 = vmatpush1.bf16.msra.mxu0 0
      %3581 = vmatprep.subr.bf16.mxu0 0
      %3582 = vmatpush1.bf16.msra.mxu0 0
      %3583 = vmatprep.subr.bf16.mxu0 0
      %3584 = vmatpush1.bf16.msra.mxu0 0
      %3585 = vmatprep.subr.bf16.mxu0 0
      %3586 = vmatpush1.bf16.msra.mxu0 0
      %3587 = vmatprep.subr.bf16.mxu0 0
      %3588 = vmatpush1.bf16.msra.mxu0 0
      %3589 = vmatprep.subr.bf16.mxu0 0
      %3590 = vmatpush1.bf16.msra.mxu0 0
      %3591 = vmatprep.subr.bf16.mxu0 0
      %3592 = vmatpush1.bf16.msra.mxu0 0
      %3593 = vmatprep.subr.bf16.mxu0 0
      %3594 = vmatpush1.bf16.msra.mxu0 0
      %3595 = vmatprep.subr.bf16.mxu0 0
      %3596 = vmatpush1.bf16.msra.mxu0 0
      %3597 = vmatprep.mubr.bf16.mxu0 0
      %3598 = vmatmul.mubr.bf16.gmra.mrb[0].mxu0 %v3563
      %v3599 = vpop.f32.mrb[0].mxu0
      %v3600 = vadd.f32 0.0, %v3599
      %v3601 = vpop.f32.mrb[0].mxu0
      %v3602 = vpop.f32.mrb[0].mxu0
      %v3603 = vpop.f32.mrb[0].mxu0
      %3604 = vdwg.mxu0
      %v3606 = vsel %vm1810, %v3475, 0
      %3608 = vmatprep.subr.bf16.mxu0 0
      %3609 = vmatpush1.bf16.msra.mxu0 %v2436
      %3610 = vmatprep.subr.bf16.mxu0 0
      %3611 = vmatpush1.bf16.msra.mxu0 0
      %3612 = vmatprep.subr.bf16.mxu0 0
      %3613 = vmatpush1.bf16.msra.mxu0 0
      %3614 = vmatprep.subr.bf16.mxu0 0
      %3615 = vmatpush1.bf16.msra.mxu0 0
      %3616 = vmatprep.subr.bf16.mxu0 0
      %3617 = vmatpush1.bf16.msra.mxu0 0
      %3618 = vmatprep.subr.bf16.mxu0 0
      %3619 = vmatpush1.bf16.msra.mxu0 0
      %3620 = vmatprep.subr.bf16.mxu0 0
      %3621 = vmatpush1.bf16.msra.mxu0 0
      %3622 = vmatprep.subr.bf16.mxu0 0
      %3623 = vmatpush1.bf16.msra.mxu0 0
      %3624 = vmatprep.subr.bf16.mxu0 0
      %3625 = vmatpush1.bf16.msra.mxu0 0
      %3626 = vmatprep.subr.bf16.mxu0 0
      %3627 = vmatpush1.bf16.msra.mxu0 0
      %3628 = vmatprep.subr.bf16.mxu0 0
      %3629 = vmatpush1.bf16.msra.mxu0 0
      %3630 = vmatprep.subr.bf16.mxu0 0
      %3631 = vmatpush1.bf16.msra.mxu0 0
      %3632 = vmatprep.subr.bf16.mxu0 0
      %3633 = vmatpush1.bf16.msra.mxu0 0
      %3634 = vmatprep.subr.bf16.mxu0 0
      %3635 = vmatpush1.bf16.msra.mxu0 0
      %3636 = vmatprep.subr.bf16.mxu0 0
      %3637 = vmatpush1.bf16.msra.mxu0 0
      %3638 = vmatprep.subr.bf16.mxu0 0
      %3639 = vmatpush1.bf16.msra.mxu0 0
      %3640 = vmatprep.mubr.bf16.mxu0 0
      %3641 = vmatmul.mubr.bf16.gmra.mrb[0].mxu0 %v3606
      %v3642 = vpop.f32.mrb[0].mxu0
      %v3643 = vadd.f32 0.0, %v3642
      %v3644 = vpop.f32.mrb[0].mxu0
      %v3645 = vpop.f32.mrb[0].mxu0
      %v3646 = vpop.f32.mrb[0].mxu0
      %3647 = vdwg.mxu0
      %v3648 = vsel %vm760, %v3514, 0.0
      %v3649 = vsel %vm760, %v3557, 0.0
      %v3650 = vadd.f32 %v3648, %v3649
      %v3651 = vsel %vm760, %v3600, 0.0
      %v3652 = vadd.f32 %v3650, %v3651
      %v3653 = vsel %vm760, %v3643, 0.0
      %v3654 = vadd.f32 %v3652, %v3653
      %3655 = vst.msk [vmem:[#allocation3 + $0x8] sm:$0xff] %vm760, %v3654
      %v3656 = vld [vmem:[#allocation3] sm:$0xff]
      %v3657 = vld [vmem:[#allocation3 + $0x8] sm:$0xff]
      %v3658 = vld [vmem:[%s650] sm:$0x1]
      %v3660 = vlaneseq
      %v3661 = vshrl.u32 %v3660, 7
      %v3662 = vsub.s32 0, %v3661
      %v3663 = vrot.slane %v3658, %v3662
      %v3665 = vadd.f32 %v3656, %v3663
      %v3666 = vadd.f32 %v3657, %v3663
      %v3667 = vadd.f32 %v3665, %v734
      %v3668 = vadd.f32 %v3666, %v735
      %v3669 = vld [vmem:[%s653] sm:$0x1]
      %v3670 = vld [vmem:[%s656] sm:$0x1]
      %v3671 = vsel %vm760, %v3667, 0.0
      %3672 = vadd.xlane.f32.xlu0 %v3671
      %v3673 = vpop.xlane.xlu0 %3672
      %v3674 = vsel %vm760, %v3668, 0.0
      %3675 = vadd.xlane.f32.xlu0 %v3674
      %v3676 = vpop.xlane.xlu0 %3675
      %v3677 = vrcp.pop 32.0
      %v3678 = vmul.f32 %v3673, %v3677
      %v3679 = vmul.f32 %v3676, %v3677
      %v3680 = vsub.f32 %v3667, %v3678
      %v3681 = vsub.f32 %v3668, %v3679
      %v3682 = vmul.f32 %v3680, %v3680
      %v3683 = vmul.f32 %v3681, %v3681
      %v3684 = vsel %vm760, %v3682, 0.0
      %3685 = vadd.xlane.f32.xlu0 %v3684
      %v3686 = vpop.xlane.xlu0 %3685
      %v3687 = vsel %vm760, %v3683, 0.0
      %3688 = vadd.xlane.f32.xlu0 %v3687
      %v3689 = vpop.xlane.xlu0 %3688
      %v3690 = vmul.f32 %v3686, %v3677
      %v3691 = vmul.f32 %v3689, %v3677
      %v3692 = vadd.f32 %v3690, 1e-05
      %v3693 = vadd.f32 %v3691, 1e-05
      %v3694 = vrsqrt.pop %v3692
      %v3695 = vrsqrt.pop %v3693
      %v3696 = vmul.f32 %v3680, %v3694
      %v3697 = vmul.f32 %v3681, %v3695
      %v3699 = vlaneseq
      %v3700 = vshrl.u32 %v3699, 7
      %v3701 = vsub.s32 0, %v3700
      %v3702 = vrot.slane %v3669, %v3701
      %v3704 = vmul.f32 %v3696, %v3702
      %v3705 = vmul.f32 %v3697, %v3702
      %v3707 = vlaneseq
      %v3708 = vshrl.u32 %v3707, 7
      %v3709 = vsub.s32 0, %v3708
      %v3710 = vrot.slane %v3670, %v3709
      %v3712 = vadd.f32 %v3704, %v3710
      %v3713 = vadd.f32 %v3705, %v3710
      %v3714 = vld [vmem:[%s661] sm:$0xf]
      %v3715 = vld [vmem:[%s661 + $0x4] sm:$0xf]
      %v3716 = vld [vmem:[%s661 + $0x8] sm:$0xf]
      %v3717 = vld [vmem:[%s661 + $0xc] sm:$0xf]
      %v3718 = vpack.c.bf16 %v3713, %v3712
      %v3719 = vld [vmem:[%s664] sm:$0x1]
      %v3721 = vlaneseq
      %v3722 = vshrl.u32 %v3721, 7
      %v3723 = vsub.s32 0, %v3722
      %v3724 = vrot.slane %v3719, %v3723
      %v3730 = vunpack.c.l.b16 %v3714
      %v3731 = vunpack.c.l.b16 %v3715
      %v3732 = vunpack.c.l.b16 %v3716
      %v3733 = vunpack.c.l.b16 %v3717
      %v3734 = vpack.c.b16 %v3731, %v3730
      %v3735 = vpack.c.b16 %v3733, %v3732
      %v3739 = vsel %vm760, %v3718, 0
      %3741 = vmatprep.subr.bf16.mxu0 0
      %3742 = vmatpush1.bf16.msra.mxu0 %v3734
      %3743 = vmatprep.subr.bf16.mxu0 0
      %3744 = vmatpush1.bf16.msra.mxu0 %v3735
      %3745 = vmatprep.subr.bf16.mxu0 0
      %3746 = vmatpush1.bf16.msra.mxu0 0
      %3747 = vmatprep.subr.bf16.mxu0 0
      %3748 = vmatpush1.bf16.msra.mxu0 0
      %3749 = vmatprep.subr.bf16.mxu0 0
      %3750 = vmatpush1.bf16.msra.mxu0 0
      %3751 = vmatprep.subr.bf16.mxu0 0
      %3752 = vmatpush1.bf16.msra.mxu0 0
      %3753 = vmatprep.subr.bf16.mxu0 0
      %3754 = vmatpush1.bf16.msra.mxu0 0
      %3755 = vmatprep.subr.bf16.mxu0 0
      %3756 = vmatpush1.bf16.msra.mxu0 0
      %3757 = vmatprep.subr.bf16.mxu0 0
      %3758 = vmatpush1.bf16.msra.mxu0 0
      %3759 = vmatprep.subr.bf16.mxu0 0
      %3760 = vmatpush1.bf16.msra.mxu0 0
      %3761 = vmatprep.subr.bf16.mxu0 0
      %3762 = vmatpush1.bf16.msra.mxu0 0
      %3763 = vmatprep.subr.bf16.mxu0 0
      %3764 = vmatpush1.bf16.msra.mxu0 0
      %3765 = vmatprep.subr.bf16.mxu0 0
      %3766 = vmatpush1.bf16.msra.mxu0 0
      %3767 = vmatprep.subr.bf16.mxu0 0
      %3768 = vmatpush1.bf16.msra.mxu0 0
      %3769 = vmatprep.subr.bf16.mxu0 0
      %3770 = vmatpush1.bf16.msra.mxu0 0
      %3771 = vmatprep.subr.bf16.mxu0 0
      %3772 = vmatpush1.bf16.msra.mxu0 0
      %3773 = vmatprep.mubr.bf16.mxu0 0
      %3774 = vmatmul.mubr.bf16.gmra.mrb[0].mxu0 %v3739
      %v3775 = vpop.f32.mrb[0].mxu0
      %v3776 = vadd.f32 %v3724, %v3775
      %v3777 = vpop.f32.mrb[0].mxu0
      %v3778 = vpop.f32.mrb[0].mxu0
      %v3779 = vadd.f32 %v3724, %v3778
      %v3780 = vpop.f32.mrb[0].mxu0
      %3781 = vdwg.mxu0
      %v3782 = vmul.f32 %v3776, %v3776
      %v3783 = vmul.f32 %v3779, %v3779
      %v3784 = vmul.f32 %v3776, %v3782
      %v3785 = vmul.f32 %v3779, %v3783
      %v3786 = vmul.f32 %v3784, 0.044715
      %v3787 = vmul.f32 %v3785, 0.044715
      %v3788 = vadd.f32 %v3776, %v3786
      %v3789 = vadd.f32 %v3779, %v3787
      %v3790 = vmul.f32 %v3788, 0.7978846
      %v3791 = vmul.f32 %v3789, 0.7978846
      %v3792 = vtanh.pop %v3790
      %v3793 = vtanh.pop %v3791
      %v3794 = vadd.f32 %v3792, 1.0
      %v3795 = vadd.f32 %v3793, 1.0
      %v3796 = vmul.f32 %v3794, 0.5
      %v3797 = vmul.f32 %v3795, 0.5
      %v3798 = vmul.f32 %v3776, %v3796
      %v3799 = vmul.f32 %v3779, %v3797
      %v3800 = vld [vmem:[%s669] sm:$0xf]
      %v3801 = vld [vmem:[%s669 + $0x4] sm:$0xf]
      %v3802 = vld [vmem:[%s669 + $0x8] sm:$0xf]
      %v3803 = vld [vmem:[%s669 + $0xc] sm:$0xf]
      %v3804 = vld [vmem:[%s669 + $0x10] sm:$0xf]
      %v3805 = vld [vmem:[%s669 + $0x14] sm:$0xf]
      %v3806 = vld [vmem:[%s669 + $0x18] sm:$0xf]
      %v3807 = vld [vmem:[%s669 + $0x1c] sm:$0xf]
      %v3808 = vpack.c.bf16 %v3799, %v3798
      %v3809 = vld [vmem:[%s672] sm:$0x1]
      %v3811 = vlaneseq
      %v3812 = vshrl.u32 %v3811, 7
      %v3813 = vsub.s32 0, %v3812
      %v3814 = vrot.slane %v3809, %v3813
      %v3824 = vunpack.c.l.b16 %v3800
      %v3825 = vunpack.c.l.b16 %v3801
      %v3826 = vunpack.c.l.b16 %v3802
      %v3827 = vunpack.c.l.b16 %v3803
      %v3828 = vunpack.c.l.b16 %v3804
      %v3829 = vunpack.c.l.b16 %v3805
      %v3830 = vunpack.c.l.b16 %v3806
      %v3831 = vunpack.c.l.b16 %v3807
      %v3832 = vpack.c.b16 %v3825, %v3824
      %v3833 = vpack.c.b16 %v3827, %v3826
      %v3834 = vpack.c.b16 %v3829, %v3828
      %v3835 = vpack.c.b16 %v3831, %v3830
      %vm3840 = vcmask 523264
      %v3842 = vsel %vm3840, %v3808, 0
      %3844 = vmatprep.subr.bf16.mxu0 0
      %3845 = vmatpush1.bf16.msra.mxu0 %v3832
      %3846 = vmatprep.subr.bf16.mxu0 0
      %3847 = vmatpush1.bf16.msra.mxu0 %v3833
      %3848 = vmatprep.subr.bf16.mxu0 0
      %3849 = vmatpush1.bf16.msra.mxu0 %v3834
      %3850 = vmatprep.subr.bf16.mxu0 0
      %3851 = vmatpush1.bf16.msra.mxu0 %v3835
      %3852 = vmatprep.subr.bf16.mxu0 0
      %3853 = vmatpush1.bf16.msra.mxu0 0
      %3854 = vmatprep.subr.bf16.mxu0 0
      %3855 = vmatpush1.bf16.msra.mxu0 0
      %3856 = vmatprep.subr.bf16.mxu0 0
      %3857 = vmatpush1.bf16.msra.mxu0 0
      %3858 = vmatprep.subr.bf16.mxu0 0
      %3859 = vmatpush1.bf16.msra.mxu0 0
      %3860 = vmatprep.subr.bf16.mxu0 0
      %3861 = vmatpush1.bf16.msra.mxu0 0
      %3862 = vmatprep.subr.bf16.mxu0 0
      %3863 = vmatpush1.bf16.msra.mxu0 0
      %3864 = vmatprep.subr.bf16.mxu0 0
      %3865 = vmatpush1.bf16.msra.mxu0 0
      %3866 = vmatprep.subr.bf16.mxu0 0
      %3867 = vmatpush1.bf16.msra.mxu0 0
      %3868 = vmatprep.subr.bf16.mxu0 0
      %3869 = vmatpush1.bf16.msra.mxu0 0
      %3870 = vmatprep.subr.bf16.mxu0 0
      %3871 = vmatpush1.bf16.msra.mxu0 0
      %3872 = vmatprep.subr.bf16.mxu0 0
      %3873 = vmatpush1.bf16.msra.mxu0 0
      %3874 = vmatprep.subr.bf16.mxu0 0
      %3875 = vmatpush1.bf16.msra.mxu0 0
      %3876 = vmatprep.mubr.bf16.mxu0 0
      %3877 = vmatmul.mubr.bf16.gmra.mrb[0].mxu0 %v3842
      %v3878 = vpop.f32.mrb[0].mxu0
      %v3879 = vadd.f32 %v3814, %v3878
      %v3880 = vpop.f32.mrb[0].mxu0
      %v3881 = vpop.f32.mrb[0].mxu0
      %v3882 = vadd.f32 %v3814, %v3881
      %v3883 = vpop.f32.mrb[0].mxu0
      %3884 = vdwg.mxu0
      %v3885 = vadd.f32 %v3879, %v3712
      %v3886 = vadd.f32 %v3882, %v3713
      %v3887 = vld [vmem:[%s675] sm:$0x1]
      %v3888 = vld [vmem:[%s678] sm:$0x1]
      %v3889 = vsel %vm760, %v3885, 0.0
      %3890 = vadd.xlane.f32.xlu0 %v3889
      %v3891 = vpop.xlane.xlu0 %3890
      %v3892 = vsel %vm760, %v3886, 0.0
      %3893 = vadd.xlane.f32.xlu0 %v3892
      %v3894 = vpop.xlane.xlu0 %3893
      %v3895 = vmul.f32 %v3891, %v3677
      %v3896 = vmul.f32 %v3894, %v3677
      %v3897 = vsub.f32 %v3885, %v3895
      %v3898 = vsub.f32 %v3886, %v3896
      %v3899 = vmul.f32 %v3897, %v3897
      %v3900 = vmul.f32 %v3898, %v3898
      %v3901 = vsel %vm760, %v3899, 0.0
      %3902 = vadd.xlane.f32.xlu0 %v3901
      %v3903 = vpop.xlane.xlu0 %3902
      %v3904 = vsel %vm760, %v3900, 0.0
      %3905 = vadd.xlane.f32.xlu0 %v3904
      %v3906 = vpop.xlane.xlu0 %3905
      %v3907 = vmul.f32 %v3903, %v3677
      %v3908 = vmul.f32 %v3906, %v3677
      %v3909 = vadd.f32 %v3907, 1e-05
      %v3910 = vadd.f32 %v3908, 1e-05
      %v3911 = vrsqrt.pop %v3909
      %v3912 = vrsqrt.pop %v3910
      %v3913 = vmul.f32 %v3897, %v3911
      %v3914 = vmul.f32 %v3898, %v3912
      %v3916 = vlaneseq
      %v3917 = vshrl.u32 %v3916, 7
      %v3918 = vsub.s32 0, %v3917
      %v3919 = vrot.slane %v3887, %v3918
      %v3921 = vmul.f32 %v3913, %v3919
      %v3922 = vmul.f32 %v3914, %v3919
      %v3924 = vlaneseq
      %v3925 = vshrl.u32 %v3924, 7
      %v3926 = vsub.s32 0, %v3925
      %v3927 = vrot.slane %v3888, %v3926
      %v3929 = vadd.f32 %v3921, %v3927
      %v3930 = vadd.f32 %v3922, %v3927
      %3931 = vst.msk [vmem:[#allocation2] sm:$0xff] %vm760, %v3929
      %3932 = vst.msk [vmem:[#allocation2 + $0x8] sm:$0xff] %vm760, %v3930
      %p3933 = scmp.eq.s32.totalorder %s27, 1
      // Predicated region
      $region89: #{kadapter_forward.2} parent=83 // pred_check
        %p3934 = pneg %p3933
      $region90: #{kadapter_forward.2} parent=83 // pred_check_branch
        %3936 = sbr.rel (%p3934) target = $region92
      $region91: #{kadapter_forward.2} parent=83 // pred_region
        %v3937 = vpack.c.bf16 %v3930, %v3929
        %v3939 = vunpack.c.l.b16 %v3937
        %v3940 = vunpack.c.h.b16 %v3937
        %v3941 = vpack.c.b16 %v3939, %v3939
        %v3942 = vpack.c.b16 %v3940, %v3940
        %vm3945 = vcmask 257024
        %3946 = vst.msk [vmem:[%s16] sm:$0xf] %vm3945, %v3941
        %3947 = vst.msk [vmem:[%s16 + $0x4] sm:$0xf] %vm3945, %v3942
      $region92: #{kadapter_forward.2} parent=83 // pred_fallthru
        _
      // Predicated region
      $region93: #{kadapter_forward.2} parent=83 // pred_check
        %p3948 = pneg %p436
      $region94: #{kadapter_forward.2} parent=83 // pred_check_branch
        %3950 = sbr.rel (%p3948) target = $region96
      $region95: #{kadapter_forward.2} parent=83 // pred_region
        _
      $region96: #{kadapter_forward.2} parent=83 // pred_fallthru
        _
      // Predicated region
      $region97: #{kadapter_forward.2} parent=83 // pred_check
        %p3951 = pneg %p436
      $region98: #{kadapter_forward.2} parent=83 // pred_check_branch
        %3953 = sbr.rel (%p3951) target = $region100
      $region99: #{kadapter_forward.2} parent=83 // pred_region
        _
      $region100: #{kadapter_forward.2} parent=83 // pred_fallthru
        _
    $region84: #{kadapter_forward.2} parent=5 // pred_fallthru
      _
    %p3954 = scmp.le.s32.totalorder 2, %s22
    // Predicated region
    $region101: #{kadapter_forward.2} parent=5 // pred_check
      %p3955 = pneg %p3954
    $region102: #{kadapter_forward.2} parent=5 // pred_check_branch
      %3957 = sbr.rel (%p3955) target = $region104
    $region103: #{kadapter_forward.2} parent=5 // pred_region
      %s3958 = ssub.s32 %s22, 2
    $region104: #{kadapter_forward.2} parent=5 // pred_fallthru
      _
  $region6: #{kadapter_forward.2} parent=0 // loop_footer
    %s26 = sadd.s32 1, %s22
  $region7: #{kadapter_forward.2} parent=0 // loop_footer_branch
    %21 = sbr.rel target = $region3
  $region8: #{kadapter_forward.2} parent=0 // loop_exit
    _

</llo_original>
